<compile_context>
chip_gen: v7x
topology: tpu7x:2x2x1
jax: 0.10.0
libtpu: 0.0.40
codegen_flags: <defaults>
</compile_context>

<pallas_src>
import math

import jax
import jax.numpy as jnp
from jax.experimental import pallas as pl
from jax.experimental.pallas import tpu as pltpu


# ----------------------------------------------------------------------------
# Fused kernel factory: whole network in ONE pallas_call (no grid).
# ----------------------------------------------------------------------------
def make_fused_kernel(*, T, Bp, H, num_layers, num_dir):
    C = num_dir * H          # per-timestep LSTM output width
    G = 4 * H                # per-direction gate width (order [i, f, o, g])

    def cell(gates, c_prev):
        # gates: (rows, 4H), column order [i, f, o, g] -> one contiguous
        # sigmoid block and one tanh block (fewer EUP pushes per step).
        sg = jax.nn.sigmoid(gates[:, 0:3 * H])
        i = sg[:, 0:H]
        f = sg[:, H:2 * H]
        o = sg[:, 2 * H:3 * H]
        g = jnp.tanh(gates[:, 3 * H:4 * H])
        c = f * c_prev + i * g
        h = o * jnp.tanh(c)
        return h, c

    def kernel(*refs):
        x_ref = refs[0]
        lyr_refs = [refs[1 + 3 * l: 4 + 3 * l] for l in range(num_layers)]
        w1_hbm, b1_ref, w2_ref, b2_ref = refs[1 + 3 * num_layers: 5 + 3 * num_layers]
        o_ref = refs[5 + 3 * num_layers]
        w1_vmem, seq_buf, head_buf, dma_sem = refs[6 + 3 * num_layers:]

        # Kick off the head-weight DMA immediately: w1 is ~85% of all HBM bytes
        # this kernel moves, hide it behind the serial recurrence.
        w1_copy = pltpu.make_async_copy(w1_hbm, w1_vmem, dma_sem)
        w1_copy.start()

        R = num_dir * Bp      # stacked rows: 0:Bp forward, Bp:2Bp backward

        for layer in range(num_layers):
            wih_ref, whh_ref, b_ref = lyr_refs[layer]
            last = layer == num_layers - 1

            # Full read of the previous layer's slab BEFORE this layer writes it.
            layer_in = x_ref[...] if layer == 0 else seq_buf[...]

            # Hoisted, time-independent input projection for all timesteps and
            # both directions at once: (T*Bp, D_l) @ (D_l, num_dir*4H) + bias.
            proj = jnp.dot(layer_in, wih_ref[...],
                           preferred_element_type=jnp.float32) + b_ref[...]

            whh = whh_ref[...]                     # hoisted out of the time loop
            # TODO(synk): weight-stationary MXU driving (matmul_push_rhs) could
            # further shorten the per-step recurrent matmul; not used here.
            h_stack = jnp.zeros((R, H), jnp.float32)
            c_stack = jnp.zeros((R, H), jnp.float32)

            for s in range(T):                     # fully unrolled (static T)
                t_f = s                            # forward walks 0 .. T-1
                t_b = T - 1 - s                    # backward walks T-1 .. 0
                # One (R, H) @ (H, num_dir*4H) matmul covers both directions;
                # the off-diagonal quadrants are simply discarded.
                gates_h = jnp.dot(h_stack, whh,
                                  preferred_element_type=jnp.float32)
                gates_f = proj[t_f * Bp:(t_f + 1) * Bp, 0:G] + gates_h[0:Bp, 0:G]
                if num_dir == 2:
                    gates_b = (proj[t_b * Bp:(t_b + 1) * Bp, G:2 * G]
                               + gates_h[Bp:R, G:2 * G])
                    gates = jnp.concatenate([gates_f, gates_b], axis=0)
                else:
                    gates = gates_f

                h_stack, c_stack = cell(gates, c_stack)

                h_f = h_stack[0:Bp]
                if last:
                    # Last layer: batch-major layout feeding the single head matmul.
                    head_buf[:, t_f * C: t_f * C + H] = h_f
                else:
                    seq_buf[t_f * Bp:(t_f + 1) * Bp, 0:H] = h_f
                if num_dir == 2:
                    h_b = h_stack[Bp:R]
                    if last:
                        head_buf[:, t_b * C + H:(t_b + 1) * C] = h_b
                    else:
                        seq_buf[t_b * Bp:(t_b + 1) * Bp, H:C] = h_b
            # TODO(synk): inter-layer LSTM dropout skipped (eval-mode identity).

        # ---- Regression head: Linear(T*C -> 512) + ReLU + Linear(512 -> 1) ----
        w1_copy.wait()                             # head weights must have landed
        flat = head_buf[...].astype(jnp.bfloat16)  # (Bp, T*C), batch-major
        h1 = jnp.dot(flat, w1_vmem[...],
                     preferred_element_type=jnp.float32) + b1_ref[...]
        h1 = jnp.maximum(h1, 0.0)
        # TODO(synk): head dropout skipped (eval-mode identity).
        # Final (512 -> 1) as a row reduction (avoids a 1-lane MXU result).
        o_ref[...] = jnp.sum(h1 * w2_ref[...], axis=1, keepdims=True) + b2_ref[...]

    return kernel


# ----------------------------------------------------------------------------
# Parameter construction (deterministic, PyTorch-like uniform init), stored in
# the fused layouts the kernel consumes:
#   wih : (D_l, num_dir*4H)   = [W_ih_fwd^T | W_ih_bwd^T], gates reordered [i,f,o,g]
#   whh : (H,  num_dir*4H)    = [W_hh_fwd^T | W_hh_bwd^T]  (lane-concatenated)
#   b   : (1,  num_dir*4H)    = [b_ih_f + b_hh_f | b_ih_b + b_hh_b]
#   w1  : (T*C, 512) bfloat16 = W1^T (flat index t*C + c matches reshape(B, -1))
#   w2  : (1, 512), b1: (1, 512), b2: (1, 1)  (f32)
# ----------------------------------------------------------------------------
def init_params(key, *, num_mels, mel_len, hidden_size, num_layers, bidirectional):
    num_dir = 2 if bidirectional else 1
    H = hidden_size
    stdv = 1.0 / math.sqrt(H)

    def reorder_gates(w):
        # PyTorch gate order [i, f, g, o] -> kernel order [i, f, o, g] (last axis)
        return jnp.concatenate([w[..., 0:2 * H], w[..., 3 * H:4 * H],
                                w[..., 2 * H:3 * H]], axis=-1)

    layers = []
    for layer in range(num_layers):
        in_dim = num_mels if layer == 0 else H * num_dir
        wih_parts, whh_parts, b_parts = [], [], []
        for _ in range(num_dir):
            key, k1, k2, k3, k4 = jax.random.split(key, 5)
            wih = jax.random.uniform(k1, (4 * H, in_dim), minval=-stdv, maxval=stdv)
            whh = jax.random.uniform(k2, (4 * H, H), minval=-stdv, maxval=stdv)
            bih = jax.random.uniform(k3, (4 * H,), minval=-stdv, maxval=stdv)
            bhh = jax.random.uniform(k4, (4 * H,), minval=-stdv, maxval=stdv)
            wih_parts.append(reorder_gates(wih.T))      # (in_dim, 4H)
            whh_parts.append(reorder_gates(whh.T))      # (H, 4H)
            b_parts.append(reorder_gates(bih + bhh))    # (4H,)
        layers.append(dict(
            wih=jnp.concatenate(wih_parts, axis=1),      # (in_dim, num_dir*4H)
            whh=jnp.concatenate(whh_parts, axis=1),      # (H, num_dir*4H)
            b=jnp.concatenate(b_parts).reshape(1, -1),   # (1, num_dir*4H)
        ))

    C = H * num_dir
    F = C * mel_len
    key, k1, k2, k3, k4 = jax.random.split(key, 5)
    s1 = 1.0 / math.sqrt(F)
    s2 = 1.0 / math.sqrt(512)
    w1 = jax.random.uniform(k1, (512, F), minval=-s1, maxval=s1)
    head = dict(
        w1=w1.T.astype(jnp.bfloat16),                    # (T*C, 512) bf16 (halves DMA)
        b1=jax.random.uniform(k2, (512,), minval=-s1, maxval=s1).reshape(1, 512),
        w2=jax.random.uniform(k3, (1, 512), minval=-s2, maxval=s2),
        b2=jax.random.uniform(k4, (1,), minval=-s2, maxval=s2).reshape(1, 1),
    )
    meta = dict(H=H, num_dir=num_dir, num_layers=num_layers,
                num_mels=num_mels, mel_len=mel_len)
    return dict(lstm=layers, head=head, meta=meta)


# ----------------------------------------------------------------------------
# Full forward pass: one pallas_call.
# ----------------------------------------------------------------------------
def lstm_regression_forward(params, x):
    meta = params["meta"]
    H, num_dir, num_layers = meta["H"], meta["num_dir"], meta["num_layers"]
    B = x.shape[0]
    xs = x[:, 0].astype(jnp.float32)                     # squeeze(1): (B, T, M)
    T, M = xs.shape[1], xs.shape[2]
    C = num_dir * H

    # Pad batch to a sublane multiple (>=8) so every per-timestep row slice in
    # the kernel is tile-aligned; padded rows are independent and discarded.
    Bp = max(8, ((B + 7) // 8) * 8)
    x_tm = jnp.transpose(xs, (1, 0, 2))                  # (T, B, M), time-major
    if Bp != B:
        x_tm = jnp.pad(x_tm, ((0, 0), (0, Bp - B), (0, 0)))
    x_tm = x_tm.reshape(T * Bp, M)                       # row t*Bp + b = x[b, t, :]

    kernel = make_fused_kernel(T=T, Bp=Bp, H=H,
                               num_layers=num_layers, num_dir=num_dir)

    hp = params["head"]
    inputs = [x_tm]
    for lyr in params["lstm"]:
        inputs += [lyr["wih"], lyr["whh"], lyr["b"]]
    inputs += [hp["w1"], hp["b1"], hp["w2"], hp["b2"]]

    vmem_spec = pl.BlockSpec(memory_space=pltpu.MemorySpace.VMEM)
    in_specs = ([vmem_spec] * (1 + 3 * num_layers)
                + [pl.BlockSpec(memory_space=pl.ANY),    # w1 stays in HBM; kernel DMAs it
                   vmem_spec, vmem_spec, vmem_spec])

    out = pl.pallas_call(
        kernel,
        out_shape=jax.ShapeDtypeStruct((Bp, 1), jnp.float32),
        in_specs=in_specs,
        out_specs=vmem_spec,
        scratch_shapes=[
            pltpu.VMEM((T * C, 512), jnp.bfloat16),      # w1 landing buffer
            pltpu.VMEM((T * Bp, C), jnp.float32),        # inter-layer slab (time-major)
            pltpu.VMEM((Bp, T * C), jnp.float32),        # last layer, batch-major (head)
            pltpu.SemaphoreType.DMA(()),                 # w1 DMA completion
        ],
        compiler_params=pltpu.CompilerParams(
            vmem_limit_bytes=8 * 1024 * 1024),           # footprint ~1 MiB; headroom on v7x
    )(*inputs)
    return (None, out[:B])


# ----------------------------------------------------------------------------
# Pure-JAX reference (standard per-direction LSTM equations) for verification.
# Consumes the same fused/reordered parameter layouts.
# ----------------------------------------------------------------------------
def _reference_forward(params, x):
    hi = jax.lax.Precision.HIGHEST
    meta = params["meta"]
    H, nd = meta["H"], meta["num_dir"]
    B = x.shape[0]
    seq = jnp.transpose(x[:, 0].astype(jnp.float32), (1, 0, 2))    # (T, B, M)
    T = seq.shape[0]
    G = 4 * H

    def run_dir(seq_in, wih, whh, b, reverse):
        order = range(T - 1, -1, -1) if reverse else range(T)
        h = jnp.zeros((B, H), jnp.float32)
        c = jnp.zeros((B, H), jnp.float32)
        outs = [None] * T
        for t in order:
            g = jnp.dot(seq_in[t], wih, precision=hi) + jnp.dot(h, whh, precision=hi) + b
            i = jax.nn.sigmoid(g[:, 0:H])                # gate order [i, f, o, g]
            f = jax.nn.sigmoid(g[:, H:2 * H])
            o = jax.nn.sigmoid(g[:, 2 * H:3 * H])
            gg = jnp.tanh(g[:, 3 * H:4 * H])
            c = f * c + i * gg
            h = o * jnp.tanh(c)
            outs[t] = h
        return jnp.stack(outs, axis=0)                   # (T, B, H)

    for lyr in params["lstm"]:
        wih, whh, b = lyr["wih"], lyr["whh"], lyr["b"]
        out_f = run_dir(seq, wih[:, :G], whh[:, :G], b[:, :G], False)
        if nd == 2:
            out_b = run_dir(seq, wih[:, G:], whh[:, G:], b[:, G:], True)
            seq = jnp.concatenate([out_f, out_b], axis=-1)
        else:
            seq = out_f

    flat = jnp.transpose(seq, (1, 0, 2)).reshape(B, -1)  # (B, T*C)
    hp = params["head"]
    w1 = hp["w1"].astype(jnp.float32)                    # same quantized values
    h1 = jnp.maximum(jnp.dot(flat, w1, precision=hi) + hp["b1"], 0.0)
    return jnp.dot(h1, hp["w2"].T, precision=hi) + hp["b2"]       # (B, 1)


if __name__ == "__main__":
    # Small shapes consistent with the module (batch=2, seq=mel_len=8,
    # num_mels=32, hidden=32, 2 bidirectional layers).
    B, NUM_MELS, MEL_LEN, HIDDEN, NUM_LAYERS = 2, 32, 8, 32, 2
    BIDIRECTIONAL = True

    key = jax.random.PRNGKey(0)
    pkey, xkey = jax.random.split(key)
    params = init_params(pkey, num_mels=NUM_MELS, mel_len=MEL_LEN,
                         hidden_size=HIDDEN, num_layers=NUM_LAYERS,
                         bidirectional=BIDIRECTIONAL)

    x = jax.random.normal(xkey, (B, 1, MEL_LEN, NUM_MELS), dtype=jnp.float32)

    _, out = lstm_regression_forward(params, x)
    out = jax.block_until_ready(out)
    assert out.shape == (B, 1), out.shape

    ref = _reference_forward(params, x)
    err = float(jnp.max(jnp.abs(out - ref)))
    # Tolerance covers MXU default-precision matmuls (bf16-rounded operands) and
    # the bf16 head weights/activations vs. the Precision.HIGHEST f32 reference.
    assert err < 2e-2, f"kernel/reference mismatch: max abs err = {err}"

    print("KERNEL_OK")
</pallas_src>

<mosaic_0001>
module attributes {stable_mosaic.version = 11 : i64} {
  func.func @kernel(%arg0: memref<64x32xf32, #tpu.memory_space<vmem>>, %arg1: memref<32x256xf32, #tpu.memory_space<vmem>>, %arg2: memref<32x256xf32, #tpu.memory_space<vmem>>, %arg3: memref<1x256xf32, #tpu.memory_space<vmem>>, %arg4: memref<64x256xf32, #tpu.memory_space<vmem>>, %arg5: memref<32x256xf32, #tpu.memory_space<vmem>>, %arg6: memref<1x256xf32, #tpu.memory_space<vmem>>, %arg7: memref<512x512xbf16, #tpu.memory_space<any>>, %arg8: memref<1x512xf32, #tpu.memory_space<vmem>>, %arg9: memref<1x512xf32, #tpu.memory_space<vmem>>, %arg10: memref<1x1xf32, #tpu.memory_space<vmem>>, %arg11: memref<8x1xf32, #tpu.memory_space<vmem>>, %arg12: memref<512x512xbf16, #tpu.memory_space<vmem>>, %arg13: memref<64x64xf32, #tpu.memory_space<vmem>>, %arg14: memref<8x512xf32, #tpu.memory_space<vmem>>, %arg15: memref<!tpu.dma_semaphore, #tpu.memory_space<semaphore_mem>>) attributes {dimension_semantics = [], scalar_prefetch = 0 : i64, scratch_operands = 4 : i64, tpu.core_type = #tpu.core_type<tc>} {
    tpu.enqueue_dma source(%arg7 : memref<512x512xbf16, #tpu.memory_space<any>>) target(%arg12 : memref<512x512xbf16, #tpu.memory_space<vmem>>) target_semaphore(%arg15 : memref<!tpu.dma_semaphore, #tpu.memory_space<semaphore_mem>>)
    %c0 = arith.constant 0 : index
    %c0_0 = arith.constant 0 : index
    %0 = vector.load %arg0[%c0, %c0_0] : memref<64x32xf32, #tpu.memory_space<vmem>>, vector<64x32xf32>
    %c0_1 = arith.constant 0 : index
    %c0_2 = arith.constant 0 : index
    %1 = vector.load %arg1[%c0_1, %c0_2] : memref<32x256xf32, #tpu.memory_space<vmem>>, vector<32x256xf32>
    %cst = arith.constant dense<0.000000e+00> : vector<64x256xf32>
    %2 = tpu.matmul %0, %1, %cst {dimension_numbers = #tpu.dot_dimension_numbers<[1], [0], [0], [1], [0, 0, 1, 1], [], []>} : vector<64x32xf32>, vector<32x256xf32>, vector<64x256xf32> -> vector<64x256xf32>
    %c0_3 = arith.constant 0 : index
    %c0_4 = arith.constant 0 : index
    %3 = vector.load %arg3[%c0_3, %c0_4] : memref<1x256xf32, #tpu.memory_space<vmem>>, vector<1x256xf32>
    %4 = vector.broadcast %3 : vector<1x256xf32> to vector<64x256xf32>
    %5 = arith.addf %2, %4 : vector<64x256xf32>
    %c0_5 = arith.constant 0 : index
    %c0_6 = arith.constant 0 : index
    %6 = vector.load %arg2[%c0_5, %c0_6] : memref<32x256xf32, #tpu.memory_space<vmem>>, vector<32x256xf32>
    %cst_7 = arith.constant 0.000000e+00 : f32
    %7 = vector.broadcast %cst_7 : f32 to vector<16x32xf32>
    %cst_8 = arith.constant 0.000000e+00 : f32
    %8 = vector.broadcast %cst_8 : f32 to vector<16x32xf32>
    %cst_9 = arith.constant dense<0.000000e+00> : vector<16x256xf32>
    %9 = tpu.matmul %7, %6, %cst_9 {dimension_numbers = #tpu.dot_dimension_numbers<[1], [0], [0], [1], [0, 0, 1, 1], [], []>} : vector<16x32xf32>, vector<32x256xf32>, vector<16x256xf32> -> vector<16x256xf32>
    %10 = vector.extract_strided_slice %5 {offsets = [0, 0], sizes = [8, 128], strides = [1, 1]} : vector<64x256xf32> to vector<8x128xf32>
    %11 = vector.extract_strided_slice %9 {offsets = [0, 0], sizes = [8, 128], strides = [1, 1]} : vector<16x256xf32> to vector<8x128xf32>
    %12 = arith.addf %10, %11 : vector<8x128xf32>
    %13 = vector.extract_strided_slice %5 {offsets = [56, 128], sizes = [8, 128], strides = [1, 1]} : vector<64x256xf32> to vector<8x128xf32>
    %14 = vector.extract_strided_slice %9 {offsets = [8, 128], sizes = [8, 128], strides = [1, 1]} : vector<16x256xf32> to vector<8x128xf32>
    %15 = arith.addf %13, %14 : vector<8x128xf32>
    %16 = tpu.concatenate %12, %15 in 0 : vector<8x128xf32>, vector<8x128xf32> -> vector<16x128xf32>
    %17 = vector.extract_strided_slice %16 {offsets = [0, 0], sizes = [16, 96], strides = [1, 1]} : vector<16x128xf32> to vector<16x96xf32>
    %18 = arith.negf %17 : vector<16x96xf32>
    %19 = math.exp %18 : vector<16x96xf32>
    %cst_10 = arith.constant 1.000000e+00 : f32
    %20 = vector.broadcast %cst_10 : f32 to vector<16x96xf32>
    %21 = arith.addf %20, %19 : vector<16x96xf32>
    %22 = arith.divf %20, %21 : vector<16x96xf32>
    %23 = vector.extract_strided_slice %22 {offsets = [0, 0], sizes = [16, 32], strides = [1, 1]} : vector<16x96xf32> to vector<16x32xf32>
    %24 = vector.extract_strided_slice %22 {offsets = [0, 32], sizes = [16, 32], strides = [1, 1]} : vector<16x96xf32> to vector<16x32xf32>
    %25 = vector.extract_strided_slice %22 {offsets = [0, 64], sizes = [16, 32], strides = [1, 1]} : vector<16x96xf32> to vector<16x32xf32>
    %26 = vector.extract_strided_slice %16 {offsets = [0, 96], sizes = [16, 32], strides = [1, 1]} : vector<16x128xf32> to vector<16x32xf32>
    %27 = math.tanh %26 : vector<16x32xf32>
    %28 = arith.mulf %24, %8 : vector<16x32xf32>
    %29 = arith.mulf %23, %27 : vector<16x32xf32>
    %30 = arith.addf %28, %29 : vector<16x32xf32>
    %31 = math.tanh %30 : vector<16x32xf32>
    %32 = arith.mulf %25, %31 : vector<16x32xf32>
    %33 = vector.extract_strided_slice %32 {offsets = [0, 0], sizes = [8, 32], strides = [1, 1]} : vector<16x32xf32> to vector<8x32xf32>
    %c0_11 = arith.constant 0 : index
    %c0_12 = arith.constant 0 : index
    %34 = vector.load %arg13[%c0_11, %c0_12] : memref<64x64xf32, #tpu.memory_space<vmem>>, vector<8x32xf32>
    tpu.vector_store %arg13[%c0_11, %c0_12], %33 {strides = array<i32>} : memref<64x64xf32, #tpu.memory_space<vmem>>, vector<8x32xf32>,
    %35 = vector.extract_strided_slice %32 {offsets = [8, 0], sizes = [8, 32], strides = [1, 1]} : vector<16x32xf32> to vector<8x32xf32>
    %c56 = arith.constant 56 : index
    %c32 = arith.constant 32 : index
    %36 = vector.load %arg13[%c56, %c32] : memref<64x64xf32, #tpu.memory_space<vmem>>, vector<8x32xf32>
    tpu.vector_store %arg13[%c56, %c32], %35 {strides = array<i32>} : memref<64x64xf32, #tpu.memory_space<vmem>>, vector<8x32xf32>,
    %cst_13 = arith.constant dense<0.000000e+00> : vector<16x256xf32>
    %37 = tpu.matmul %32, %6, %cst_13 {dimension_numbers = #tpu.dot_dimension_numbers<[1], [0], [0], [1], [0, 0, 1, 1], [], []>} : vector<16x32xf32>, vector<32x256xf32>, vector<16x256xf32> -> vector<16x256xf32>
    %38 = vector.extract_strided_slice %5 {offsets = [8, 0], sizes = [8, 128], strides = [1, 1]} : vector<64x256xf32> to vector<8x128xf32>
    %39 = vector.extract_strided_slice %37 {offsets = [0, 0], sizes = [8, 128], strides = [1, 1]} : vector<16x256xf32> to vector<8x128xf32>
    %40 = arith.addf %38, %39 : vector<8x128xf32>
    %41 = vector.extract_strided_slice %5 {offsets = [48, 128], sizes = [8, 128], strides = [1, 1]} : vector<64x256xf32> to vector<8x128xf32>
    %42 = vector.extract_strided_slice %37 {offsets = [8, 128], sizes = [8, 128], strides = [1, 1]} : vector<16x256xf32> to vector<8x128xf32>
    %43 = arith.addf %41, %42 : vector<8x128xf32>
    %44 = tpu.concatenate %40, %43 in 0 : vector<8x128xf32>, vector<8x128xf32> -> vector<16x128xf32>
    %45 = vector.extract_strided_slice %44 {offsets = [0, 0], sizes = [16, 96], strides = [1, 1]} : vector<16x128xf32> to vector<16x96xf32>
    %46 = arith.negf %45 : vector<16x96xf32>
    %47 = math.exp %46 : vector<16x96xf32>
    %cst_14 = arith.constant 1.000000e+00 : f32
    %48 = vector.broadcast %cst_14 : f32 to vector<16x96xf32>
    %49 = arith.addf %48, %47 : vector<16x96xf32>
    %50 = arith.divf %48, %49 : vector<16x96xf32>
    %51 = vector.extract_strided_slice %50 {offsets = [0, 0], sizes = [16, 32], strides = [1, 1]} : vector<16x96xf32> to vector<16x32xf32>
    %52 = vector.extract_strided_slice %50 {offsets = [0, 32], sizes = [16, 32], strides = [1, 1]} : vector<16x96xf32> to vector<16x32xf32>
    %53 = vector.extract_strided_slice %50 {offsets = [0, 64], sizes = [16, 32], strides = [1, 1]} : vector<16x96xf32> to vector<16x32xf32>
    %54 = vector.extract_strided_slice %44 {offsets = [0, 96], sizes = [16, 32], strides = [1, 1]} : vector<16x128xf32> to vector<16x32xf32>
    %55 = math.tanh %54 : vector<16x32xf32>
    %56 = arith.mulf %52, %30 : vector<16x32xf32>
    %57 = arith.mulf %51, %55 : vector<16x32xf32>
    %58 = arith.addf %56, %57 : vector<16x32xf32>
    %59 = math.tanh %58 : vector<16x32xf32>
    %60 = arith.mulf %53, %59 : vector<16x32xf32>
    %61 = vector.extract_strided_slice %60 {offsets = [0, 0], sizes = [8, 32], strides = [1, 1]} : vector<16x32xf32> to vector<8x32xf32>
    %c8 = arith.constant 8 : index
    %c0_15 = arith.constant 0 : index
    %62 = vector.load %arg13[%c8, %c0_15] : memref<64x64xf32, #tpu.memory_space<vmem>>, vector<8x32xf32>
    tpu.vector_store %arg13[%c8, %c0_15], %61 {strides = array<i32>} : memref<64x64xf32, #tpu.memory_space<vmem>>, vector<8x32xf32>,
    %63 = vector.extract_strided_slice %60 {offsets = [8, 0], sizes = [8, 32], strides = [1, 1]} : vector<16x32xf32> to vector<8x32xf32>
    %c48 = arith.constant 48 : index
    %c32_16 = arith.constant 32 : index
    %64 = vector.load %arg13[%c48, %c32_16] : memref<64x64xf32, #tpu.memory_space<vmem>>, vector<8x32xf32>
    tpu.vector_store %arg13[%c48, %c32_16], %63 {strides = array<i32>} : memref<64x64xf32, #tpu.memory_space<vmem>>, vector<8x32xf32>,
    %cst_17 = arith.constant dense<0.000000e+00> : vector<16x256xf32>
    %65 = tpu.matmul %60, %6, %cst_17 {dimension_numbers = #tpu.dot_dimension_numbers<[1], [0], [0], [1], [0, 0, 1, 1], [], []>} : vector<16x32xf32>, vector<32x256xf32>, vector<16x256xf32> -> vector<16x256xf32>
    %66 = vector.extract_strided_slice %5 {offsets = [16, 0], sizes = [8, 128], strides = [1, 1]} : vector<64x256xf32> to vector<8x128xf32>
    %67 = vector.extract_strided_slice %65 {offsets = [0, 0], sizes = [8, 128], strides = [1, 1]} : vector<16x256xf32> to vector<8x128xf32>
    %68 = arith.addf %66, %67 : vector<8x128xf32>
    %69 = vector.extract_strided_slice %5 {offsets = [40, 128], sizes = [8, 128], strides = [1, 1]} : vector<64x256xf32> to vector<8x128xf32>
    %70 = vector.extract_strided_slice %65 {offsets = [8, 128], sizes = [8, 128], strides = [1, 1]} : vector<16x256xf32> to vector<8x128xf32>
    %71 = arith.addf %69, %70 : vector<8x128xf32>
    %72 = tpu.concatenate %68, %71 in 0 : vector<8x128xf32>, vector<8x128xf32> -> vector<16x128xf32>
    %73 = vector.extract_strided_slice %72 {offsets = [0, 0], sizes = [16, 96], strides = [1, 1]} : vector<16x128xf32> to vector<16x96xf32>
    %74 = arith.negf %73 : vector<16x96xf32>
    %75 = math.exp %74 : vector<16x96xf32>
    %cst_18 = arith.constant 1.000000e+00 : f32
    %76 = vector.broadcast %cst_18 : f32 to vector<16x96xf32>
    %77 = arith.addf %76, %75 : vector<16x96xf32>
    %78 = arith.divf %76, %77 : vector<16x96xf32>
    %79 = vector.extract_strided_slice %78 {offsets = [0, 0], sizes = [16, 32], strides = [1, 1]} : vector<16x96xf32> to vector<16x32xf32>
    %80 = vector.extract_strided_slice %78 {offsets = [0, 32], sizes = [16, 32], strides = [1, 1]} : vector<16x96xf32> to vector<16x32xf32>
    %81 = vector.extract_strided_slice %78 {offsets = [0, 64], sizes = [16, 32], strides = [1, 1]} : vector<16x96xf32> to vector<16x32xf32>
    %82 = vector.extract_strided_slice %72 {offsets = [0, 96], sizes = [16, 32], strides = [1, 1]} : vector<16x128xf32> to vector<16x32xf32>
    %83 = math.tanh %82 : vector<16x32xf32>
    %84 = arith.mulf %80, %58 : vector<16x32xf32>
    %85 = arith.mulf %79, %83 : vector<16x32xf32>
    %86 = arith.addf %84, %85 : vector<16x32xf32>
    %87 = math.tanh %86 : vector<16x32xf32>
    %88 = arith.mulf %81, %87 : vector<16x32xf32>
    %89 = vector.extract_strided_slice %88 {offsets = [0, 0], sizes = [8, 32], strides = [1, 1]} : vector<16x32xf32> to vector<8x32xf32>
    %c16 = arith.constant 16 : index
    %c0_19 = arith.constant 0 : index
    %90 = vector.load %arg13[%c16, %c0_19] : memref<64x64xf32, #tpu.memory_space<vmem>>, vector<8x32xf32>
    tpu.vector_store %arg13[%c16, %c0_19], %89 {strides = array<i32>} : memref<64x64xf32, #tpu.memory_space<vmem>>, vector<8x32xf32>,
    %91 = vector.extract_strided_slice %88 {offsets = [8, 0], sizes = [8, 32], strides = [1, 1]} : vector<16x32xf32> to vector<8x32xf32>
    %c40 = arith.constant 40 : index
    %c32_20 = arith.constant 32 : index
    %92 = vector.load %arg13[%c40, %c32_20] : memref<64x64xf32, #tpu.memory_space<vmem>>, vector<8x32xf32>
    tpu.vector_store %arg13[%c40, %c32_20], %91 {strides = array<i32>} : memref<64x64xf32, #tpu.memory_space<vmem>>, vector<8x32xf32>,
    %cst_21 = arith.constant dense<0.000000e+00> : vector<16x256xf32>
    %93 = tpu.matmul %88, %6, %cst_21 {dimension_numbers = #tpu.dot_dimension_numbers<[1], [0], [0], [1], [0, 0, 1, 1], [], []>} : vector<16x32xf32>, vector<32x256xf32>, vector<16x256xf32> -> vector<16x256xf32>
    %94 = vector.extract_strided_slice %5 {offsets = [24, 0], sizes = [8, 128], strides = [1, 1]} : vector<64x256xf32> to vector<8x128xf32>
    %95 = vector.extract_strided_slice %93 {offsets = [0, 0], sizes = [8, 128], strides = [1, 1]} : vector<16x256xf32> to vector<8x128xf32>
    %96 = arith.addf %94, %95 : vector<8x128xf32>
    %97 = vector.extract_strided_slice %5 {offsets = [32, 128], sizes = [8, 128], strides = [1, 1]} : vector<64x256xf32> to vector<8x128xf32>
    %98 = vector.extract_strided_slice %93 {offsets = [8, 128], sizes = [8, 128], strides = [1, 1]} : vector<16x256xf32> to vector<8x128xf32>
    %99 = arith.addf %97, %98 : vector<8x128xf32>
    %100 = tpu.concatenate %96, %99 in 0 : vector<8x128xf32>, vector<8x128xf32> -> vector<16x128xf32>
    %101 = vector.extract_strided_slice %100 {offsets = [0, 0], sizes = [16, 96], strides = [1, 1]} : vector<16x128xf32> to vector<16x96xf32>
    %102 = arith.negf %101 : vector<16x96xf32>
    %103 = math.exp %102 : vector<16x96xf32>
    %cst_22 = arith.constant 1.000000e+00 : f32
    %104 = vector.broadcast %cst_22 : f32 to vector<16x96xf32>
    %105 = arith.addf %104, %103 : vector<16x96xf32>
    %106 = arith.divf %104, %105 : vector<16x96xf32>
    %107 = vector.extract_strided_slice %106 {offsets = [0, 0], sizes = [16, 32], strides = [1, 1]} : vector<16x96xf32> to vector<16x32xf32>
    %108 = vector.extract_strided_slice %106 {offsets = [0, 32], sizes = [16, 32], strides = [1, 1]} : vector<16x96xf32> to vector<16x32xf32>
    %109 = vector.extract_strided_slice %106 {offsets = [0, 64], sizes = [16, 32], strides = [1, 1]} : vector<16x96xf32> to vector<16x32xf32>
    %110 = vector.extract_strided_slice %100 {offsets = [0, 96], sizes = [16, 32], strides = [1, 1]} : vector<16x128xf32> to vector<16x32xf32>
    %111 = math.tanh %110 : vector<16x32xf32>
    %112 = arith.mulf %108, %86 : vector<16x32xf32>
    %113 = arith.mulf %107, %111 : vector<16x32xf32>
    %114 = arith.addf %112, %113 : vector<16x32xf32>
    %115 = math.tanh %114 : vector<16x32xf32>
    %116 = arith.mulf %109, %115 : vector<16x32xf32>
    %117 = vector.extract_strided_slice %116 {offsets = [0, 0], sizes = [8, 32], strides = [1, 1]} : vector<16x32xf32> to vector<8x32xf32>
    %c24 = arith.constant 24 : index
    %c0_23 = arith.constant 0 : index
    %118 = vector.load %arg13[%c24, %c0_23] : memref<64x64xf32, #tpu.memory_space<vmem>>, vector<8x32xf32>
    tpu.vector_store %arg13[%c24, %c0_23], %117 {strides = array<i32>} : memref<64x64xf32, #tpu.memory_space<vmem>>, vector<8x32xf32>,
    %119 = vector.extract_strided_slice %116 {offsets = [8, 0], sizes = [8, 32], strides = [1, 1]} : vector<16x32xf32> to vector<8x32xf32>
    %c32_24 = arith.constant 32 : index
    %c32_25 = arith.constant 32 : index
    %120 = vector.load %arg13[%c32_24, %c32_25] : memref<64x64xf32, #tpu.memory_space<vmem>>, vector<8x32xf32>
    tpu.vector_store %arg13[%c32_24, %c32_25], %119 {strides = array<i32>} : memref<64x64xf32, #tpu.memory_space<vmem>>, vector<8x32xf32>,
    %cst_26 = arith.constant dense<0.000000e+00> : vector<16x256xf32>
    %121 = tpu.matmul %116, %6, %cst_26 {dimension_numbers = #tpu.dot_dimension_numbers<[1], [0], [0], [1], [0, 0, 1, 1], [], []>} : vector<16x32xf32>, vector<32x256xf32>, vector<16x256xf32> -> vector<16x256xf32>
    %122 = vector.extract_strided_slice %5 {offsets = [32, 0], sizes = [8, 128], strides = [1, 1]} : vector<64x256xf32> to vector<8x128xf32>
    %123 = vector.extract_strided_slice %121 {offsets = [0, 0], sizes = [8, 128], strides = [1, 1]} : vector<16x256xf32> to vector<8x128xf32>
    %124 = arith.addf %122, %123 : vector<8x128xf32>
    %125 = vector.extract_strided_slice %5 {offsets = [24, 128], sizes = [8, 128], strides = [1, 1]} : vector<64x256xf32> to vector<8x128xf32>
    %126 = vector.extract_strided_slice %121 {offsets = [8, 128], sizes = [8, 128], strides = [1, 1]} : vector<16x256xf32> to vector<8x128xf32>
    %127 = arith.addf %125, %126 : vector<8x128xf32>
    %128 = tpu.concatenate %124, %127 in 0 : vector<8x128xf32>, vector<8x128xf32> -> vector<16x128xf32>
    %129 = vector.extract_strided_slice %128 {offsets = [0, 0], sizes = [16, 96], strides = [1, 1]} : vector<16x128xf32> to vector<16x96xf32>
    %130 = arith.negf %129 : vector<16x96xf32>
    %131 = math.exp %130 : vector<16x96xf32>
    %cst_27 = arith.constant 1.000000e+00 : f32
    %132 = vector.broadcast %cst_27 : f32 to vector<16x96xf32>
    %133 = arith.addf %132, %131 : vector<16x96xf32>
    %134 = arith.divf %132, %133 : vector<16x96xf32>
    %135 = vector.extract_strided_slice %134 {offsets = [0, 0], sizes = [16, 32], strides = [1, 1]} : vector<16x96xf32> to vector<16x32xf32>
    %136 = vector.extract_strided_slice %134 {offsets = [0, 32], sizes = [16, 32], strides = [1, 1]} : vector<16x96xf32> to vector<16x32xf32>
    %137 = vector.extract_strided_slice %134 {offsets = [0, 64], sizes = [16, 32], strides = [1, 1]} : vector<16x96xf32> to vector<16x32xf32>
    %138 = vector.extract_strided_slice %128 {offsets = [0, 96], sizes = [16, 32], strides = [1, 1]} : vector<16x128xf32> to vector<16x32xf32>
    %139 = math.tanh %138 : vector<16x32xf32>
    %140 = arith.mulf %136, %114 : vector<16x32xf32>
    %141 = arith.mulf %135, %139 : vector<16x32xf32>
    %142 = arith.addf %140, %141 : vector<16x32xf32>
    %143 = math.tanh %142 : vector<16x32xf32>
    %144 = arith.mulf %137, %143 : vector<16x32xf32>
    %145 = vector.extract_strided_slice %144 {offsets = [0, 0], sizes = [8, 32], strides = [1, 1]} : vector<16x32xf32> to vector<8x32xf32>
    %c32_28 = arith.constant 32 : index
    %c0_29 = arith.constant 0 : index
    %146 = vector.load %arg13[%c32_28, %c0_29] : memref<64x64xf32, #tpu.memory_space<vmem>>, vector<8x32xf32>
    tpu.vector_store %arg13[%c32_28, %c0_29], %145 {strides = array<i32>} : memref<64x64xf32, #tpu.memory_space<vmem>>, vector<8x32xf32>,
    %147 = vector.extract_strided_slice %144 {offsets = [8, 0], sizes = [8, 32], strides = [1, 1]} : vector<16x32xf32> to vector<8x32xf32>
    %c24_30 = arith.constant 24 : index
    %c32_31 = arith.constant 32 : index
    %148 = vector.load %arg13[%c24_30, %c32_31] : memref<64x64xf32, #tpu.memory_space<vmem>>, vector<8x32xf32>
    tpu.vector_store %arg13[%c24_30, %c32_31], %147 {strides = array<i32>} : memref<64x64xf32, #tpu.memory_space<vmem>>, vector<8x32xf32>,
    %cst_32 = arith.constant dense<0.000000e+00> : vector<16x256xf32>
    %149 = tpu.matmul %144, %6, %cst_32 {dimension_numbers = #tpu.dot_dimension_numbers<[1], [0], [0], [1], [0, 0, 1, 1], [], []>} : vector<16x32xf32>, vector<32x256xf32>, vector<16x256xf32> -> vector<16x256xf32>
    %150 = vector.extract_strided_slice %5 {offsets = [40, 0], sizes = [8, 128], strides = [1, 1]} : vector<64x256xf32> to vector<8x128xf32>
    %151 = vector.extract_strided_slice %149 {offsets = [0, 0], sizes = [8, 128], strides = [1, 1]} : vector<16x256xf32> to vector<8x128xf32>
    %152 = arith.addf %150, %151 : vector<8x128xf32>
    %153 = vector.extract_strided_slice %5 {offsets = [16, 128], sizes = [8, 128], strides = [1, 1]} : vector<64x256xf32> to vector<8x128xf32>
    %154 = vector.extract_strided_slice %149 {offsets = [8, 128], sizes = [8, 128], strides = [1, 1]} : vector<16x256xf32> to vector<8x128xf32>
    %155 = arith.addf %153, %154 : vector<8x128xf32>
    %156 = tpu.concatenate %152, %155 in 0 : vector<8x128xf32>, vector<8x128xf32> -> vector<16x128xf32>
    %157 = vector.extract_strided_slice %156 {offsets = [0, 0], sizes = [16, 96], strides = [1, 1]} : vector<16x128xf32> to vector<16x96xf32>
    %158 = arith.negf %157 : vector<16x96xf32>
    %159 = math.exp %158 : vector<16x96xf32>
    %cst_33 = arith.constant 1.000000e+00 : f32
    %160 = vector.broadcast %cst_33 : f32 to vector<16x96xf32>
    %161 = arith.addf %160, %159 : vector<16x96xf32>
    %162 = arith.divf %160, %161 : vector<16x96xf32>
    %163 = vector.extract_strided_slice %162 {offsets = [0, 0], sizes = [16, 32], strides = [1, 1]} : vector<16x96xf32> to vector<16x32xf32>
    %164 = vector.extract_strided_slice %162 {offsets = [0, 32], sizes = [16, 32], strides = [1, 1]} : vector<16x96xf32> to vector<16x32xf32>
    %165 = vector.extract_strided_slice %162 {offsets = [0, 64], sizes = [16, 32], strides = [1, 1]} : vector<16x96xf32> to vector<16x32xf32>
    %166 = vector.extract_strided_slice %156 {offsets = [0, 96], sizes = [16, 32], strides = [1, 1]} : vector<16x128xf32> to vector<16x32xf32>
    %167 = math.tanh %166 : vector<16x32xf32>
    %168 = arith.mulf %164, %142 : vector<16x32xf32>
    %169 = arith.mulf %163, %167 : vector<16x32xf32>
    %170 = arith.addf %168, %169 : vector<16x32xf32>
    %171 = math.tanh %170 : vector<16x32xf32>
    %172 = arith.mulf %165, %171 : vector<16x32xf32>
    %173 = vector.extract_strided_slice %172 {offsets = [0, 0], sizes = [8, 32], strides = [1, 1]} : vector<16x32xf32> to vector<8x32xf32>
    %c40_34 = arith.constant 40 : index
    %c0_35 = arith.constant 0 : index
    %174 = vector.load %arg13[%c40_34, %c0_35] : memref<64x64xf32, #tpu.memory_space<vmem>>, vector<8x32xf32>
    tpu.vector_store %arg13[%c40_34, %c0_35], %173 {strides = array<i32>} : memref<64x64xf32, #tpu.memory_space<vmem>>, vector<8x32xf32>,
    %175 = vector.extract_strided_slice %172 {offsets = [8, 0], sizes = [8, 32], strides = [1, 1]} : vector<16x32xf32> to vector<8x32xf32>
    %c16_36 = arith.constant 16 : index
    %c32_37 = arith.constant 32 : index
    %176 = vector.load %arg13[%c16_36, %c32_37] : memref<64x64xf32, #tpu.memory_space<vmem>>, vector<8x32xf32>
    tpu.vector_store %arg13[%c16_36, %c32_37], %175 {strides = array<i32>} : memref<64x64xf32, #tpu.memory_space<vmem>>, vector<8x32xf32>,
    %cst_38 = arith.constant dense<0.000000e+00> : vector<16x256xf32>
    %177 = tpu.matmul %172, %6, %cst_38 {dimension_numbers = #tpu.dot_dimension_numbers<[1], [0], [0], [1], [0, 0, 1, 1], [], []>} : vector<16x32xf32>, vector<32x256xf32>, vector<16x256xf32> -> vector<16x256xf32>
    %178 = vector.extract_strided_slice %5 {offsets = [48, 0], sizes = [8, 128], strides = [1, 1]} : vector<64x256xf32> to vector<8x128xf32>
    %179 = vector.extract_strided_slice %177 {offsets = [0, 0], sizes = [8, 128], strides = [1, 1]} : vector<16x256xf32> to vector<8x128xf32>
    %180 = arith.addf %178, %179 : vector<8x128xf32>
    %181 = vector.extract_strided_slice %5 {offsets = [8, 128], sizes = [8, 128], strides = [1, 1]} : vector<64x256xf32> to vector<8x128xf32>
    %182 = vector.extract_strided_slice %177 {offsets = [8, 128], sizes = [8, 128], strides = [1, 1]} : vector<16x256xf32> to vector<8x128xf32>
    %183 = arith.addf %181, %182 : vector<8x128xf32>
    %184 = tpu.concatenate %180, %183 in 0 : vector<8x128xf32>, vector<8x128xf32> -> vector<16x128xf32>
    %185 = vector.extract_strided_slice %184 {offsets = [0, 0], sizes = [16, 96], strides = [1, 1]} : vector<16x128xf32> to vector<16x96xf32>
    %186 = arith.negf %185 : vector<16x96xf32>
    %187 = math.exp %186 : vector<16x96xf32>
    %cst_39 = arith.constant 1.000000e+00 : f32
    %188 = vector.broadcast %cst_39 : f32 to vector<16x96xf32>
    %189 = arith.addf %188, %187 : vector<16x96xf32>
    %190 = arith.divf %188, %189 : vector<16x96xf32>
    %191 = vector.extract_strided_slice %190 {offsets = [0, 0], sizes = [16, 32], strides = [1, 1]} : vector<16x96xf32> to vector<16x32xf32>
    %192 = vector.extract_strided_slice %190 {offsets = [0, 32], sizes = [16, 32], strides = [1, 1]} : vector<16x96xf32> to vector<16x32xf32>
    %193 = vector.extract_strided_slice %190 {offsets = [0, 64], sizes = [16, 32], strides = [1, 1]} : vector<16x96xf32> to vector<16x32xf32>
    %194 = vector.extract_strided_slice %184 {offsets = [0, 96], sizes = [16, 32], strides = [1, 1]} : vector<16x128xf32> to vector<16x32xf32>
    %195 = math.tanh %194 : vector<16x32xf32>
    %196 = arith.mulf %192, %170 : vector<16x32xf32>
    %197 = arith.mulf %191, %195 : vector<16x32xf32>
    %198 = arith.addf %196, %197 : vector<16x32xf32>
    %199 = math.tanh %198 : vector<16x32xf32>
    %200 = arith.mulf %193, %199 : vector<16x32xf32>
    %201 = vector.extract_strided_slice %200 {offsets = [0, 0], sizes = [8, 32], strides = [1, 1]} : vector<16x32xf32> to vector<8x32xf32>
    %c48_40 = arith.constant 48 : index
    %c0_41 = arith.constant 0 : index
    %202 = vector.load %arg13[%c48_40, %c0_41] : memref<64x64xf32, #tpu.memory_space<vmem>>, vector<8x32xf32>
    tpu.vector_store %arg13[%c48_40, %c0_41], %201 {strides = array<i32>} : memref<64x64xf32, #tpu.memory_space<vmem>>, vector<8x32xf32>,
    %203 = vector.extract_strided_slice %200 {offsets = [8, 0], sizes = [8, 32], strides = [1, 1]} : vector<16x32xf32> to vector<8x32xf32>
    %c8_42 = arith.constant 8 : index
    %c32_43 = arith.constant 32 : index
    %204 = vector.load %arg13[%c8_42, %c32_43] : memref<64x64xf32, #tpu.memory_space<vmem>>, vector<8x32xf32>
    tpu.vector_store %arg13[%c8_42, %c32_43], %203 {strides = array<i32>} : memref<64x64xf32, #tpu.memory_space<vmem>>, vector<8x32xf32>,
    %cst_44 = arith.constant dense<0.000000e+00> : vector<16x256xf32>
    %205 = tpu.matmul %200, %6, %cst_44 {dimension_numbers = #tpu.dot_dimension_numbers<[1], [0], [0], [1], [0, 0, 1, 1], [], []>} : vector<16x32xf32>, vector<32x256xf32>, vector<16x256xf32> -> vector<16x256xf32>
    %206 = vector.extract_strided_slice %5 {offsets = [56, 0], sizes = [8, 128], strides = [1, 1]} : vector<64x256xf32> to vector<8x128xf32>
    %207 = vector.extract_strided_slice %205 {offsets = [0, 0], sizes = [8, 128], strides = [1, 1]} : vector<16x256xf32> to vector<8x128xf32>
    %208 = arith.addf %206, %207 : vector<8x128xf32>
    %209 = vector.extract_strided_slice %5 {offsets = [0, 128], sizes = [8, 128], strides = [1, 1]} : vector<64x256xf32> to vector<8x128xf32>
    %210 = vector.extract_strided_slice %205 {offsets = [8, 128], sizes = [8, 128], strides = [1, 1]} : vector<16x256xf32> to vector<8x128xf32>
    %211 = arith.addf %209, %210 : vector<8x128xf32>
    %212 = tpu.concatenate %208, %211 in 0 : vector<8x128xf32>, vector<8x128xf32> -> vector<16x128xf32>
    %213 = vector.extract_strided_slice %212 {offsets = [0, 0], sizes = [16, 96], strides = [1, 1]} : vector<16x128xf32> to vector<16x96xf32>
    %214 = arith.negf %213 : vector<16x96xf32>
    %215 = math.exp %214 : vector<16x96xf32>
    %cst_45 = arith.constant 1.000000e+00 : f32
    %216 = vector.broadcast %cst_45 : f32 to vector<16x96xf32>
    %217 = arith.addf %216, %215 : vector<16x96xf32>
    %218 = arith.divf %216, %217 : vector<16x96xf32>
    %219 = vector.extract_strided_slice %218 {offsets = [0, 0], sizes = [16, 32], strides = [1, 1]} : vector<16x96xf32> to vector<16x32xf32>
    %220 = vector.extract_strided_slice %218 {offsets = [0, 32], sizes = [16, 32], strides = [1, 1]} : vector<16x96xf32> to vector<16x32xf32>
    %221 = vector.extract_strided_slice %218 {offsets = [0, 64], sizes = [16, 32], strides = [1, 1]} : vector<16x96xf32> to vector<16x32xf32>
    %222 = vector.extract_strided_slice %212 {offsets = [0, 96], sizes = [16, 32], strides = [1, 1]} : vector<16x128xf32> to vector<16x32xf32>
    %223 = math.tanh %222 : vector<16x32xf32>
    %224 = arith.mulf %220, %198 : vector<16x32xf32>
    %225 = arith.mulf %219, %223 : vector<16x32xf32>
    %226 = arith.addf %224, %225 : vector<16x32xf32>
    %227 = math.tanh %226 : vector<16x32xf32>
    %228 = arith.mulf %221, %227 : vector<16x32xf32>
    %229 = vector.extract_strided_slice %228 {offsets = [0, 0], sizes = [8, 32], strides = [1, 1]} : vector<16x32xf32> to vector<8x32xf32>
    %c56_46 = arith.constant 56 : index
    %c0_47 = arith.constant 0 : index
    %230 = vector.load %arg13[%c56_46, %c0_47] : memref<64x64xf32, #tpu.memory_space<vmem>>, vector<8x32xf32>
    tpu.vector_store %arg13[%c56_46, %c0_47], %229 {strides = array<i32>} : memref<64x64xf32, #tpu.memory_space<vmem>>, vector<8x32xf32>,
    %231 = vector.extract_strided_slice %228 {offsets = [8, 0], sizes = [8, 32], strides = [1, 1]} : vector<16x32xf32> to vector<8x32xf32>
    %c0_48 = arith.constant 0 : index
    %c32_49 = arith.constant 32 : index
    %232 = vector.load %arg13[%c0_48, %c32_49] : memref<64x64xf32, #tpu.memory_space<vmem>>, vector<8x32xf32>
    tpu.vector_store %arg13[%c0_48, %c32_49], %231 {strides = array<i32>} : memref<64x64xf32, #tpu.memory_space<vmem>>, vector<8x32xf32>,
    %c0_50 = arith.constant 0 : index
    %c0_51 = arith.constant 0 : index
    %233 = vector.load %arg13[%c0_50, %c0_51] : memref<64x64xf32, #tpu.memory_space<vmem>>, vector<64x64xf32>
    %c0_52 = arith.constant 0 : index
    %c0_53 = arith.constant 0 : index
    %234 = vector.load %arg4[%c0_52, %c0_53] : memref<64x256xf32, #tpu.memory_space<vmem>>, vector<64x256xf32>
    %cst_54 = arith.constant dense<0.000000e+00> : vector<64x256xf32>
    %235 = tpu.matmul %233, %234, %cst_54 {dimension_numbers = #tpu.dot_dimension_numbers<[1], [0], [0], [1], [0, 0, 1, 1], [], []>} : vector<64x64xf32>, vector<64x256xf32>, vector<64x256xf32> -> vector<64x256xf32>
    %c0_55 = arith.constant 0 : index
    %c0_56 = arith.constant 0 : index
    %236 = vector.load %arg6[%c0_55, %c0_56] : memref<1x256xf32, #tpu.memory_space<vmem>>, vector<1x256xf32>
    %237 = vector.broadcast %236 : vector<1x256xf32> to vector<64x256xf32>
    %238 = arith.addf %235, %237 : vector<64x256xf32>
    %c0_57 = arith.constant 0 : index
    %c0_58 = arith.constant 0 : index
    %239 = vector.load %arg5[%c0_57, %c0_58] : memref<32x256xf32, #tpu.memory_space<vmem>>, vector<32x256xf32>
    %cst_59 = arith.constant 0.000000e+00 : f32
    %240 = vector.broadcast %cst_59 : f32 to vector<16x32xf32>
    %cst_60 = arith.constant 0.000000e+00 : f32
    %241 = vector.broadcast %cst_60 : f32 to vector<16x32xf32>
    %cst_61 = arith.constant dense<0.000000e+00> : vector<16x256xf32>
    %242 = tpu.matmul %240, %239, %cst_61 {dimension_numbers = #tpu.dot_dimension_numbers<[1], [0], [0], [1], [0, 0, 1, 1], [], []>} : vector<16x32xf32>, vector<32x256xf32>, vector<16x256xf32> -> vector<16x256xf32>
    %243 = vector.extract_strided_slice %238 {offsets = [0, 0], sizes = [8, 128], strides = [1, 1]} : vector<64x256xf32> to vector<8x128xf32>
    %244 = vector.extract_strided_slice %242 {offsets = [0, 0], sizes = [8, 128], strides = [1, 1]} : vector<16x256xf32> to vector<8x128xf32>
    %245 = arith.addf %243, %244 : vector<8x128xf32>
    %246 = vector.extract_strided_slice %238 {offsets = [56, 128], sizes = [8, 128], strides = [1, 1]} : vector<64x256xf32> to vector<8x128xf32>
    %247 = vector.extract_strided_slice %242 {offsets = [8, 128], sizes = [8, 128], strides = [1, 1]} : vector<16x256xf32> to vector<8x128xf32>
    %248 = arith.addf %246, %247 : vector<8x128xf32>
    %249 = tpu.concatenate %245, %248 in 0 : vector<8x128xf32>, vector<8x128xf32> -> vector<16x128xf32>
    %250 = vector.extract_strided_slice %249 {offsets = [0, 0], sizes = [16, 96], strides = [1, 1]} : vector<16x128xf32> to vector<16x96xf32>
    %251 = arith.negf %250 : vector<16x96xf32>
    %252 = math.exp %251 : vector<16x96xf32>
    %cst_62 = arith.constant 1.000000e+00 : f32
    %253 = vector.broadcast %cst_62 : f32 to vector<16x96xf32>
    %254 = arith.addf %253, %252 : vector<16x96xf32>
    %255 = arith.divf %253, %254 : vector<16x96xf32>
    %256 = vector.extract_strided_slice %255 {offsets = [0, 0], sizes = [16, 32], strides = [1, 1]} : vector<16x96xf32> to vector<16x32xf32>
    %257 = vector.extract_strided_slice %255 {offsets = [0, 32], sizes = [16, 32], strides = [1, 1]} : vector<16x96xf32> to vector<16x32xf32>
    %258 = vector.extract_strided_slice %255 {offsets = [0, 64], sizes = [16, 32], strides = [1, 1]} : vector<16x96xf32> to vector<16x32xf32>
    %259 = vector.extract_strided_slice %249 {offsets = [0, 96], sizes = [16, 32], strides = [1, 1]} : vector<16x128xf32> to vector<16x32xf32>
    %260 = math.tanh %259 : vector<16x32xf32>
    %261 = arith.mulf %257, %241 : vector<16x32xf32>
    %262 = arith.mulf %256, %260 : vector<16x32xf32>
    %263 = arith.addf %261, %262 : vector<16x32xf32>
    %264 = math.tanh %263 : vector<16x32xf32>
    %265 = arith.mulf %258, %264 : vector<16x32xf32>
    %266 = vector.extract_strided_slice %265 {offsets = [0, 0], sizes = [8, 32], strides = [1, 1]} : vector<16x32xf32> to vector<8x32xf32>
    %c0_63 = arith.constant 0 : index
    %c0_64 = arith.constant 0 : index
    %267 = vector.load %arg14[%c0_63, %c0_64] : memref<8x512xf32, #tpu.memory_space<vmem>>, vector<8x32xf32>
    tpu.vector_store %arg14[%c0_63, %c0_64], %266 {strides = array<i32>} : memref<8x512xf32, #tpu.memory_space<vmem>>, vector<8x32xf32>,
    %268 = vector.extract_strided_slice %265 {offsets = [8, 0], sizes = [8, 32], strides = [1, 1]} : vector<16x32xf32> to vector<8x32xf32>
    %c0_65 = arith.constant 0 : index
    %c480 = arith.constant 480 : index
    %269 = vector.load %arg14[%c0_65, %c480] : memref<8x512xf32, #tpu.memory_space<vmem>>, vector<8x32xf32>
    tpu.vector_store %arg14[%c0_65, %c480], %268 {strides = array<i32>} : memref<8x512xf32, #tpu.memory_space<vmem>>, vector<8x32xf32>,
    %cst_66 = arith.constant dense<0.000000e+00> : vector<16x256xf32>
    %270 = tpu.matmul %265, %239, %cst_66 {dimension_numbers = #tpu.dot_dimension_numbers<[1], [0], [0], [1], [0, 0, 1, 1], [], []>} : vector<16x32xf32>, vector<32x256xf32>, vector<16x256xf32> -> vector<16x256xf32>
    %271 = vector.extract_strided_slice %238 {offsets = [8, 0], sizes = [8, 128], strides = [1, 1]} : vector<64x256xf32> to vector<8x128xf32>
    %272 = vector.extract_strided_slice %270 {offsets = [0, 0], sizes = [8, 128], strides = [1, 1]} : vector<16x256xf32> to vector<8x128xf32>
    %273 = arith.addf %271, %272 : vector<8x128xf32>
    %274 = vector.extract_strided_slice %238 {offsets = [48, 128], sizes = [8, 128], strides = [1, 1]} : vector<64x256xf32> to vector<8x128xf32>
    %275 = vector.extract_strided_slice %270 {offsets = [8, 128], sizes = [8, 128], strides = [1, 1]} : vector<16x256xf32> to vector<8x128xf32>
    %276 = arith.addf %274, %275 : vector<8x128xf32>
    %277 = tpu.concatenate %273, %276 in 0 : vector<8x128xf32>, vector<8x128xf32> -> vector<16x128xf32>
    %278 = vector.extract_strided_slice %277 {offsets = [0, 0], sizes = [16, 96], strides = [1, 1]} : vector<16x128xf32> to vector<16x96xf32>
    %279 = arith.negf %278 : vector<16x96xf32>
    %280 = math.exp %279 : vector<16x96xf32>
    %cst_67 = arith.constant 1.000000e+00 : f32
    %281 = vector.broadcast %cst_67 : f32 to vector<16x96xf32>
    %282 = arith.addf %281, %280 : vector<16x96xf32>
    %283 = arith.divf %281, %282 : vector<16x96xf32>
    %284 = vector.extract_strided_slice %283 {offsets = [0, 0], sizes = [16, 32], strides = [1, 1]} : vector<16x96xf32> to vector<16x32xf32>
    %285 = vector.extract_strided_slice %283 {offsets = [0, 32], sizes = [16, 32], strides = [1, 1]} : vector<16x96xf32> to vector<16x32xf32>
    %286 = vector.extract_strided_slice %283 {offsets = [0, 64], sizes = [16, 32], strides = [1, 1]} : vector<16x96xf32> to vector<16x32xf32>
    %287 = vector.extract_strided_slice %277 {offsets = [0, 96], sizes = [16, 32], strides = [1, 1]} : vector<16x128xf32> to vector<16x32xf32>
    %288 = math.tanh %287 : vector<16x32xf32>
    %289 = arith.mulf %285, %263 : vector<16x32xf32>
    %290 = arith.mulf %284, %288 : vector<16x32xf32>
    %291 = arith.addf %289, %290 : vector<16x32xf32>
    %292 = math.tanh %291 : vector<16x32xf32>
    %293 = arith.mulf %286, %292 : vector<16x32xf32>
    %294 = vector.extract_strided_slice %293 {offsets = [0, 0], sizes = [8, 32], strides = [1, 1]} : vector<16x32xf32> to vector<8x32xf32>
    %c0_68 = arith.constant 0 : index
    %c64 = arith.constant 64 : index
    %295 = vector.load %arg14[%c0_68, %c64] : memref<8x512xf32, #tpu.memory_space<vmem>>, vector<8x32xf32>
    tpu.vector_store %arg14[%c0_68, %c64], %294 {strides = array<i32>} : memref<8x512xf32, #tpu.memory_space<vmem>>, vector<8x32xf32>,
    %296 = vector.extract_strided_slice %293 {offsets = [8, 0], sizes = [8, 32], strides = [1, 1]} : vector<16x32xf32> to vector<8x32xf32>
    %c0_69 = arith.constant 0 : index
    %c416 = arith.constant 416 : index
    %297 = vector.load %arg14[%c0_69, %c416] : memref<8x512xf32, #tpu.memory_space<vmem>>, vector<8x32xf32>
    tpu.vector_store %arg14[%c0_69, %c416], %296 {strides = array<i32>} : memref<8x512xf32, #tpu.memory_space<vmem>>, vector<8x32xf32>,
    %cst_70 = arith.constant dense<0.000000e+00> : vector<16x256xf32>
    %298 = tpu.matmul %293, %239, %cst_70 {dimension_numbers = #tpu.dot_dimension_numbers<[1], [0], [0], [1], [0, 0, 1, 1], [], []>} : vector<16x32xf32>, vector<32x256xf32>, vector<16x256xf32> -> vector<16x256xf32>
    %299 = vector.extract_strided_slice %238 {offsets = [16, 0], sizes = [8, 128], strides = [1, 1]} : vector<64x256xf32> to vector<8x128xf32>
    %300 = vector.extract_strided_slice %298 {offsets = [0, 0], sizes = [8, 128], strides = [1, 1]} : vector<16x256xf32> to vector<8x128xf32>
    %301 = arith.addf %299, %300 : vector<8x128xf32>
    %302 = vector.extract_strided_slice %238 {offsets = [40, 128], sizes = [8, 128], strides = [1, 1]} : vector<64x256xf32> to vector<8x128xf32>
    %303 = vector.extract_strided_slice %298 {offsets = [8, 128], sizes = [8, 128], strides = [1, 1]} : vector<16x256xf32> to vector<8x128xf32>
    %304 = arith.addf %302, %303 : vector<8x128xf32>
    %305 = tpu.concatenate %301, %304 in 0 : vector<8x128xf32>, vector<8x128xf32> -> vector<16x128xf32>
    %306 = vector.extract_strided_slice %305 {offsets = [0, 0], sizes = [16, 96], strides = [1, 1]} : vector<16x128xf32> to vector<16x96xf32>
    %307 = arith.negf %306 : vector<16x96xf32>
    %308 = math.exp %307 : vector<16x96xf32>
    %cst_71 = arith.constant 1.000000e+00 : f32
    %309 = vector.broadcast %cst_71 : f32 to vector<16x96xf32>
    %310 = arith.addf %309, %308 : vector<16x96xf32>
    %311 = arith.divf %309, %310 : vector<16x96xf32>
    %312 = vector.extract_strided_slice %311 {offsets = [0, 0], sizes = [16, 32], strides = [1, 1]} : vector<16x96xf32> to vector<16x32xf32>
    %313 = vector.extract_strided_slice %311 {offsets = [0, 32], sizes = [16, 32], strides = [1, 1]} : vector<16x96xf32> to vector<16x32xf32>
    %314 = vector.extract_strided_slice %311 {offsets = [0, 64], sizes = [16, 32], strides = [1, 1]} : vector<16x96xf32> to vector<16x32xf32>
    %315 = vector.extract_strided_slice %305 {offsets = [0, 96], sizes = [16, 32], strides = [1, 1]} : vector<16x128xf32> to vector<16x32xf32>
    %316 = math.tanh %315 : vector<16x32xf32>
    %317 = arith.mulf %313, %291 : vector<16x32xf32>
    %318 = arith.mulf %312, %316 : vector<16x32xf32>
    %319 = arith.addf %317, %318 : vector<16x32xf32>
    %320 = math.tanh %319 : vector<16x32xf32>
    %321 = arith.mulf %314, %320 : vector<16x32xf32>
    %322 = vector.extract_strided_slice %321 {offsets = [0, 0], sizes = [8, 32], strides = [1, 1]} : vector<16x32xf32> to vector<8x32xf32>
    %c0_72 = arith.constant 0 : index
    %c128 = arith.constant 128 : index
    %323 = vector.load %arg14[%c0_72, %c128] : memref<8x512xf32, #tpu.memory_space<vmem>>, vector<8x32xf32>
    tpu.vector_store %arg14[%c0_72, %c128], %322 {strides = array<i32>} : memref<8x512xf32, #tpu.memory_space<vmem>>, vector<8x32xf32>,
    %324 = vector.extract_strided_slice %321 {offsets = [8, 0], sizes = [8, 32], strides = [1, 1]} : vector<16x32xf32> to vector<8x32xf32>
    %c0_73 = arith.constant 0 : index
    %c352 = arith.constant 352 : index
    %325 = vector.load %arg14[%c0_73, %c352] : memref<8x512xf32, #tpu.memory_space<vmem>>, vector<8x32xf32>
    tpu.vector_store %arg14[%c0_73, %c352], %324 {strides = array<i32>} : memref<8x512xf32, #tpu.memory_space<vmem>>, vector<8x32xf32>,
    %cst_74 = arith.constant dense<0.000000e+00> : vector<16x256xf32>
    %326 = tpu.matmul %321, %239, %cst_74 {dimension_numbers = #tpu.dot_dimension_numbers<[1], [0], [0], [1], [0, 0, 1, 1], [], []>} : vector<16x32xf32>, vector<32x256xf32>, vector<16x256xf32> -> vector<16x256xf32>
    %327 = vector.extract_strided_slice %238 {offsets = [24, 0], sizes = [8, 128], strides = [1, 1]} : vector<64x256xf32> to vector<8x128xf32>
    %328 = vector.extract_strided_slice %326 {offsets = [0, 0], sizes = [8, 128], strides = [1, 1]} : vector<16x256xf32> to vector<8x128xf32>
    %329 = arith.addf %327, %328 : vector<8x128xf32>
    %330 = vector.extract_strided_slice %238 {offsets = [32, 128], sizes = [8, 128], strides = [1, 1]} : vector<64x256xf32> to vector<8x128xf32>
    %331 = vector.extract_strided_slice %326 {offsets = [8, 128], sizes = [8, 128], strides = [1, 1]} : vector<16x256xf32> to vector<8x128xf32>
    %332 = arith.addf %330, %331 : vector<8x128xf32>
    %333 = tpu.concatenate %329, %332 in 0 : vector<8x128xf32>, vector<8x128xf32> -> vector<16x128xf32>
    %334 = vector.extract_strided_slice %333 {offsets = [0, 0], sizes = [16, 96], strides = [1, 1]} : vector<16x128xf32> to vector<16x96xf32>
    %335 = arith.negf %334 : vector<16x96xf32>
    %336 = math.exp %335 : vector<16x96xf32>
    %cst_75 = arith.constant 1.000000e+00 : f32
    %337 = vector.broadcast %cst_75 : f32 to vector<16x96xf32>
    %338 = arith.addf %337, %336 : vector<16x96xf32>
    %339 = arith.divf %337, %338 : vector<16x96xf32>
    %340 = vector.extract_strided_slice %339 {offsets = [0, 0], sizes = [16, 32], strides = [1, 1]} : vector<16x96xf32> to vector<16x32xf32>
    %341 = vector.extract_strided_slice %339 {offsets = [0, 32], sizes = [16, 32], strides = [1, 1]} : vector<16x96xf32> to vector<16x32xf32>
    %342 = vector.extract_strided_slice %339 {offsets = [0, 64], sizes = [16, 32], strides = [1, 1]} : vector<16x96xf32> to vector<16x32xf32>
    %343 = vector.extract_strided_slice %333 {offsets = [0, 96], sizes = [16, 32], strides = [1, 1]} : vector<16x128xf32> to vector<16x32xf32>
    %344 = math.tanh %343 : vector<16x32xf32>
    %345 = arith.mulf %341, %319 : vector<16x32xf32>
    %346 = arith.mulf %340, %344 : vector<16x32xf32>
    %347 = arith.addf %345, %346 : vector<16x32xf32>
    %348 = math.tanh %347 : vector<16x32xf32>
    %349 = arith.mulf %342, %348 : vector<16x32xf32>
    %350 = vector.extract_strided_slice %349 {offsets = [0, 0], sizes = [8, 32], strides = [1, 1]} : vector<16x32xf32> to vector<8x32xf32>
    %c0_76 = arith.constant 0 : index
    %c192 = arith.constant 192 : index
    %351 = vector.load %arg14[%c0_76, %c192] : memref<8x512xf32, #tpu.memory_space<vmem>>, vector<8x32xf32>
    tpu.vector_store %arg14[%c0_76, %c192], %350 {strides = array<i32>} : memref<8x512xf32, #tpu.memory_space<vmem>>, vector<8x32xf32>,
    %352 = vector.extract_strided_slice %349 {offsets = [8, 0], sizes = [8, 32], strides = [1, 1]} : vector<16x32xf32> to vector<8x32xf32>
    %c0_77 = arith.constant 0 : index
    %c288 = arith.constant 288 : index
    %353 = vector.load %arg14[%c0_77, %c288] : memref<8x512xf32, #tpu.memory_space<vmem>>, vector<8x32xf32>
    tpu.vector_store %arg14[%c0_77, %c288], %352 {strides = array<i32>} : memref<8x512xf32, #tpu.memory_space<vmem>>, vector<8x32xf32>,
    %cst_78 = arith.constant dense<0.000000e+00> : vector<16x256xf32>
    %354 = tpu.matmul %349, %239, %cst_78 {dimension_numbers = #tpu.dot_dimension_numbers<[1], [0], [0], [1], [0, 0, 1, 1], [], []>} : vector<16x32xf32>, vector<32x256xf32>, vector<16x256xf32> -> vector<16x256xf32>
    %355 = vector.extract_strided_slice %238 {offsets = [32, 0], sizes = [8, 128], strides = [1, 1]} : vector<64x256xf32> to vector<8x128xf32>
    %356 = vector.extract_strided_slice %354 {offsets = [0, 0], sizes = [8, 128], strides = [1, 1]} : vector<16x256xf32> to vector<8x128xf32>
    %357 = arith.addf %355, %356 : vector<8x128xf32>
    %358 = vector.extract_strided_slice %238 {offsets = [24, 128], sizes = [8, 128], strides = [1, 1]} : vector<64x256xf32> to vector<8x128xf32>
    %359 = vector.extract_strided_slice %354 {offsets = [8, 128], sizes = [8, 128], strides = [1, 1]} : vector<16x256xf32> to vector<8x128xf32>
    %360 = arith.addf %358, %359 : vector<8x128xf32>
    %361 = tpu.concatenate %357, %360 in 0 : vector<8x128xf32>, vector<8x128xf32> -> vector<16x128xf32>
    %362 = vector.extract_strided_slice %361 {offsets = [0, 0], sizes = [16, 96], strides = [1, 1]} : vector<16x128xf32> to vector<16x96xf32>
    %363 = arith.negf %362 : vector<16x96xf32>
    %364 = math.exp %363 : vector<16x96xf32>
    %cst_79 = arith.constant 1.000000e+00 : f32
    %365 = vector.broadcast %cst_79 : f32 to vector<16x96xf32>
    %366 = arith.addf %365, %364 : vector<16x96xf32>
    %367 = arith.divf %365, %366 : vector<16x96xf32>
    %368 = vector.extract_strided_slice %367 {offsets = [0, 0], sizes = [16, 32], strides = [1, 1]} : vector<16x96xf32> to vector<16x32xf32>
    %369 = vector.extract_strided_slice %367 {offsets = [0, 32], sizes = [16, 32], strides = [1, 1]} : vector<16x96xf32> to vector<16x32xf32>
    %370 = vector.extract_strided_slice %367 {offsets = [0, 64], sizes = [16, 32], strides = [1, 1]} : vector<16x96xf32> to vector<16x32xf32>
    %371 = vector.extract_strided_slice %361 {offsets = [0, 96], sizes = [16, 32], strides = [1, 1]} : vector<16x128xf32> to vector<16x32xf32>
    %372 = math.tanh %371 : vector<16x32xf32>
    %373 = arith.mulf %369, %347 : vector<16x32xf32>
    %374 = arith.mulf %368, %372 : vector<16x32xf32>
    %375 = arith.addf %373, %374 : vector<16x32xf32>
    %376 = math.tanh %375 : vector<16x32xf32>
    %377 = arith.mulf %370, %376 : vector<16x32xf32>
    %378 = vector.extract_strided_slice %377 {offsets = [0, 0], sizes = [8, 32], strides = [1, 1]} : vector<16x32xf32> to vector<8x32xf32>
    %c0_80 = arith.constant 0 : index
    %c256 = arith.constant 256 : index
    %379 = vector.load %arg14[%c0_80, %c256] : memref<8x512xf32, #tpu.memory_space<vmem>>, vector<8x32xf32>
    tpu.vector_store %arg14[%c0_80, %c256], %378 {strides = array<i32>} : memref<8x512xf32, #tpu.memory_space<vmem>>, vector<8x32xf32>,
    %380 = vector.extract_strided_slice %377 {offsets = [8, 0], sizes = [8, 32], strides = [1, 1]} : vector<16x32xf32> to vector<8x32xf32>
    %c0_81 = arith.constant 0 : index
    %c224 = arith.constant 224 : index
    %381 = vector.load %arg14[%c0_81, %c224] : memref<8x512xf32, #tpu.memory_space<vmem>>, vector<8x32xf32>
    tpu.vector_store %arg14[%c0_81, %c224], %380 {strides = array<i32>} : memref<8x512xf32, #tpu.memory_space<vmem>>, vector<8x32xf32>,
    %cst_82 = arith.constant dense<0.000000e+00> : vector<16x256xf32>
    %382 = tpu.matmul %377, %239, %cst_82 {dimension_numbers = #tpu.dot_dimension_numbers<[1], [0], [0], [1], [0, 0, 1, 1], [], []>} : vector<16x32xf32>, vector<32x256xf32>, vector<16x256xf32> -> vector<16x256xf32>
    %383 = vector.extract_strided_slice %238 {offsets = [40, 0], sizes = [8, 128], strides = [1, 1]} : vector<64x256xf32> to vector<8x128xf32>
    %384 = vector.extract_strided_slice %382 {offsets = [0, 0], sizes = [8, 128], strides = [1, 1]} : vector<16x256xf32> to vector<8x128xf32>
    %385 = arith.addf %383, %384 : vector<8x128xf32>
    %386 = vector.extract_strided_slice %238 {offsets = [16, 128], sizes = [8, 128], strides = [1, 1]} : vector<64x256xf32> to vector<8x128xf32>
    %387 = vector.extract_strided_slice %382 {offsets = [8, 128], sizes = [8, 128], strides = [1, 1]} : vector<16x256xf32> to vector<8x128xf32>
    %388 = arith.addf %386, %387 : vector<8x128xf32>
    %389 = tpu.concatenate %385, %388 in 0 : vector<8x128xf32>, vector<8x128xf32> -> vector<16x128xf32>
    %390 = vector.extract_strided_slice %389 {offsets = [0, 0], sizes = [16, 96], strides = [1, 1]} : vector<16x128xf32> to vector<16x96xf32>
    %391 = arith.negf %390 : vector<16x96xf32>
    %392 = math.exp %391 : vector<16x96xf32>
    %cst_83 = arith.constant 1.000000e+00 : f32
    %393 = vector.broadcast %cst_83 : f32 to vector<16x96xf32>
    %394 = arith.addf %393, %392 : vector<16x96xf32>
    %395 = arith.divf %393, %394 : vector<16x96xf32>
    %396 = vector.extract_strided_slice %395 {offsets = [0, 0], sizes = [16, 32], strides = [1, 1]} : vector<16x96xf32> to vector<16x32xf32>
    %397 = vector.extract_strided_slice %395 {offsets = [0, 32], sizes = [16, 32], strides = [1, 1]} : vector<16x96xf32> to vector<16x32xf32>
    %398 = vector.extract_strided_slice %395 {offsets = [0, 64], sizes = [16, 32], strides = [1, 1]} : vector<16x96xf32> to vector<16x32xf32>
    %399 = vector.extract_strided_slice %389 {offsets = [0, 96], sizes = [16, 32], strides = [1, 1]} : vector<16x128xf32> to vector<16x32xf32>
    %400 = math.tanh %399 : vector<16x32xf32>
    %401 = arith.mulf %397, %375 : vector<16x32xf32>
    %402 = arith.mulf %396, %400 : vector<16x32xf32>
    %403 = arith.addf %401, %402 : vector<16x32xf32>
    %404 = math.tanh %403 : vector<16x32xf32>
    %405 = arith.mulf %398, %404 : vector<16x32xf32>
    %406 = vector.extract_strided_slice %405 {offsets = [0, 0], sizes = [8, 32], strides = [1, 1]} : vector<16x32xf32> to vector<8x32xf32>
    %c0_84 = arith.constant 0 : index
    %c320 = arith.constant 320 : index
    %407 = vector.load %arg14[%c0_84, %c320] : memref<8x512xf32, #tpu.memory_space<vmem>>, vector<8x32xf32>
    tpu.vector_store %arg14[%c0_84, %c320], %406 {strides = array<i32>} : memref<8x512xf32, #tpu.memory_space<vmem>>, vector<8x32xf32>,
    %408 = vector.extract_strided_slice %405 {offsets = [8, 0], sizes = [8, 32], strides = [1, 1]} : vector<16x32xf32> to vector<8x32xf32>
    %c0_85 = arith.constant 0 : index
    %c160 = arith.constant 160 : index
    %409 = vector.load %arg14[%c0_85, %c160] : memref<8x512xf32, #tpu.memory_space<vmem>>, vector<8x32xf32>
    tpu.vector_store %arg14[%c0_85, %c160], %408 {strides = array<i32>} : memref<8x512xf32, #tpu.memory_space<vmem>>, vector<8x32xf32>,
    %cst_86 = arith.constant dense<0.000000e+00> : vector<16x256xf32>
    %410 = tpu.matmul %405, %239, %cst_86 {dimension_numbers = #tpu.dot_dimension_numbers<[1], [0], [0], [1], [0, 0, 1, 1], [], []>} : vector<16x32xf32>, vector<32x256xf32>, vector<16x256xf32> -> vector<16x256xf32>
    %411 = vector.extract_strided_slice %238 {offsets = [48, 0], sizes = [8, 128], strides = [1, 1]} : vector<64x256xf32> to vector<8x128xf32>
    %412 = vector.extract_strided_slice %410 {offsets = [0, 0], sizes = [8, 128], strides = [1, 1]} : vector<16x256xf32> to vector<8x128xf32>
    %413 = arith.addf %411, %412 : vector<8x128xf32>
    %414 = vector.extract_strided_slice %238 {offsets = [8, 128], sizes = [8, 128], strides = [1, 1]} : vector<64x256xf32> to vector<8x128xf32>
    %415 = vector.extract_strided_slice %410 {offsets = [8, 128], sizes = [8, 128], strides = [1, 1]} : vector<16x256xf32> to vector<8x128xf32>
    %416 = arith.addf %414, %415 : vector<8x128xf32>
    %417 = tpu.concatenate %413, %416 in 0 : vector<8x128xf32>, vector<8x128xf32> -> vector<16x128xf32>
    %418 = vector.extract_strided_slice %417 {offsets = [0, 0], sizes = [16, 96], strides = [1, 1]} : vector<16x128xf32> to vector<16x96xf32>
    %419 = arith.negf %418 : vector<16x96xf32>
    %420 = math.exp %419 : vector<16x96xf32>
    %cst_87 = arith.constant 1.000000e+00 : f32
    %421 = vector.broadcast %cst_87 : f32 to vector<16x96xf32>
    %422 = arith.addf %421, %420 : vector<16x96xf32>
    %423 = arith.divf %421, %422 : vector<16x96xf32>
    %424 = vector.extract_strided_slice %423 {offsets = [0, 0], sizes = [16, 32], strides = [1, 1]} : vector<16x96xf32> to vector<16x32xf32>
    %425 = vector.extract_strided_slice %423 {offsets = [0, 32], sizes = [16, 32], strides = [1, 1]} : vector<16x96xf32> to vector<16x32xf32>
    %426 = vector.extract_strided_slice %423 {offsets = [0, 64], sizes = [16, 32], strides = [1, 1]} : vector<16x96xf32> to vector<16x32xf32>
    %427 = vector.extract_strided_slice %417 {offsets = [0, 96], sizes = [16, 32], strides = [1, 1]} : vector<16x128xf32> to vector<16x32xf32>
    %428 = math.tanh %427 : vector<16x32xf32>
    %429 = arith.mulf %425, %403 : vector<16x32xf32>
    %430 = arith.mulf %424, %428 : vector<16x32xf32>
    %431 = arith.addf %429, %430 : vector<16x32xf32>
    %432 = math.tanh %431 : vector<16x32xf32>
    %433 = arith.mulf %426, %432 : vector<16x32xf32>
    %434 = vector.extract_strided_slice %433 {offsets = [0, 0], sizes = [8, 32], strides = [1, 1]} : vector<16x32xf32> to vector<8x32xf32>
    %c0_88 = arith.constant 0 : index
    %c384 = arith.constant 384 : index
    %435 = vector.load %arg14[%c0_88, %c384] : memref<8x512xf32, #tpu.memory_space<vmem>>, vector<8x32xf32>
    tpu.vector_store %arg14[%c0_88, %c384], %434 {strides = array<i32>} : memref<8x512xf32, #tpu.memory_space<vmem>>, vector<8x32xf32>,
    %436 = vector.extract_strided_slice %433 {offsets = [8, 0], sizes = [8, 32], strides = [1, 1]} : vector<16x32xf32> to vector<8x32xf32>
    %c0_89 = arith.constant 0 : index
    %c96 = arith.constant 96 : index
    %437 = vector.load %arg14[%c0_89, %c96] : memref<8x512xf32, #tpu.memory_space<vmem>>, vector<8x32xf32>
    tpu.vector_store %arg14[%c0_89, %c96], %436 {strides = array<i32>} : memref<8x512xf32, #tpu.memory_space<vmem>>, vector<8x32xf32>,
    %cst_90 = arith.constant dense<0.000000e+00> : vector<16x256xf32>
    %438 = tpu.matmul %433, %239, %cst_90 {dimension_numbers = #tpu.dot_dimension_numbers<[1], [0], [0], [1], [0, 0, 1, 1], [], []>} : vector<16x32xf32>, vector<32x256xf32>, vector<16x256xf32> -> vector<16x256xf32>
    %439 = vector.extract_strided_slice %238 {offsets = [56, 0], sizes = [8, 128], strides = [1, 1]} : vector<64x256xf32> to vector<8x128xf32>
    %440 = vector.extract_strided_slice %438 {offsets = [0, 0], sizes = [8, 128], strides = [1, 1]} : vector<16x256xf32> to vector<8x128xf32>
    %441 = arith.addf %439, %440 : vector<8x128xf32>
    %442 = vector.extract_strided_slice %238 {offsets = [0, 128], sizes = [8, 128], strides = [1, 1]} : vector<64x256xf32> to vector<8x128xf32>
    %443 = vector.extract_strided_slice %438 {offsets = [8, 128], sizes = [8, 128], strides = [1, 1]} : vector<16x256xf32> to vector<8x128xf32>
    %444 = arith.addf %442, %443 : vector<8x128xf32>
    %445 = tpu.concatenate %441, %444 in 0 : vector<8x128xf32>, vector<8x128xf32> -> vector<16x128xf32>
    %446 = vector.extract_strided_slice %445 {offsets = [0, 0], sizes = [16, 96], strides = [1, 1]} : vector<16x128xf32> to vector<16x96xf32>
    %447 = arith.negf %446 : vector<16x96xf32>
    %448 = math.exp %447 : vector<16x96xf32>
    %cst_91 = arith.constant 1.000000e+00 : f32
    %449 = vector.broadcast %cst_91 : f32 to vector<16x96xf32>
    %450 = arith.addf %449, %448 : vector<16x96xf32>
    %451 = arith.divf %449, %450 : vector<16x96xf32>
    %452 = vector.extract_strided_slice %451 {offsets = [0, 0], sizes = [16, 32], strides = [1, 1]} : vector<16x96xf32> to vector<16x32xf32>
    %453 = vector.extract_strided_slice %451 {offsets = [0, 32], sizes = [16, 32], strides = [1, 1]} : vector<16x96xf32> to vector<16x32xf32>
    %454 = vector.extract_strided_slice %451 {offsets = [0, 64], sizes = [16, 32], strides = [1, 1]} : vector<16x96xf32> to vector<16x32xf32>
    %455 = vector.extract_strided_slice %445 {offsets = [0, 96], sizes = [16, 32], strides = [1, 1]} : vector<16x128xf32> to vector<16x32xf32>
    %456 = math.tanh %455 : vector<16x32xf32>
    %457 = arith.mulf %453, %431 : vector<16x32xf32>
    %458 = arith.mulf %452, %456 : vector<16x32xf32>
    %459 = arith.addf %457, %458 : vector<16x32xf32>
    %460 = math.tanh %459 : vector<16x32xf32>
    %461 = arith.mulf %454, %460 : vector<16x32xf32>
    %462 = vector.extract_strided_slice %461 {offsets = [0, 0], sizes = [8, 32], strides = [1, 1]} : vector<16x32xf32> to vector<8x32xf32>
    %c0_92 = arith.constant 0 : index
    %c448 = arith.constant 448 : index
    %463 = vector.load %arg14[%c0_92, %c448] : memref<8x512xf32, #tpu.memory_space<vmem>>, vector<8x32xf32>
    tpu.vector_store %arg14[%c0_92, %c448], %462 {strides = array<i32>} : memref<8x512xf32, #tpu.memory_space<vmem>>, vector<8x32xf32>,
    %464 = vector.extract_strided_slice %461 {offsets = [8, 0], sizes = [8, 32], strides = [1, 1]} : vector<16x32xf32> to vector<8x32xf32>
    %c0_93 = arith.constant 0 : index
    %c32_94 = arith.constant 32 : index
    %465 = vector.load %arg14[%c0_93, %c32_94] : memref<8x512xf32, #tpu.memory_space<vmem>>, vector<8x32xf32>
    tpu.vector_store %arg14[%c0_93, %c32_94], %464 {strides = array<i32>} : memref<8x512xf32, #tpu.memory_space<vmem>>, vector<8x32xf32>,
    tpu.wait_dma2 semaphore(%arg15 : memref<!tpu.dma_semaphore, #tpu.memory_space<semaphore_mem>>) src(%arg7 : memref<512x512xbf16, #tpu.memory_space<any>>) dst(%arg12 : memref<512x512xbf16, #tpu.memory_space<vmem>>)
    %c0_95 = arith.constant 0 : index
    %c0_96 = arith.constant 0 : index
    %466 = vector.load %arg14[%c0_95, %c0_96] : memref<8x512xf32, #tpu.memory_space<vmem>>, vector<8x512xf32>
    %467 = arith.truncf %466 : vector<8x512xf32> to vector<8x512xbf16>
    %c0_97 = arith.constant 0 : index
    %c0_98 = arith.constant 0 : index
    %468 = vector.load %arg12[%c0_97, %c0_98] : memref<512x512xbf16, #tpu.memory_space<vmem>>, vector<512x512xbf16>
    %cst_99 = arith.constant dense<0.000000e+00> : vector<8x512xf32>
    %469 = tpu.matmul %467, %468, %cst_99 {dimension_numbers = #tpu.dot_dimension_numbers<[1], [0], [0], [1], [0, 0, 1, 1], [], []>} : vector<8x512xbf16>, vector<512x512xbf16>, vector<8x512xf32> -> vector<8x512xf32>
    %c0_100 = arith.constant 0 : index
    %c0_101 = arith.constant 0 : index
    %470 = vector.load %arg8[%c0_100, %c0_101] : memref<1x512xf32, #tpu.memory_space<vmem>>, vector<1x512xf32>
    %471 = vector.broadcast %470 : vector<1x512xf32> to vector<8x512xf32>
    %472 = arith.addf %469, %471 : vector<8x512xf32>
    %cst_102 = arith.constant 0.000000e+00 : f32
    %473 = vector.broadcast %cst_102 : f32 to vector<8x512xf32>
    %474 = arith.maximumf %472, %473 : vector<8x512xf32>
    %c0_103 = arith.constant 0 : index
    %c0_104 = arith.constant 0 : index
    %475 = vector.load %arg9[%c0_103, %c0_104] : memref<1x512xf32, #tpu.memory_space<vmem>>, vector<1x512xf32>
    %476 = vector.broadcast %475 : vector<1x512xf32> to vector<8x512xf32>
    %477 = arith.mulf %474, %476 : vector<8x512xf32>
    %cst_105 = arith.constant dense<0.000000e+00> : vector<8xf32>
    %478 = vector.multi_reduction <add>, %477, %cst_105 [1] : vector<8x512xf32> to vector<8xf32>
    %479 = vector.shape_cast %478 : vector<8xf32> to vector<8x1xf32>
    %c0_106 = arith.constant 0 : index
    %c0_107 = arith.constant 0 : index
    %480 = vector.load %arg10[%c0_106, %c0_107] : memref<1x1xf32, #tpu.memory_space<vmem>>, vector<1x1xf32>
    %481 = vector.broadcast %480 : vector<1x1xf32> to vector<8x1xf32>
    %482 = arith.addf %479, %481 : vector<8x1xf32>
    %c0_108 = arith.constant 0 : index
    %c0_109 = arith.constant 0 : index
    %483 = vector.load %arg11[%c0_108, %c0_109] : memref<8x1xf32, #tpu.memory_space<vmem>>, vector<8x1xf32>
    tpu.vector_store %arg11[%c0_108, %c0_109], %482 {strides = array<i32>} : memref<8x1xf32, #tpu.memory_space<vmem>>, vector<8x1xf32>,
    return
  }
}

</mosaic_0001>

<llo_original>
// kernel: tpu_custom_call.1
$region0: #{tpu_custom_call.1}
  #allocation0 [shape = 'u32[]', space=smem, size = 0x4, offset = 0x4, fixed_abs, tag = 'smem constant byte address 0x4 - core index']
  #allocation1 [shape = 'u32[144,128]{1,0:T(1,128)}', space=vmem, size = 0x12000, scoped, tag = 'internal scratch']
  #allocation2 [shape = 'bf16[512,512]{1,0:T(16,128)(2,1)}', space=vmem, size = 0x80000, scoped, tag = 'scratch operand']
  #allocation3 [shape = 'f32[64,64]{1,0:T(8,128)}', space=vmem, size = 0x8000, scoped, tag = 'scratch operand']
  #allocation4 [shape = 'f32[8,512]{1,0:T(8,128)}', space=vmem, size = 0x4000, scoped, tag = 'scratch operand']
  #allocation5 [shape = 's32[1]{0}', space=sflag, size = 0x4, scoped, tag = 'scratch operand']
  #allocation6 [shape = 'f32[1,1]{1,0:T(1,128)S(1)}', space=vmem, size = 0x200, scoped, tag = 'scoped memory for tpu_custom_call.1']
  #allocation12 [shape = 's32[]', space=sflag, size = 0x4, offset = 0, fixed_abs, tag = 'sflag constant byte address 0x0 - dummy sync flag']
  %s0 = inlined_call_operand.vmem [shape: f32[64,32], index: 0, kind: input, shape index: {}]
  %s1 = inlined_call_operand.vmem [shape: f32[32,256], index: 1, kind: input, shape index: {}]
  %s2 = inlined_call_operand.hbm [shape: f32[32,256], index: 2, kind: input, shape index: {}]
  %s3 = inlined_call_operand.vmem [shape: f32[1,256], index: 3, kind: input, shape index: {}]
  %s4 = inlined_call_operand.hbm [shape: f32[64,256], index: 4, kind: input, shape index: {}]
  %s5 = inlined_call_operand.hbm [shape: f32[32,256], index: 5, kind: input, shape index: {}]
  %s6 = inlined_call_operand.vmem [shape: f32[1,256], index: 6, kind: input, shape index: {}]
  %s7 = inlined_call_operand.hbm [shape: bf16[512,512], index: 7, kind: input, shape index: {}]
  %s8 = inlined_call_operand.vmem [shape: f32[1,512], index: 8, kind: input, shape index: {}]
  %s9 = inlined_call_operand.vmem [shape: f32[1,512], index: 9, kind: input, shape index: {}]
  %s10 = inlined_call_operand.<no memory space> [shape: f32[1,1], index: 10, kind: input, shape index: {}]
  %s11 = inlined_call_operand.vmem [shape: f32[8,1], index: 11, kind: output, shape index: {}]
  %s12 = sld [smem:[#allocation0]]
  $region62: #{tpu_custom_call.1} parent=0
    _
  %s14 = ssub.s32 1, %s12
  %s15 = scalar_select 0, %s14, %s12
  %v16 = vstv %s10
  %17 = vst [vmem:[#allocation6] sm:$0x1] %v16
  $region1: #{tpu_custom_call.1} parent=0
    #allocation7 [shape = 'u8[32768]{0}', space=vmem, size = 0x8000, scoped, tag = 'input window, operand 2, single buffered']
    #allocation8 [shape = 's32[1]{0}', space=sflag, size = 0x4, scoped, tag = 'scoped memory for tpu_custom_call.1']
    #allocation9 [shape = 'u8[65536]{0}', space=vmem, size = 0x10000, scoped, tag = 'input window, operand 4, single buffered']
    #allocation10 [shape = 's32[1]{0}', space=sflag, size = 0x4, scoped, tag = 'scoped memory for tpu_custom_call.1']
    #allocation11 [shape = 'u8[32768]{0}', space=vmem, size = 0x8000, scoped, tag = 'input window, operand 5, single buffered']
    #allocation13 [shape = 'u32[9]{0}', space=smem, size = 0x24, scoped, tag = 'DMA stride descriptor']
    %18 = vsyncpa [#allocation8], 0
    %19 = vsyncpa [#allocation10], 0
    // Predicated region
    $region2: #{tpu_custom_call.1} parent=1 // pred_check
      _
    $region3: #{tpu_custom_call.1} parent=1 // pred_check_branch
      %21 = sbr.rel (0) target = $region5
    $region4: #{tpu_custom_call.1} parent=1 // pred_region
      _
    $region5: #{tpu_custom_call.1} parent=1 // pred_fallthru
      _
    // Predicated region
    $region6: #{tpu_custom_call.1} parent=1 // pred_check
      _
    $region7: #{tpu_custom_call.1} parent=1 // pred_check_branch
      %23 = sbr.rel (0) target = $region9
    $region8: #{tpu_custom_call.1} parent=1 // pred_region
      _
    $region9: #{tpu_custom_call.1} parent=1 // pred_fallthru
      _
    // Predicated region
    $region10: #{tpu_custom_call.1} parent=1 // pred_check
      _
    $region11: #{tpu_custom_call.1} parent=1 // pred_check_branch
      %25 = sbr.rel (0) target = $region13
    $region12: #{tpu_custom_call.1} parent=1 // pred_region
      %s27 = ssub.s32 1024, 1024
      %28 = vsyncadd [#allocation8], %s27
      %s29 = sshll.u32 [#allocation7], 4
      %s30 = int_to_ptr.vmem [resolvable:$true] %s29
      %35 = dma.hbm_to_vmem [thread:$0]  %s2, 1024, %s30, [#allocation8], 256, 256, 16
    $region13: #{tpu_custom_call.1} parent=1 // pred_fallthru
      _
    // Predicated region
    $region14: #{tpu_custom_call.1} parent=1 // pred_check
      _
    $region15: #{tpu_custom_call.1} parent=1 // pred_check_branch
      %37 = sbr.rel (0) target = $region17
    $region16: #{tpu_custom_call.1} parent=1 // pred_region
      _
    $region17: #{tpu_custom_call.1} parent=1 // pred_fallthru
      _
    // Predicated region
    $region18: #{tpu_custom_call.1} parent=1 // pred_check
      _
    $region19: #{tpu_custom_call.1} parent=1 // pred_check_branch
      %39 = sbr.rel (0) target = $region21
    $region20: #{tpu_custom_call.1} parent=1 // pred_region
      %s41 = ssub.s32 2048, 2048
      %42 = vsyncadd [#allocation10], %s41
      %s43 = sshll.u32 [#allocation9], 4
      %s44 = int_to_ptr.vmem [resolvable:$true] %s43
      %49 = dma.hbm_to_vmem [thread:$0]  %s4, 2048, %s44, [#allocation10], 256, 256, 16
    $region21: #{tpu_custom_call.1} parent=1 // pred_fallthru
      _
    // Predicated region
    $region22: #{tpu_custom_call.1} parent=1 // pred_check
      _
    $region23: #{tpu_custom_call.1} parent=1 // pred_check_branch
      %51 = sbr.rel (0) target = $region25
    $region24: #{tpu_custom_call.1} parent=1 // pred_region
      %s53 = ssub.s32 1024, 1024
      %54 = vsyncadd [#allocation10], %s53
      %s55 = sshll.u32 [#allocation11], 4
      %s56 = int_to_ptr.vmem [resolvable:$true] %s55
      %61 = dma.hbm_to_vmem [thread:$0]  %s5, 1024, %s56, [#allocation10], 256, 256, 16
    $region25: #{tpu_custom_call.1} parent=1 // pred_fallthru
      _
    // Predicated region
    $region26: #{tpu_custom_call.1} parent=1 // pred_check
      _
    $region27: #{tpu_custom_call.1} parent=1 // pred_check_branch
      %63 = sbr.rel (0) target = $region29
    $region28: #{tpu_custom_call.1} parent=1 // pred_region
      _
    $region29: #{tpu_custom_call.1} parent=1 // pred_fallthru
      _
    // Predicated region
    $region30: #{tpu_custom_call.1} parent=1 // pred_check
      _
    $region31: #{tpu_custom_call.1} parent=1 // pred_check_branch
      %65 = sbr.rel (0) target = $region33
    $region32: #{tpu_custom_call.1} parent=1 // pred_region
      _
    $region33: #{tpu_custom_call.1} parent=1 // pred_fallthru
      _
    // Predicated region
    $region34: #{tpu_custom_call.1} parent=1 // pred_check
      _
    $region35: #{tpu_custom_call.1} parent=1 // pred_check_branch
      %67 = sbr.rel (0) target = $region37
    $region36: #{tpu_custom_call.1} parent=1 // pred_region
      _
    $region37: #{tpu_custom_call.1} parent=1 // pred_fallthru
      _
    // Predicated region
    $region38: #{tpu_custom_call.1} parent=1 // pred_check
      _
    $region39: #{tpu_custom_call.1} parent=1 // pred_check_branch
      %69 = sbr.rel (0) target = $region41
    $region40: #{tpu_custom_call.1} parent=1 // pred_region
      _
    $region41: #{tpu_custom_call.1} parent=1 // pred_fallthru
      _
    // Predicated region
    $region42: #{tpu_custom_call.1} parent=1 // pred_check
      _
    $region43: #{tpu_custom_call.1} parent=1 // pred_check_branch
      %71 = sbr.rel (0) target = $region45
    $region44: #{tpu_custom_call.1} parent=1 // pred_region
      %72 = dma.done [#allocation8], 1024
    $region45: #{tpu_custom_call.1} parent=1 // pred_fallthru
      _
    // Predicated region
    $region46: #{tpu_custom_call.1} parent=1 // pred_check
      _
    $region47: #{tpu_custom_call.1} parent=1 // pred_check_branch
      %74 = sbr.rel (0) target = $region49
    $region48: #{tpu_custom_call.1} parent=1 // pred_region
      %75 = dma.done [#allocation10], 2048
    $region49: #{tpu_custom_call.1} parent=1 // pred_fallthru
      _
    // Predicated region
    $region50: #{tpu_custom_call.1} parent=1 // pred_check
      _
    $region51: #{tpu_custom_call.1} parent=1 // pred_check_branch
      %77 = sbr.rel (0) target = $region53
    $region52: #{tpu_custom_call.1} parent=1 // pred_region
      %78 = dma.done [#allocation10], 1024
    $region53: #{tpu_custom_call.1} parent=1 // pred_fallthru
      _
    %s80 = sshll.u32 1, 14
    %s81 = sxor.u32 4294967295, %s80
    %s83 = sld [smem:[#allocation0]]
    %s84 = sadd.s32 2, %s83
    %s86 = sshll.u32 7, 26
    %s87 = sxor.u32 4294967295, %s86
    %s88 = sand.u32 0, %s87
    %s89 = sshll.u32 %s84, 26
    %s90 = sor.u32 %s88, %s89
    %s91 = sshll.u32 [#allocation2], 4
    %s92 = int_to_ptr.vmem [resolvable:$true] %s91
    %95 = sst [smem:[#allocation13]] 512
    %s96 = scalar_lea.smem [#allocation13], 1
    %97 = sst [smem:[%s96]] 512
    %s98 = scalar_lea.smem [#allocation13], 2
    %99 = sst [smem:[%s98]] 4
    %s100 = scalar_lea.smem [#allocation13], 3
    %101 = sst [smem:[%s100]] 64
    %s102 = scalar_lea.smem [#allocation13], 4
    %103 = sst [smem:[%s102]] 128
    %s104 = scalar_lea.smem [#allocation13], 5
    %105 = sst [smem:[%s104]] 2
    %s106 = scalar_lea.smem [#allocation13], 6
    %107 = sst [smem:[%s106]] 256
    %s108 = scalar_lea.smem [#allocation13], 7
    %109 = sst [smem:[%s108]] 64
    %s110 = scalar_lea.smem [#allocation13], 8
    %111 = sst [smem:[%s110]] 4
    %113 = dma.general %s7, 16384, %s92, [#allocation5], [#allocation12], [#allocation13], %s90, 0
    %v114 = vld [vmem:[%s0] sm:$0xff]
    %v115 = vld [vmem:[%s0 + $0x8] sm:$0xff]
    %v116 = vld [vmem:[%s0 + $0x10] sm:$0xff]
    %v117 = vld [vmem:[%s0 + $0x18] sm:$0xff]
    %v118 = vld [vmem:[%s0 + $0x20] sm:$0xff]
    %v119 = vld [vmem:[%s0 + $0x28] sm:$0xff]
    %v120 = vld [vmem:[%s0 + $0x30] sm:$0xff]
    %v121 = vld [vmem:[%s0 + $0x38] sm:$0xff]
    %v122 = vld [vmem:[%s1] sm:$0xff]
    %v123 = vld [vmem:[%s1 + $0x8] sm:$0xff]
    %v124 = vld [vmem:[%s1 + $0x10] sm:$0xff]
    %v125 = vld [vmem:[%s1 + $0x18] sm:$0xff]
    %v126 = vld [vmem:[%s1 + $0x20] sm:$0xff]
    %v127 = vld [vmem:[%s1 + $0x28] sm:$0xff]
    %v128 = vld [vmem:[%s1 + $0x30] sm:$0xff]
    %v129 = vld [vmem:[%s1 + $0x38] sm:$0xff]
    %v130 = vld [vmem:[%s3] sm:$0x3]
    %v132 = vlaneseq
    %v133 = vshrl.u32 %v132, 7
    %v134 = vsub.s32 0, %v133
    %v135 = vrot.slane %v130, %v134
    %v136 = vlaneseq
    %v137 = vshrl.u32 %v136, 7
    %v138 = vsub.s32 1, %v137
    %v139 = vrot.slane %v130, %v138
    %vm142 = vcmask 261120
    %v144 = vsel %vm142, %v114, 0
    %v147 = vsel %vm142, %v115, 0
    %v150 = vsel %vm142, %v116, 0
    %v153 = vsel %vm142, %v117, 0
    %v156 = vsel %vm142, %v118, 0
    %v159 = vsel %vm142, %v119, 0
    %v162 = vsel %vm142, %v120, 0
    %v165 = vsel %vm142, %v121, 0
    %167 = vmatprep.subr.mxu0 %v123
    %168 = vmatpush1.msra.mxu0 %v122
    %169 = vmatprep.subr.mxu0 %v125
    %170 = vmatpush1.msra.mxu0 %v124
    %171 = vmatprep.subr.mxu0 %v127
    %172 = vmatpush1.msra.mxu0 %v126
    %173 = vmatprep.subr.mxu0 %v129
    %174 = vmatpush1.msra.mxu0 %v128
    %175 = vmatprep.subr.mxu0 0.0
    %176 = vmatpush1.msra.mxu0 0.0
    %177 = vmatprep.subr.mxu0 0.0
    %178 = vmatpush1.msra.mxu0 0.0
    %179 = vmatprep.subr.mxu0 0.0
    %180 = vmatpush1.msra.mxu0 0.0
    %181 = vmatprep.subr.mxu0 0.0
    %182 = vmatpush1.msra.mxu0 0.0
    %183 = vmatprep.subr.mxu0 0.0
    %184 = vmatpush1.msra.mxu0 0.0
    %185 = vmatprep.subr.mxu0 0.0
    %186 = vmatpush1.msra.mxu0 0.0
    %187 = vmatprep.subr.mxu0 0.0
    %188 = vmatpush1.msra.mxu0 0.0
    %189 = vmatprep.subr.mxu0 0.0
    %190 = vmatpush1.msra.mxu0 0.0
    %191 = vmatprep.subr.mxu0 0.0
    %192 = vmatpush1.msra.mxu0 0.0
    %193 = vmatprep.subr.mxu0 0.0
    %194 = vmatpush1.msra.mxu0 0.0
    %195 = vmatprep.subr.mxu0 0.0
    %196 = vmatpush1.msra.mxu0 0.0
    %197 = vmatprep.subr.mxu0 0.0
    %198 = vmatpush1.msra.mxu0 0.0
    %199 = vmatprep.subr.mxu0 0.0
    %200 = vmatpush1.msra.mxu0 0.0
    %201 = vmatprep.subr.mxu0 0.0
    %202 = vmatpush1.msra.mxu0 0.0
    %203 = vmatprep.subr.mxu0 0.0
    %204 = vmatpush1.msra.mxu0 0.0
    %205 = vmatprep.subr.mxu0 0.0
    %206 = vmatpush1.msra.mxu0 0.0
    %207 = vmatprep.subr.mxu0 0.0
    %208 = vmatpush1.msra.mxu0 0.0
    %209 = vmatprep.subr.mxu0 0.0
    %210 = vmatpush1.msra.mxu0 0.0
    %211 = vmatprep.subr.mxu0 0.0
    %212 = vmatpush1.msra.mxu0 0.0
    %213 = vmatprep.subr.mxu0 0.0
    %214 = vmatpush1.msra.mxu0 0.0
    %215 = vmatprep.subr.mxu0 0.0
    %216 = vmatpush1.msra.mxu0 0.0
    %217 = vmatprep.subr.mxu0 0.0
    %218 = vmatpush1.msra.mxu0 0.0
    %219 = vmatprep.subr.mxu0 0.0
    %220 = vmatpush1.msra.mxu0 0.0
    %221 = vmatprep.subr.mxu0 0.0
    %222 = vmatpush1.msra.mxu0 0.0
    %223 = vmatprep.subr.mxu0 0.0
    %224 = vmatpush1.msra.mxu0 0.0
    %225 = vmatprep.subr.mxu0 0.0
    %226 = vmatpush1.msra.mxu0 0.0
    %227 = vmatprep.subr.mxu0 0.0
    %228 = vmatpush1.msra.mxu0 0.0
    %229 = vmatprep.subr.mxu0 0.0
    %230 = vmatpush1.msra.mxu0 0.0
    %231 = vmatprep.mubr.f32.mxu0 0.0
    %232 = vmatmul.mubr.f32.gmra.mrb[0].mxu0 %v144
    %v233 = vpop.f32.mrb[0].mxu0
    %v234 = vadd.f32 %v135, %v233
    %v235 = vpop.f32.mrb[0].mxu0
    %v236 = vadd.f32 %v139, %v235
    %237 = vmatprep.mubr.f32.mxu0 0.0
    %238 = vmatmul.mubr.f32.gmra.mrb[0].mxu0 %v147
    %v239 = vpop.f32.mrb[0].mxu0
    %v240 = vadd.f32 %v135, %v239
    %v241 = vpop.f32.mrb[0].mxu0
    %v242 = vadd.f32 %v139, %v241
    %243 = vmatprep.mubr.f32.mxu0 0.0
    %244 = vmatmul.mubr.f32.gmra.mrb[0].mxu0 %v150
    %v245 = vpop.f32.mrb[0].mxu0
    %v246 = vadd.f32 %v135, %v245
    %v247 = vpop.f32.mrb[0].mxu0
    %v248 = vadd.f32 %v139, %v247
    %249 = vmatprep.mubr.f32.mxu0 0.0
    %250 = vmatmul.mubr.f32.gmra.mrb[0].mxu0 %v153
    %v251 = vpop.f32.mrb[0].mxu0
    %v252 = vadd.f32 %v135, %v251
    %v253 = vpop.f32.mrb[0].mxu0
    %v254 = vadd.f32 %v139, %v253
    %255 = vmatprep.mubr.f32.mxu0 0.0
    %256 = vmatmul.mubr.f32.gmra.mrb[0].mxu0 %v156
    %v257 = vpop.f32.mrb[0].mxu0
    %v258 = vadd.f32 %v135, %v257
    %v259 = vpop.f32.mrb[0].mxu0
    %v260 = vadd.f32 %v139, %v259
    %261 = vmatprep.mubr.f32.mxu0 0.0
    %262 = vmatmul.mubr.f32.gmra.mrb[0].mxu0 %v159
    %v263 = vpop.f32.mrb[0].mxu0
    %v264 = vadd.f32 %v135, %v263
    %v265 = vpop.f32.mrb[0].mxu0
    %v266 = vadd.f32 %v139, %v265
    %267 = vmatprep.mubr.f32.mxu0 0.0
    %268 = vmatmul.mubr.f32.gmra.mrb[0].mxu0 %v162
    %v269 = vpop.f32.mrb[0].mxu0
    %v270 = vadd.f32 %v135, %v269
    %v271 = vpop.f32.mrb[0].mxu0
    %v272 = vadd.f32 %v139, %v271
    %273 = vmatprep.mubr.f32.mxu0 0.0
    %274 = vmatmul.mubr.f32.gmra.mrb[0].mxu0 %v165
    %v275 = vpop.f32.mrb[0].mxu0
    %v276 = vadd.f32 %v135, %v275
    %v277 = vpop.f32.mrb[0].mxu0
    %v278 = vadd.f32 %v139, %v277
    %279 = vdwg.mxu0
    %v280 = vld [vmem:[#allocation7] sm:$0xff]
    %v281 = vld [vmem:[#allocation7 + $0x8] sm:$0xff]
    %v282 = vld [vmem:[#allocation7 + $0x10] sm:$0xff]
    %v283 = vld [vmem:[#allocation7 + $0x18] sm:$0xff]
    %v284 = vld [vmem:[#allocation7 + $0x20] sm:$0xff]
    %v285 = vld [vmem:[#allocation7 + $0x28] sm:$0xff]
    %v286 = vld [vmem:[#allocation7 + $0x30] sm:$0xff]
    %v287 = vld [vmem:[#allocation7 + $0x38] sm:$0xff]
    %v289 = vsel %vm142, 0.0, 0
    %291 = vmatprep.subr.mxu0 %v281
    %292 = vmatpush1.msra.mxu0 %v280
    %293 = vmatprep.subr.mxu0 %v283
    %294 = vmatpush1.msra.mxu0 %v282
    %295 = vmatprep.subr.mxu0 %v285
    %296 = vmatpush1.msra.mxu0 %v284
    %297 = vmatprep.subr.mxu0 %v287
    %298 = vmatpush1.msra.mxu0 %v286
    %299 = vmatprep.subr.mxu0 0.0
    %300 = vmatpush1.msra.mxu0 0.0
    %301 = vmatprep.subr.mxu0 0.0
    %302 = vmatpush1.msra.mxu0 0.0
    %303 = vmatprep.subr.mxu0 0.0
    %304 = vmatpush1.msra.mxu0 0.0
    %305 = vmatprep.subr.mxu0 0.0
    %306 = vmatpush1.msra.mxu0 0.0
    %307 = vmatprep.subr.mxu0 0.0
    %308 = vmatpush1.msra.mxu0 0.0
    %309 = vmatprep.subr.mxu0 0.0
    %310 = vmatpush1.msra.mxu0 0.0
    %311 = vmatprep.subr.mxu0 0.0
    %312 = vmatpush1.msra.mxu0 0.0
    %313 = vmatprep.subr.mxu0 0.0
    %314 = vmatpush1.msra.mxu0 0.0
    %315 = vmatprep.subr.mxu0 0.0
    %316 = vmatpush1.msra.mxu0 0.0
    %317 = vmatprep.subr.mxu0 0.0
    %318 = vmatpush1.msra.mxu0 0.0
    %319 = vmatprep.subr.mxu0 0.0
    %320 = vmatpush1.msra.mxu0 0.0
    %321 = vmatprep.subr.mxu0 0.0
    %322 = vmatpush1.msra.mxu0 0.0
    %323 = vmatprep.subr.mxu0 0.0
    %324 = vmatpush1.msra.mxu0 0.0
    %325 = vmatprep.subr.mxu0 0.0
    %326 = vmatpush1.msra.mxu0 0.0
    %327 = vmatprep.subr.mxu0 0.0
    %328 = vmatpush1.msra.mxu0 0.0
    %329 = vmatprep.subr.mxu0 0.0
    %330 = vmatpush1.msra.mxu0 0.0
    %331 = vmatprep.subr.mxu0 0.0
    %332 = vmatpush1.msra.mxu0 0.0
    %333 = vmatprep.subr.mxu0 0.0
    %334 = vmatpush1.msra.mxu0 0.0
    %335 = vmatprep.subr.mxu0 0.0
    %336 = vmatpush1.msra.mxu0 0.0
    %337 = vmatprep.subr.mxu0 0.0
    %338 = vmatpush1.msra.mxu0 0.0
    %339 = vmatprep.subr.mxu0 0.0
    %340 = vmatpush1.msra.mxu0 0.0
    %341 = vmatprep.subr.mxu0 0.0
    %342 = vmatpush1.msra.mxu0 0.0
    %343 = vmatprep.subr.mxu0 0.0
    %344 = vmatpush1.msra.mxu0 0.0
    %345 = vmatprep.subr.mxu0 0.0
    %346 = vmatpush1.msra.mxu0 0.0
    %347 = vmatprep.subr.mxu0 0.0
    %348 = vmatpush1.msra.mxu0 0.0
    %349 = vmatprep.subr.mxu0 0.0
    %350 = vmatpush1.msra.mxu0 0.0
    %351 = vmatprep.subr.mxu0 0.0
    %352 = vmatpush1.msra.mxu0 0.0
    %353 = vmatprep.subr.mxu0 0.0
    %354 = vmatpush1.msra.mxu0 0.0
    %355 = vmatprep.mubr.f32.mxu0 0.0
    %356 = vmatmul.mubr.f32.gmra.mrb[0].mxu0 %v289
    %v357 = vpop.f32.mrb[0].mxu0
    %v358 = vadd.f32 0.0, %v357
    %v359 = vpop.f32.mrb[0].mxu0
    %360 = vmatprep.mubr.f32.mxu0 0.0
    %361 = vmatmul.mubr.f32.gmra.mrb[0].mxu0 %v289
    %v362 = vpop.f32.mrb[0].mxu0
    %v363 = vpop.f32.mrb[0].mxu0
    %v364 = vadd.f32 0.0, %v363
    %365 = vdwg.mxu0
    %v366 = vadd.f32 %v234, %v358
    %v367 = vadd.f32 %v278, %v364
    %v368 = vxor.u32 %v366, 2147483648
    %v369 = vxor.u32 %v367, 2147483648
    %v370 = vmul.f32 %v368, 1.442695
    %v371 = vpow.pop %v370
    %v372 = vmul.f32 %v369, 1.442695
    %v373 = vpow.pop %v372
    %v374 = vadd.f32 %v371, 1.0
    %v375 = vadd.f32 %v373, 1.0
    %v376 = vrcp.pop %v374
    %v377 = vmul.f32 1.0, %v376
    %v378 = vrcp.pop %v375
    %v379 = vmul.f32 1.0, %v378
    %v380 = vtanh.pop %v366
    %v381 = vtanh.pop %v367
    %v382 = vmul.f32 %v377, 0.0
    %v383 = vmul.f32 %v379, 0.0
    %386 = vrot.lane.b32.xlu0 %v380, 32
    %v387 = vpop.permute.xlu0 %386
    %388 = vrot.lane.b32.xlu0 %v381, 32
    %v389 = vpop.permute.xlu0 %388
    %v392 = vmul.f32 %v377, %v387
    %v393 = vmul.f32 %v379, %v389
    %396 = vrot.lane.b32.xlu0 %v392, 32
    %v397 = vpop.permute.xlu0 %396
    %398 = vrot.lane.b32.xlu0 %v393, 32
    %v399 = vpop.permute.xlu0 %398
    %v402 = vadd.f32 %v382, %v397
    %v403 = vadd.f32 %v383, %v399
    %v404 = vtanh.pop %v402
    %v405 = vtanh.pop %v403
    %408 = vrot.lane.b32.xlu0 %v404, 32
    %v409 = vpop.permute.xlu0 %408
    %410 = vrot.lane.b32.xlu0 %v405, 32
    %v411 = vpop.permute.xlu0 %410
    %v414 = vmul.f32 %v377, %v409
    %v415 = vmul.f32 %v379, %v411
    %417 = vrot.lane.b32.xlu0 %v414, 64
    %v418 = vpop.permute.xlu0 %417
    %420 = vst.msk [vmem:[#allocation3] sm:$0xff] %vm142, %v418
    %422 = vrot.lane.b32.xlu0 %v415, 96
    %v423 = vpop.permute.xlu0 %422
    %vm425 = vcmask 523520
    %426 = vst.msk [vmem:[#allocation3 + $0x38] sm:$0xff] %vm425, %v423
    %427 = vrot.lane.b32.xlu0 %v415, 64
    %v428 = vpop.permute.xlu0 %427
    %v429 = vsel %vm142, %v418, 0
    %v431 = vsel %vm142, %v428, 0
    %433 = vmatprep.subr.mxu0 %v281
    %434 = vmatpush1.msra.mxu0 %v280
    %435 = vmatprep.subr.mxu0 %v283
    %436 = vmatpush1.msra.mxu0 %v282
    %437 = vmatprep.subr.mxu0 %v285
    %438 = vmatpush1.msra.mxu0 %v284
    %439 = vmatprep.subr.mxu0 %v287
    %440 = vmatpush1.msra.mxu0 %v286
    %441 = vmatprep.subr.mxu0 0.0
    %442 = vmatpush1.msra.mxu0 0.0
    %443 = vmatprep.subr.mxu0 0.0
    %444 = vmatpush1.msra.mxu0 0.0
    %445 = vmatprep.subr.mxu0 0.0
    %446 = vmatpush1.msra.mxu0 0.0
    %447 = vmatprep.subr.mxu0 0.0
    %448 = vmatpush1.msra.mxu0 0.0
    %449 = vmatprep.subr.mxu0 0.0
    %450 = vmatpush1.msra.mxu0 0.0
    %451 = vmatprep.subr.mxu0 0.0
    %452 = vmatpush1.msra.mxu0 0.0
    %453 = vmatprep.subr.mxu0 0.0
    %454 = vmatpush1.msra.mxu0 0.0
    %455 = vmatprep.subr.mxu0 0.0
    %456 = vmatpush1.msra.mxu0 0.0
    %457 = vmatprep.subr.mxu0 0.0
    %458 = vmatpush1.msra.mxu0 0.0
    %459 = vmatprep.subr.mxu0 0.0
    %460 = vmatpush1.msra.mxu0 0.0
    %461 = vmatprep.subr.mxu0 0.0
    %462 = vmatpush1.msra.mxu0 0.0
    %463 = vmatprep.subr.mxu0 0.0
    %464 = vmatpush1.msra.mxu0 0.0
    %465 = vmatprep.subr.mxu0 0.0
    %466 = vmatpush1.msra.mxu0 0.0
    %467 = vmatprep.subr.mxu0 0.0
    %468 = vmatpush1.msra.mxu0 0.0
    %469 = vmatprep.subr.mxu0 0.0
    %470 = vmatpush1.msra.mxu0 0.0
    %471 = vmatprep.subr.mxu0 0.0
    %472 = vmatpush1.msra.mxu0 0.0
    %473 = vmatprep.subr.mxu0 0.0
    %474 = vmatpush1.msra.mxu0 0.0
    %475 = vmatprep.subr.mxu0 0.0
    %476 = vmatpush1.msra.mxu0 0.0
    %477 = vmatprep.subr.mxu0 0.0
    %478 = vmatpush1.msra.mxu0 0.0
    %479 = vmatprep.subr.mxu0 0.0
    %480 = vmatpush1.msra.mxu0 0.0
    %481 = vmatprep.subr.mxu0 0.0
    %482 = vmatpush1.msra.mxu0 0.0
    %483 = vmatprep.subr.mxu0 0.0
    %484 = vmatpush1.msra.mxu0 0.0
    %485 = vmatprep.subr.mxu0 0.0
    %486 = vmatpush1.msra.mxu0 0.0
    %487 = vmatprep.subr.mxu0 0.0
    %488 = vmatpush1.msra.mxu0 0.0
    %489 = vmatprep.subr.mxu0 0.0
    %490 = vmatpush1.msra.mxu0 0.0
    %491 = vmatprep.subr.mxu0 0.0
    %492 = vmatpush1.msra.mxu0 0.0
    %493 = vmatprep.subr.mxu0 0.0
    %494 = vmatpush1.msra.mxu0 0.0
    %495 = vmatprep.subr.mxu0 0.0
    %496 = vmatpush1.msra.mxu0 0.0
    %497 = vmatprep.mubr.f32.mxu0 0.0
    %498 = vmatmul.mubr.f32.gmra.mrb[0].mxu0 %v429
    %v499 = vpop.f32.mrb[0].mxu0
    %v500 = vadd.f32 0.0, %v499
    %v501 = vpop.f32.mrb[0].mxu0
    %502 = vmatprep.mubr.f32.mxu0 0.0
    %503 = vmatmul.mubr.f32.gmra.mrb[0].mxu0 %v431
    %v504 = vpop.f32.mrb[0].mxu0
    %v505 = vpop.f32.mrb[0].mxu0
    %v506 = vadd.f32 0.0, %v505
    %507 = vdwg.mxu0
    %v508 = vadd.f32 %v240, %v500
    %v509 = vadd.f32 %v272, %v506
    %v510 = vxor.u32 %v508, 2147483648
    %v511 = vxor.u32 %v509, 2147483648
    %v512 = vmul.f32 %v510, 1.442695
    %v513 = vpow.pop %v512
    %v514 = vmul.f32 %v511, 1.442695
    %v515 = vpow.pop %v514
    %v516 = vadd.f32 %v513, 1.0
    %v517 = vadd.f32 %v515, 1.0
    %v518 = vrcp.pop %v516
    %v519 = vmul.f32 1.0, %v518
    %v520 = vrcp.pop %v517
    %v521 = vmul.f32 1.0, %v520
    %v522 = vtanh.pop %v508
    %v523 = vtanh.pop %v509
    %v524 = vmul.f32 %v519, %v402
    %v525 = vmul.f32 %v521, %v403
    %528 = vrot.lane.b32.xlu0 %v522, 32
    %v529 = vpop.permute.xlu0 %528
    %530 = vrot.lane.b32.xlu0 %v523, 32
    %v531 = vpop.permute.xlu0 %530
    %v534 = vmul.f32 %v519, %v529
    %v535 = vmul.f32 %v521, %v531
    %538 = vrot.lane.b32.xlu0 %v534, 32
    %v539 = vpop.permute.xlu0 %538
    %540 = vrot.lane.b32.xlu0 %v535, 32
    %v541 = vpop.permute.xlu0 %540
    %v544 = vadd.f32 %v524, %v539
    %v545 = vadd.f32 %v525, %v541
    %v546 = vtanh.pop %v544
    %v547 = vtanh.pop %v545
    %550 = vrot.lane.b32.xlu0 %v546, 32
    %v551 = vpop.permute.xlu0 %550
    %552 = vrot.lane.b32.xlu0 %v547, 32
    %v553 = vpop.permute.xlu0 %552
    %v556 = vmul.f32 %v519, %v551
    %v557 = vmul.f32 %v521, %v553
    %559 = vrot.lane.b32.xlu0 %v556, 64
    %v560 = vpop.permute.xlu0 %559
    %562 = vst.msk [vmem:[#allocation3 + $0x8] sm:$0xff] %vm142, %v560
    %564 = vrot.lane.b32.xlu0 %v557, 96
    %v565 = vpop.permute.xlu0 %564
    %567 = vst.msk [vmem:[#allocation3 + $0x30] sm:$0xff] %vm425, %v565
    %568 = vrot.lane.b32.xlu0 %v557, 64
    %v569 = vpop.permute.xlu0 %568
    %v570 = vsel %vm142, %v560, 0
    %v572 = vsel %vm142, %v569, 0
    %574 = vmatprep.subr.mxu0 %v281
    %575 = vmatpush1.msra.mxu0 %v280
    %576 = vmatprep.subr.mxu0 %v283
    %577 = vmatpush1.msra.mxu0 %v282
    %578 = vmatprep.subr.mxu0 %v285
    %579 = vmatpush1.msra.mxu0 %v284
    %580 = vmatprep.subr.mxu0 %v287
    %581 = vmatpush1.msra.mxu0 %v286
    %582 = vmatprep.subr.mxu0 0.0
    %583 = vmatpush1.msra.mxu0 0.0
    %584 = vmatprep.subr.mxu0 0.0
    %585 = vmatpush1.msra.mxu0 0.0
    %586 = vmatprep.subr.mxu0 0.0
    %587 = vmatpush1.msra.mxu0 0.0
    %588 = vmatprep.subr.mxu0 0.0
    %589 = vmatpush1.msra.mxu0 0.0
    %590 = vmatprep.subr.mxu0 0.0
    %591 = vmatpush1.msra.mxu0 0.0
    %592 = vmatprep.subr.mxu0 0.0
    %593 = vmatpush1.msra.mxu0 0.0
    %594 = vmatprep.subr.mxu0 0.0
    %595 = vmatpush1.msra.mxu0 0.0
    %596 = vmatprep.subr.mxu0 0.0
    %597 = vmatpush1.msra.mxu0 0.0
    %598 = vmatprep.subr.mxu0 0.0
    %599 = vmatpush1.msra.mxu0 0.0
    %600 = vmatprep.subr.mxu0 0.0
    %601 = vmatpush1.msra.mxu0 0.0
    %602 = vmatprep.subr.mxu0 0.0
    %603 = vmatpush1.msra.mxu0 0.0
    %604 = vmatprep.subr.mxu0 0.0
    %605 = vmatpush1.msra.mxu0 0.0
    %606 = vmatprep.subr.mxu0 0.0
    %607 = vmatpush1.msra.mxu0 0.0
    %608 = vmatprep.subr.mxu0 0.0
    %609 = vmatpush1.msra.mxu0 0.0
    %610 = vmatprep.subr.mxu0 0.0
    %611 = vmatpush1.msra.mxu0 0.0
    %612 = vmatprep.subr.mxu0 0.0
    %613 = vmatpush1.msra.mxu0 0.0
    %614 = vmatprep.subr.mxu0 0.0
    %615 = vmatpush1.msra.mxu0 0.0
    %616 = vmatprep.subr.mxu0 0.0
    %617 = vmatpush1.msra.mxu0 0.0
    %618 = vmatprep.subr.mxu0 0.0
    %619 = vmatpush1.msra.mxu0 0.0
    %620 = vmatprep.subr.mxu0 0.0
    %621 = vmatpush1.msra.mxu0 0.0
    %622 = vmatprep.subr.mxu0 0.0
    %623 = vmatpush1.msra.mxu0 0.0
    %624 = vmatprep.subr.mxu0 0.0
    %625 = vmatpush1.msra.mxu0 0.0
    %626 = vmatprep.subr.mxu0 0.0
    %627 = vmatpush1.msra.mxu0 0.0
    %628 = vmatprep.subr.mxu0 0.0
    %629 = vmatpush1.msra.mxu0 0.0
    %630 = vmatprep.subr.mxu0 0.0
    %631 = vmatpush1.msra.mxu0 0.0
    %632 = vmatprep.subr.mxu0 0.0
    %633 = vmatpush1.msra.mxu0 0.0
    %634 = vmatprep.subr.mxu0 0.0
    %635 = vmatpush1.msra.mxu0 0.0
    %636 = vmatprep.subr.mxu0 0.0
    %637 = vmatpush1.msra.mxu0 0.0
    %638 = vmatprep.mubr.f32.mxu0 0.0
    %639 = vmatmul.mubr.f32.gmra.mrb[0].mxu0 %v570
    %v640 = vpop.f32.mrb[0].mxu0
    %v641 = vadd.f32 0.0, %v640
    %v642 = vpop.f32.mrb[0].mxu0
    %643 = vmatprep.mubr.f32.mxu0 0.0
    %644 = vmatmul.mubr.f32.gmra.mrb[0].mxu0 %v572
    %v645 = vpop.f32.mrb[0].mxu0
    %v646 = vpop.f32.mrb[0].mxu0
    %v647 = vadd.f32 0.0, %v646
    %648 = vdwg.mxu0
    %v649 = vadd.f32 %v246, %v641
    %v650 = vadd.f32 %v266, %v647
    %v651 = vxor.u32 %v649, 2147483648
    %v652 = vxor.u32 %v650, 2147483648
    %v653 = vmul.f32 %v651, 1.442695
    %v654 = vpow.pop %v653
    %v655 = vmul.f32 %v652, 1.442695
    %v656 = vpow.pop %v655
    %v657 = vadd.f32 %v654, 1.0
    %v658 = vadd.f32 %v656, 1.0
    %v659 = vrcp.pop %v657
    %v660 = vmul.f32 1.0, %v659
    %v661 = vrcp.pop %v658
    %v662 = vmul.f32 1.0, %v661
    %v663 = vtanh.pop %v649
    %v664 = vtanh.pop %v650
    %v665 = vmul.f32 %v660, %v544
    %v666 = vmul.f32 %v662, %v545
    %669 = vrot.lane.b32.xlu0 %v663, 32
    %v670 = vpop.permute.xlu0 %669
    %671 = vrot.lane.b32.xlu0 %v664, 32
    %v672 = vpop.permute.xlu0 %671
    %v675 = vmul.f32 %v660, %v670
    %v676 = vmul.f32 %v662, %v672
    %679 = vrot.lane.b32.xlu0 %v675, 32
    %v680 = vpop.permute.xlu0 %679
    %681 = vrot.lane.b32.xlu0 %v676, 32
    %v682 = vpop.permute.xlu0 %681
    %v685 = vadd.f32 %v665, %v680
    %v686 = vadd.f32 %v666, %v682
    %v687 = vtanh.pop %v685
    %v688 = vtanh.pop %v686
    %691 = vrot.lane.b32.xlu0 %v687, 32
    %v692 = vpop.permute.xlu0 %691
    %693 = vrot.lane.b32.xlu0 %v688, 32
    %v694 = vpop.permute.xlu0 %693
    %v697 = vmul.f32 %v660, %v692
    %v698 = vmul.f32 %v662, %v694
    %700 = vrot.lane.b32.xlu0 %v697, 64
    %v701 = vpop.permute.xlu0 %700
    %703 = vst.msk [vmem:[#allocation3 + $0x10] sm:$0xff] %vm142, %v701
    %705 = vrot.lane.b32.xlu0 %v698, 96
    %v706 = vpop.permute.xlu0 %705
    %708 = vst.msk [vmem:[#allocation3 + $0x28] sm:$0xff] %vm425, %v706
    %709 = vrot.lane.b32.xlu0 %v698, 64
    %v710 = vpop.permute.xlu0 %709
    %v711 = vsel %vm142, %v701, 0
    %v713 = vsel %vm142, %v710, 0
    %715 = vmatprep.subr.mxu0 %v281
    %716 = vmatpush1.msra.mxu0 %v280
    %717 = vmatprep.subr.mxu0 %v283
    %718 = vmatpush1.msra.mxu0 %v282
    %719 = vmatprep.subr.mxu0 %v285
    %720 = vmatpush1.msra.mxu0 %v284
    %721 = vmatprep.subr.mxu0 %v287
    %722 = vmatpush1.msra.mxu0 %v286
    %723 = vmatprep.subr.mxu0 0.0
    %724 = vmatpush1.msra.mxu0 0.0
    %725 = vmatprep.subr.mxu0 0.0
    %726 = vmatpush1.msra.mxu0 0.0
    %727 = vmatprep.subr.mxu0 0.0
    %728 = vmatpush1.msra.mxu0 0.0
    %729 = vmatprep.subr.mxu0 0.0
    %730 = vmatpush1.msra.mxu0 0.0
    %731 = vmatprep.subr.mxu0 0.0
    %732 = vmatpush1.msra.mxu0 0.0
    %733 = vmatprep.subr.mxu0 0.0
    %734 = vmatpush1.msra.mxu0 0.0
    %735 = vmatprep.subr.mxu0 0.0
    %736 = vmatpush1.msra.mxu0 0.0
    %737 = vmatprep.subr.mxu0 0.0
    %738 = vmatpush1.msra.mxu0 0.0
    %739 = vmatprep.subr.mxu0 0.0
    %740 = vmatpush1.msra.mxu0 0.0
    %741 = vmatprep.subr.mxu0 0.0
    %742 = vmatpush1.msra.mxu0 0.0
    %743 = vmatprep.subr.mxu0 0.0
    %744 = vmatpush1.msra.mxu0 0.0
    %745 = vmatprep.subr.mxu0 0.0
    %746 = vmatpush1.msra.mxu0 0.0
    %747 = vmatprep.subr.mxu0 0.0
    %748 = vmatpush1.msra.mxu0 0.0
    %749 = vmatprep.subr.mxu0 0.0
    %750 = vmatpush1.msra.mxu0 0.0
    %751 = vmatprep.subr.mxu0 0.0
    %752 = vmatpush1.msra.mxu0 0.0
    %753 = vmatprep.subr.mxu0 0.0
    %754 = vmatpush1.msra.mxu0 0.0
    %755 = vmatprep.subr.mxu0 0.0
    %756 = vmatpush1.msra.mxu0 0.0
    %757 = vmatprep.subr.mxu0 0.0
    %758 = vmatpush1.msra.mxu0 0.0
    %759 = vmatprep.subr.mxu0 0.0
    %760 = vmatpush1.msra.mxu0 0.0
    %761 = vmatprep.subr.mxu0 0.0
    %762 = vmatpush1.msra.mxu0 0.0
    %763 = vmatprep.subr.mxu0 0.0
    %764 = vmatpush1.msra.mxu0 0.0
    %765 = vmatprep.subr.mxu0 0.0
    %766 = vmatpush1.msra.mxu0 0.0
    %767 = vmatprep.subr.mxu0 0.0
    %768 = vmatpush1.msra.mxu0 0.0
    %769 = vmatprep.subr.mxu0 0.0
    %770 = vmatpush1.msra.mxu0 0.0
    %771 = vmatprep.subr.mxu0 0.0
    %772 = vmatpush1.msra.mxu0 0.0
    %773 = vmatprep.subr.mxu0 0.0
    %774 = vmatpush1.msra.mxu0 0.0
    %775 = vmatprep.subr.mxu0 0.0
    %776 = vmatpush1.msra.mxu0 0.0
    %777 = vmatprep.subr.mxu0 0.0
    %778 = vmatpush1.msra.mxu0 0.0
    %779 = vmatprep.mubr.f32.mxu0 0.0
    %780 = vmatmul.mubr.f32.gmra.mrb[0].mxu0 %v711
    %v781 = vpop.f32.mrb[0].mxu0
    %v782 = vadd.f32 0.0, %v781
    %v783 = vpop.f32.mrb[0].mxu0
    %784 = vmatprep.mubr.f32.mxu0 0.0
    %785 = vmatmul.mubr.f32.gmra.mrb[0].mxu0 %v713
    %v786 = vpop.f32.mrb[0].mxu0
    %v787 = vpop.f32.mrb[0].mxu0
    %v788 = vadd.f32 0.0, %v787
    %789 = vdwg.mxu0
    %v790 = vadd.f32 %v252, %v782
    %v791 = vadd.f32 %v260, %v788
    %v792 = vxor.u32 %v790, 2147483648
    %v793 = vxor.u32 %v791, 2147483648
    %v794 = vmul.f32 %v792, 1.442695
    %v795 = vpow.pop %v794
    %v796 = vmul.f32 %v793, 1.442695
    %v797 = vpow.pop %v796
    %v798 = vadd.f32 %v795, 1.0
    %v799 = vadd.f32 %v797, 1.0
    %v800 = vrcp.pop %v798
    %v801 = vmul.f32 1.0, %v800
    %v802 = vrcp.pop %v799
    %v803 = vmul.f32 1.0, %v802
    %v804 = vtanh.pop %v790
    %v805 = vtanh.pop %v791
    %v806 = vmul.f32 %v801, %v685
    %v807 = vmul.f32 %v803, %v686
    %810 = vrot.lane.b32.xlu0 %v804, 32
    %v811 = vpop.permute.xlu0 %810
    %812 = vrot.lane.b32.xlu0 %v805, 32
    %v813 = vpop.permute.xlu0 %812
    %v816 = vmul.f32 %v801, %v811
    %v817 = vmul.f32 %v803, %v813
    %820 = vrot.lane.b32.xlu0 %v816, 32
    %v821 = vpop.permute.xlu0 %820
    %822 = vrot.lane.b32.xlu0 %v817, 32
    %v823 = vpop.permute.xlu0 %822
    %v826 = vadd.f32 %v806, %v821
    %v827 = vadd.f32 %v807, %v823
    %v828 = vtanh.pop %v826
    %v829 = vtanh.pop %v827
    %832 = vrot.lane.b32.xlu0 %v828, 32
    %v833 = vpop.permute.xlu0 %832
    %834 = vrot.lane.b32.xlu0 %v829, 32
    %v835 = vpop.permute.xlu0 %834
    %v838 = vmul.f32 %v801, %v833
    %v839 = vmul.f32 %v803, %v835
    %841 = vrot.lane.b32.xlu0 %v838, 64
    %v842 = vpop.permute.xlu0 %841
    %844 = vst.msk [vmem:[#allocation3 + $0x18] sm:$0xff] %vm142, %v842
    %846 = vrot.lane.b32.xlu0 %v839, 96
    %v847 = vpop.permute.xlu0 %846
    %849 = vst.msk [vmem:[#allocation3 + $0x20] sm:$0xff] %vm425, %v847
    %850 = vrot.lane.b32.xlu0 %v839, 64
    %v851 = vpop.permute.xlu0 %850
    %v852 = vsel %vm142, %v842, 0
    %v854 = vsel %vm142, %v851, 0
    %856 = vmatprep.subr.mxu0 %v281
    %857 = vmatpush1.msra.mxu0 %v280
    %858 = vmatprep.subr.mxu0 %v283
    %859 = vmatpush1.msra.mxu0 %v282
    %860 = vmatprep.subr.mxu0 %v285
    %861 = vmatpush1.msra.mxu0 %v284
    %862 = vmatprep.subr.mxu0 %v287
    %863 = vmatpush1.msra.mxu0 %v286
    %864 = vmatprep.subr.mxu0 0.0
    %865 = vmatpush1.msra.mxu0 0.0
    %866 = vmatprep.subr.mxu0 0.0
    %867 = vmatpush1.msra.mxu0 0.0
    %868 = vmatprep.subr.mxu0 0.0
    %869 = vmatpush1.msra.mxu0 0.0
    %870 = vmatprep.subr.mxu0 0.0
    %871 = vmatpush1.msra.mxu0 0.0
    %872 = vmatprep.subr.mxu0 0.0
    %873 = vmatpush1.msra.mxu0 0.0
    %874 = vmatprep.subr.mxu0 0.0
    %875 = vmatpush1.msra.mxu0 0.0
    %876 = vmatprep.subr.mxu0 0.0
    %877 = vmatpush1.msra.mxu0 0.0
    %878 = vmatprep.subr.mxu0 0.0
    %879 = vmatpush1.msra.mxu0 0.0
    %880 = vmatprep.subr.mxu0 0.0
    %881 = vmatpush1.msra.mxu0 0.0
    %882 = vmatprep.subr.mxu0 0.0
    %883 = vmatpush1.msra.mxu0 0.0
    %884 = vmatprep.subr.mxu0 0.0
    %885 = vmatpush1.msra.mxu0 0.0
    %886 = vmatprep.subr.mxu0 0.0
    %887 = vmatpush1.msra.mxu0 0.0
    %888 = vmatprep.subr.mxu0 0.0
    %889 = vmatpush1.msra.mxu0 0.0
    %890 = vmatprep.subr.mxu0 0.0
    %891 = vmatpush1.msra.mxu0 0.0
    %892 = vmatprep.subr.mxu0 0.0
    %893 = vmatpush1.msra.mxu0 0.0
    %894 = vmatprep.subr.mxu0 0.0
    %895 = vmatpush1.msra.mxu0 0.0
    %896 = vmatprep.subr.mxu0 0.0
    %897 = vmatpush1.msra.mxu0 0.0
    %898 = vmatprep.subr.mxu0 0.0
    %899 = vmatpush1.msra.mxu0 0.0
    %900 = vmatprep.subr.mxu0 0.0
    %901 = vmatpush1.msra.mxu0 0.0
    %902 = vmatprep.subr.mxu0 0.0
    %903 = vmatpush1.msra.mxu0 0.0
    %904 = vmatprep.subr.mxu0 0.0
    %905 = vmatpush1.msra.mxu0 0.0
    %906 = vmatprep.subr.mxu0 0.0
    %907 = vmatpush1.msra.mxu0 0.0
    %908 = vmatprep.subr.mxu0 0.0
    %909 = vmatpush1.msra.mxu0 0.0
    %910 = vmatprep.subr.mxu0 0.0
    %911 = vmatpush1.msra.mxu0 0.0
    %912 = vmatprep.subr.mxu0 0.0
    %913 = vmatpush1.msra.mxu0 0.0
    %914 = vmatprep.subr.mxu0 0.0
    %915 = vmatpush1.msra.mxu0 0.0
    %916 = vmatprep.subr.mxu0 0.0
    %917 = vmatpush1.msra.mxu0 0.0
    %918 = vmatprep.subr.mxu0 0.0
    %919 = vmatpush1.msra.mxu0 0.0
    %920 = vmatprep.mubr.f32.mxu0 0.0
    %921 = vmatmul.mubr.f32.gmra.mrb[0].mxu0 %v852
    %v922 = vpop.f32.mrb[0].mxu0
    %v923 = vadd.f32 0.0, %v922
    %v924 = vpop.f32.mrb[0].mxu0
    %925 = vmatprep.mubr.f32.mxu0 0.0
    %926 = vmatmul.mubr.f32.gmra.mrb[0].mxu0 %v854
    %v927 = vpop.f32.mrb[0].mxu0
    %v928 = vpop.f32.mrb[0].mxu0
    %v929 = vadd.f32 0.0, %v928
    %930 = vdwg.mxu0
    %v931 = vadd.f32 %v258, %v923
    %v932 = vadd.f32 %v254, %v929
    %v933 = vxor.u32 %v931, 2147483648
    %v934 = vxor.u32 %v932, 2147483648
    %v935 = vmul.f32 %v933, 1.442695
    %v936 = vpow.pop %v935
    %v937 = vmul.f32 %v934, 1.442695
    %v938 = vpow.pop %v937
    %v939 = vadd.f32 %v936, 1.0
    %v940 = vadd.f32 %v938, 1.0
    %v941 = vrcp.pop %v939
    %v942 = vmul.f32 1.0, %v941
    %v943 = vrcp.pop %v940
    %v944 = vmul.f32 1.0, %v943
    %v945 = vtanh.pop %v931
    %v946 = vtanh.pop %v932
    %v947 = vmul.f32 %v942, %v826
    %v948 = vmul.f32 %v944, %v827
    %951 = vrot.lane.b32.xlu0 %v945, 32
    %v952 = vpop.permute.xlu0 %951
    %953 = vrot.lane.b32.xlu0 %v946, 32
    %v954 = vpop.permute.xlu0 %953
    %v957 = vmul.f32 %v942, %v952
    %v958 = vmul.f32 %v944, %v954
    %961 = vrot.lane.b32.xlu0 %v957, 32
    %v962 = vpop.permute.xlu0 %961
    %963 = vrot.lane.b32.xlu0 %v958, 32
    %v964 = vpop.permute.xlu0 %963
    %v967 = vadd.f32 %v947, %v962
    %v968 = vadd.f32 %v948, %v964
    %v969 = vtanh.pop %v967
    %v970 = vtanh.pop %v968
    %973 = vrot.lane.b32.xlu0 %v969, 32
    %v974 = vpop.permute.xlu0 %973
    %975 = vrot.lane.b32.xlu0 %v970, 32
    %v976 = vpop.permute.xlu0 %975
    %v979 = vmul.f32 %v942, %v974
    %v980 = vmul.f32 %v944, %v976
    %982 = vrot.lane.b32.xlu0 %v979, 64
    %v983 = vpop.permute.xlu0 %982
    %985 = vst.msk [vmem:[#allocation3 + $0x20] sm:$0xff] %vm142, %v983
    %987 = vrot.lane.b32.xlu0 %v980, 96
    %v988 = vpop.permute.xlu0 %987
    %990 = vst.msk [vmem:[#allocation3 + $0x18] sm:$0xff] %vm425, %v988
    %991 = vrot.lane.b32.xlu0 %v980, 64
    %v992 = vpop.permute.xlu0 %991
    %v993 = vsel %vm142, %v983, 0
    %v995 = vsel %vm142, %v992, 0
    %997 = vmatprep.subr.mxu0 %v281
    %998 = vmatpush1.msra.mxu0 %v280
    %999 = vmatprep.subr.mxu0 %v283
    %1000 = vmatpush1.msra.mxu0 %v282
    %1001 = vmatprep.subr.mxu0 %v285
    %1002 = vmatpush1.msra.mxu0 %v284
    %1003 = vmatprep.subr.mxu0 %v287
    %1004 = vmatpush1.msra.mxu0 %v286
    %1005 = vmatprep.subr.mxu0 0.0
    %1006 = vmatpush1.msra.mxu0 0.0
    %1007 = vmatprep.subr.mxu0 0.0
    %1008 = vmatpush1.msra.mxu0 0.0
    %1009 = vmatprep.subr.mxu0 0.0
    %1010 = vmatpush1.msra.mxu0 0.0
    %1011 = vmatprep.subr.mxu0 0.0
    %1012 = vmatpush1.msra.mxu0 0.0
    %1013 = vmatprep.subr.mxu0 0.0
    %1014 = vmatpush1.msra.mxu0 0.0
    %1015 = vmatprep.subr.mxu0 0.0
    %1016 = vmatpush1.msra.mxu0 0.0
    %1017 = vmatprep.subr.mxu0 0.0
    %1018 = vmatpush1.msra.mxu0 0.0
    %1019 = vmatprep.subr.mxu0 0.0
    %1020 = vmatpush1.msra.mxu0 0.0
    %1021 = vmatprep.subr.mxu0 0.0
    %1022 = vmatpush1.msra.mxu0 0.0
    %1023 = vmatprep.subr.mxu0 0.0
    %1024 = vmatpush1.msra.mxu0 0.0
    %1025 = vmatprep.subr.mxu0 0.0
    %1026 = vmatpush1.msra.mxu0 0.0
    %1027 = vmatprep.subr.mxu0 0.0
    %1028 = vmatpush1.msra.mxu0 0.0
    %1029 = vmatprep.subr.mxu0 0.0
    %1030 = vmatpush1.msra.mxu0 0.0
    %1031 = vmatprep.subr.mxu0 0.0
    %1032 = vmatpush1.msra.mxu0 0.0
    %1033 = vmatprep.subr.mxu0 0.0
    %1034 = vmatpush1.msra.mxu0 0.0
    %1035 = vmatprep.subr.mxu0 0.0
    %1036 = vmatpush1.msra.mxu0 0.0
    %1037 = vmatprep.subr.mxu0 0.0
    %1038 = vmatpush1.msra.mxu0 0.0
    %1039 = vmatprep.subr.mxu0 0.0
    %1040 = vmatpush1.msra.mxu0 0.0
    %1041 = vmatprep.subr.mxu0 0.0
    %1042 = vmatpush1.msra.mxu0 0.0
    %1043 = vmatprep.subr.mxu0 0.0
    %1044 = vmatpush1.msra.mxu0 0.0
    %1045 = vmatprep.subr.mxu0 0.0
    %1046 = vmatpush1.msra.mxu0 0.0
    %1047 = vmatprep.subr.mxu0 0.0
    %1048 = vmatpush1.msra.mxu0 0.0
    %1049 = vmatprep.subr.mxu0 0.0
    %1050 = vmatpush1.msra.mxu0 0.0
    %1051 = vmatprep.subr.mxu0 0.0
    %1052 = vmatpush1.msra.mxu0 0.0
    %1053 = vmatprep.subr.mxu0 0.0
    %1054 = vmatpush1.msra.mxu0 0.0
    %1055 = vmatprep.subr.mxu0 0.0
    %1056 = vmatpush1.msra.mxu0 0.0
    %1057 = vmatprep.subr.mxu0 0.0
    %1058 = vmatpush1.msra.mxu0 0.0
    %1059 = vmatprep.subr.mxu0 0.0
    %1060 = vmatpush1.msra.mxu0 0.0
    %1061 = vmatprep.mubr.f32.mxu0 0.0
    %1062 = vmatmul.mubr.f32.gmra.mrb[0].mxu0 %v993
    %v1063 = vpop.f32.mrb[0].mxu0
    %v1064 = vadd.f32 0.0, %v1063
    %v1065 = vpop.f32.mrb[0].mxu0
    %1066 = vmatprep.mubr.f32.mxu0 0.0
    %1067 = vmatmul.mubr.f32.gmra.mrb[0].mxu0 %v995
    %v1068 = vpop.f32.mrb[0].mxu0
    %v1069 = vpop.f32.mrb[0].mxu0
    %v1070 = vadd.f32 0.0, %v1069
    %1071 = vdwg.mxu0
    %v1072 = vadd.f32 %v264, %v1064
    %v1073 = vadd.f32 %v248, %v1070
    %v1074 = vxor.u32 %v1072, 2147483648
    %v1075 = vxor.u32 %v1073, 2147483648
    %v1076 = vmul.f32 %v1074, 1.442695
    %v1077 = vpow.pop %v1076
    %v1078 = vmul.f32 %v1075, 1.442695
    %v1079 = vpow.pop %v1078
    %v1080 = vadd.f32 %v1077, 1.0
    %v1081 = vadd.f32 %v1079, 1.0
    %v1082 = vrcp.pop %v1080
    %v1083 = vmul.f32 1.0, %v1082
    %v1084 = vrcp.pop %v1081
    %v1085 = vmul.f32 1.0, %v1084
    %v1086 = vtanh.pop %v1072
    %v1087 = vtanh.pop %v1073
    %v1088 = vmul.f32 %v1083, %v967
    %v1089 = vmul.f32 %v1085, %v968
    %1092 = vrot.lane.b32.xlu0 %v1086, 32
    %v1093 = vpop.permute.xlu0 %1092
    %1094 = vrot.lane.b32.xlu0 %v1087, 32
    %v1095 = vpop.permute.xlu0 %1094
    %v1098 = vmul.f32 %v1083, %v1093
    %v1099 = vmul.f32 %v1085, %v1095
    %1102 = vrot.lane.b32.xlu0 %v1098, 32
    %v1103 = vpop.permute.xlu0 %1102
    %1104 = vrot.lane.b32.xlu0 %v1099, 32
    %v1105 = vpop.permute.xlu0 %1104
    %v1108 = vadd.f32 %v1088, %v1103
    %v1109 = vadd.f32 %v1089, %v1105
    %v1110 = vtanh.pop %v1108
    %v1111 = vtanh.pop %v1109
    %1114 = vrot.lane.b32.xlu0 %v1110, 32
    %v1115 = vpop.permute.xlu0 %1114
    %1116 = vrot.lane.b32.xlu0 %v1111, 32
    %v1117 = vpop.permute.xlu0 %1116
    %v1120 = vmul.f32 %v1083, %v1115
    %v1121 = vmul.f32 %v1085, %v1117
    %1123 = vrot.lane.b32.xlu0 %v1120, 64
    %v1124 = vpop.permute.xlu0 %1123
    %1126 = vst.msk [vmem:[#allocation3 + $0x28] sm:$0xff] %vm142, %v1124
    %1128 = vrot.lane.b32.xlu0 %v1121, 96
    %v1129 = vpop.permute.xlu0 %1128
    %1131 = vst.msk [vmem:[#allocation3 + $0x10] sm:$0xff] %vm425, %v1129
    %1132 = vrot.lane.b32.xlu0 %v1121, 64
    %v1133 = vpop.permute.xlu0 %1132
    %v1134 = vsel %vm142, %v1124, 0
    %v1136 = vsel %vm142, %v1133, 0
    %1138 = vmatprep.subr.mxu0 %v281
    %1139 = vmatpush1.msra.mxu0 %v280
    %1140 = vmatprep.subr.mxu0 %v283
    %1141 = vmatpush1.msra.mxu0 %v282
    %1142 = vmatprep.subr.mxu0 %v285
    %1143 = vmatpush1.msra.mxu0 %v284
    %1144 = vmatprep.subr.mxu0 %v287
    %1145 = vmatpush1.msra.mxu0 %v286
    %1146 = vmatprep.subr.mxu0 0.0
    %1147 = vmatpush1.msra.mxu0 0.0
    %1148 = vmatprep.subr.mxu0 0.0
    %1149 = vmatpush1.msra.mxu0 0.0
    %1150 = vmatprep.subr.mxu0 0.0
    %1151 = vmatpush1.msra.mxu0 0.0
    %1152 = vmatprep.subr.mxu0 0.0
    %1153 = vmatpush1.msra.mxu0 0.0
    %1154 = vmatprep.subr.mxu0 0.0
    %1155 = vmatpush1.msra.mxu0 0.0
    %1156 = vmatprep.subr.mxu0 0.0
    %1157 = vmatpush1.msra.mxu0 0.0
    %1158 = vmatprep.subr.mxu0 0.0
    %1159 = vmatpush1.msra.mxu0 0.0
    %1160 = vmatprep.subr.mxu0 0.0
    %1161 = vmatpush1.msra.mxu0 0.0
    %1162 = vmatprep.subr.mxu0 0.0
    %1163 = vmatpush1.msra.mxu0 0.0
    %1164 = vmatprep.subr.mxu0 0.0
    %1165 = vmatpush1.msra.mxu0 0.0
    %1166 = vmatprep.subr.mxu0 0.0
    %1167 = vmatpush1.msra.mxu0 0.0
    %1168 = vmatprep.subr.mxu0 0.0
    %1169 = vmatpush1.msra.mxu0 0.0
    %1170 = vmatprep.subr.mxu0 0.0
    %1171 = vmatpush1.msra.mxu0 0.0
    %1172 = vmatprep.subr.mxu0 0.0
    %1173 = vmatpush1.msra.mxu0 0.0
    %1174 = vmatprep.subr.mxu0 0.0
    %1175 = vmatpush1.msra.mxu0 0.0
    %1176 = vmatprep.subr.mxu0 0.0
    %1177 = vmatpush1.msra.mxu0 0.0
    %1178 = vmatprep.subr.mxu0 0.0
    %1179 = vmatpush1.msra.mxu0 0.0
    %1180 = vmatprep.subr.mxu0 0.0
    %1181 = vmatpush1.msra.mxu0 0.0
    %1182 = vmatprep.subr.mxu0 0.0
    %1183 = vmatpush1.msra.mxu0 0.0
    %1184 = vmatprep.subr.mxu0 0.0
    %1185 = vmatpush1.msra.mxu0 0.0
    %1186 = vmatprep.subr.mxu0 0.0
    %1187 = vmatpush1.msra.mxu0 0.0
    %1188 = vmatprep.subr.mxu0 0.0
    %1189 = vmatpush1.msra.mxu0 0.0
    %1190 = vmatprep.subr.mxu0 0.0
    %1191 = vmatpush1.msra.mxu0 0.0
    %1192 = vmatprep.subr.mxu0 0.0
    %1193 = vmatpush1.msra.mxu0 0.0
    %1194 = vmatprep.subr.mxu0 0.0
    %1195 = vmatpush1.msra.mxu0 0.0
    %1196 = vmatprep.subr.mxu0 0.0
    %1197 = vmatpush1.msra.mxu0 0.0
    %1198 = vmatprep.subr.mxu0 0.0
    %1199 = vmatpush1.msra.mxu0 0.0
    %1200 = vmatprep.subr.mxu0 0.0
    %1201 = vmatpush1.msra.mxu0 0.0
    %1202 = vmatprep.mubr.f32.mxu0 0.0
    %1203 = vmatmul.mubr.f32.gmra.mrb[0].mxu0 %v1134
    %v1204 = vpop.f32.mrb[0].mxu0
    %v1205 = vadd.f32 0.0, %v1204
    %v1206 = vpop.f32.mrb[0].mxu0
    %1207 = vmatprep.mubr.f32.mxu0 0.0
    %1208 = vmatmul.mubr.f32.gmra.mrb[0].mxu0 %v1136
    %v1209 = vpop.f32.mrb[0].mxu0
    %v1210 = vpop.f32.mrb[0].mxu0
    %v1211 = vadd.f32 0.0, %v1210
    %1212 = vdwg.mxu0
    %v1213 = vadd.f32 %v270, %v1205
    %v1214 = vadd.f32 %v242, %v1211
    %v1215 = vxor.u32 %v1213, 2147483648
    %v1216 = vxor.u32 %v1214, 2147483648
    %v1217 = vmul.f32 %v1215, 1.442695
    %v1218 = vpow.pop %v1217
    %v1219 = vmul.f32 %v1216, 1.442695
    %v1220 = vpow.pop %v1219
    %v1221 = vadd.f32 %v1218, 1.0
    %v1222 = vadd.f32 %v1220, 1.0
    %v1223 = vrcp.pop %v1221
    %v1224 = vmul.f32 1.0, %v1223
    %v1225 = vrcp.pop %v1222
    %v1226 = vmul.f32 1.0, %v1225
    %v1227 = vtanh.pop %v1213
    %v1228 = vtanh.pop %v1214
    %v1229 = vmul.f32 %v1224, %v1108
    %v1230 = vmul.f32 %v1226, %v1109
    %1233 = vrot.lane.b32.xlu0 %v1227, 32
    %v1234 = vpop.permute.xlu0 %1233
    %1235 = vrot.lane.b32.xlu0 %v1228, 32
    %v1236 = vpop.permute.xlu0 %1235
    %v1239 = vmul.f32 %v1224, %v1234
    %v1240 = vmul.f32 %v1226, %v1236
    %1243 = vrot.lane.b32.xlu0 %v1239, 32
    %v1244 = vpop.permute.xlu0 %1243
    %1245 = vrot.lane.b32.xlu0 %v1240, 32
    %v1246 = vpop.permute.xlu0 %1245
    %v1249 = vadd.f32 %v1229, %v1244
    %v1250 = vadd.f32 %v1230, %v1246
    %v1251 = vtanh.pop %v1249
    %v1252 = vtanh.pop %v1250
    %1255 = vrot.lane.b32.xlu0 %v1251, 32
    %v1256 = vpop.permute.xlu0 %1255
    %1257 = vrot.lane.b32.xlu0 %v1252, 32
    %v1258 = vpop.permute.xlu0 %1257
    %v1261 = vmul.f32 %v1224, %v1256
    %v1262 = vmul.f32 %v1226, %v1258
    %1264 = vrot.lane.b32.xlu0 %v1261, 64
    %v1265 = vpop.permute.xlu0 %1264
    %1267 = vst.msk [vmem:[#allocation3 + $0x30] sm:$0xff] %vm142, %v1265
    %1269 = vrot.lane.b32.xlu0 %v1262, 96
    %v1270 = vpop.permute.xlu0 %1269
    %1272 = vst.msk [vmem:[#allocation3 + $0x8] sm:$0xff] %vm425, %v1270
    %1273 = vrot.lane.b32.xlu0 %v1262, 64
    %v1274 = vpop.permute.xlu0 %1273
    %v1275 = vsel %vm142, %v1265, 0
    %v1277 = vsel %vm142, %v1274, 0
    %1279 = vmatprep.subr.mxu0 %v281
    %1280 = vmatpush1.msra.mxu0 %v280
    %1281 = vmatprep.subr.mxu0 %v283
    %1282 = vmatpush1.msra.mxu0 %v282
    %1283 = vmatprep.subr.mxu0 %v285
    %1284 = vmatpush1.msra.mxu0 %v284
    %1285 = vmatprep.subr.mxu0 %v287
    %1286 = vmatpush1.msra.mxu0 %v286
    %1287 = vmatprep.subr.mxu0 0.0
    %1288 = vmatpush1.msra.mxu0 0.0
    %1289 = vmatprep.subr.mxu0 0.0
    %1290 = vmatpush1.msra.mxu0 0.0
    %1291 = vmatprep.subr.mxu0 0.0
    %1292 = vmatpush1.msra.mxu0 0.0
    %1293 = vmatprep.subr.mxu0 0.0
    %1294 = vmatpush1.msra.mxu0 0.0
    %1295 = vmatprep.subr.mxu0 0.0
    %1296 = vmatpush1.msra.mxu0 0.0
    %1297 = vmatprep.subr.mxu0 0.0
    %1298 = vmatpush1.msra.mxu0 0.0
    %1299 = vmatprep.subr.mxu0 0.0
    %1300 = vmatpush1.msra.mxu0 0.0
    %1301 = vmatprep.subr.mxu0 0.0
    %1302 = vmatpush1.msra.mxu0 0.0
    %1303 = vmatprep.subr.mxu0 0.0
    %1304 = vmatpush1.msra.mxu0 0.0
    %1305 = vmatprep.subr.mxu0 0.0
    %1306 = vmatpush1.msra.mxu0 0.0
    %1307 = vmatprep.subr.mxu0 0.0
    %1308 = vmatpush1.msra.mxu0 0.0
    %1309 = vmatprep.subr.mxu0 0.0
    %1310 = vmatpush1.msra.mxu0 0.0
    %1311 = vmatprep.subr.mxu0 0.0
    %1312 = vmatpush1.msra.mxu0 0.0
    %1313 = vmatprep.subr.mxu0 0.0
    %1314 = vmatpush1.msra.mxu0 0.0
    %1315 = vmatprep.subr.mxu0 0.0
    %1316 = vmatpush1.msra.mxu0 0.0
    %1317 = vmatprep.subr.mxu0 0.0
    %1318 = vmatpush1.msra.mxu0 0.0
    %1319 = vmatprep.subr.mxu0 0.0
    %1320 = vmatpush1.msra.mxu0 0.0
    %1321 = vmatprep.subr.mxu0 0.0
    %1322 = vmatpush1.msra.mxu0 0.0
    %1323 = vmatprep.subr.mxu0 0.0
    %1324 = vmatpush1.msra.mxu0 0.0
    %1325 = vmatprep.subr.mxu0 0.0
    %1326 = vmatpush1.msra.mxu0 0.0
    %1327 = vmatprep.subr.mxu0 0.0
    %1328 = vmatpush1.msra.mxu0 0.0
    %1329 = vmatprep.subr.mxu0 0.0
    %1330 = vmatpush1.msra.mxu0 0.0
    %1331 = vmatprep.subr.mxu0 0.0
    %1332 = vmatpush1.msra.mxu0 0.0
    %1333 = vmatprep.subr.mxu0 0.0
    %1334 = vmatpush1.msra.mxu0 0.0
    %1335 = vmatprep.subr.mxu0 0.0
    %1336 = vmatpush1.msra.mxu0 0.0
    %1337 = vmatprep.subr.mxu0 0.0
    %1338 = vmatpush1.msra.mxu0 0.0
    %1339 = vmatprep.subr.mxu0 0.0
    %1340 = vmatpush1.msra.mxu0 0.0
    %1341 = vmatprep.subr.mxu0 0.0
    %1342 = vmatpush1.msra.mxu0 0.0
    %1343 = vmatprep.mubr.f32.mxu0 0.0
    %1344 = vmatmul.mubr.f32.gmra.mrb[0].mxu0 %v1275
    %v1345 = vpop.f32.mrb[0].mxu0
    %v1346 = vadd.f32 0.0, %v1345
    %v1347 = vpop.f32.mrb[0].mxu0
    %1348 = vmatprep.mubr.f32.mxu0 0.0
    %1349 = vmatmul.mubr.f32.gmra.mrb[0].mxu0 %v1277
    %v1350 = vpop.f32.mrb[0].mxu0
    %v1351 = vpop.f32.mrb[0].mxu0
    %v1352 = vadd.f32 0.0, %v1351
    %1353 = vdwg.mxu0
    %v1354 = vadd.f32 %v276, %v1346
    %v1355 = vadd.f32 %v236, %v1352
    %v1356 = vxor.u32 %v1354, 2147483648
    %v1357 = vxor.u32 %v1355, 2147483648
    %v1358 = vmul.f32 %v1356, 1.442695
    %v1359 = vpow.pop %v1358
    %v1360 = vmul.f32 %v1357, 1.442695
    %v1361 = vpow.pop %v1360
    %v1362 = vadd.f32 %v1359, 1.0
    %v1363 = vadd.f32 %v1361, 1.0
    %v1364 = vrcp.pop %v1362
    %v1365 = vmul.f32 1.0, %v1364
    %v1366 = vrcp.pop %v1363
    %v1367 = vmul.f32 1.0, %v1366
    %v1368 = vtanh.pop %v1354
    %v1369 = vtanh.pop %v1355
    %v1370 = vmul.f32 %v1365, %v1249
    %v1371 = vmul.f32 %v1367, %v1250
    %1374 = vrot.lane.b32.xlu0 %v1368, 32
    %v1375 = vpop.permute.xlu0 %1374
    %1376 = vrot.lane.b32.xlu0 %v1369, 32
    %v1377 = vpop.permute.xlu0 %1376
    %v1380 = vmul.f32 %v1365, %v1375
    %v1381 = vmul.f32 %v1367, %v1377
    %1384 = vrot.lane.b32.xlu0 %v1380, 32
    %v1385 = vpop.permute.xlu0 %1384
    %1386 = vrot.lane.b32.xlu0 %v1381, 32
    %v1387 = vpop.permute.xlu0 %1386
    %v1390 = vadd.f32 %v1370, %v1385
    %v1391 = vadd.f32 %v1371, %v1387
    %v1392 = vtanh.pop %v1390
    %v1393 = vtanh.pop %v1391
    %1396 = vrot.lane.b32.xlu0 %v1392, 32
    %v1397 = vpop.permute.xlu0 %1396
    %1398 = vrot.lane.b32.xlu0 %v1393, 32
    %v1399 = vpop.permute.xlu0 %1398
    %v1402 = vmul.f32 %v1365, %v1397
    %v1403 = vmul.f32 %v1367, %v1399
    %1405 = vrot.lane.b32.xlu0 %v1402, 64
    %v1406 = vpop.permute.xlu0 %1405
    %1408 = vst.msk [vmem:[#allocation3 + $0x38] sm:$0xff] %vm142, %v1406
    %1410 = vrot.lane.b32.xlu0 %v1403, 96
    %v1411 = vpop.permute.xlu0 %1410
    %1413 = vst.msk [vmem:[#allocation3] sm:$0xff] %vm425, %v1411
    %v1414 = vld [vmem:[#allocation3] sm:$0xff]
    %v1415 = vld [vmem:[#allocation3 + $0x8] sm:$0xff]
    %v1416 = vld [vmem:[#allocation3 + $0x10] sm:$0xff]
    %v1417 = vld [vmem:[#allocation3 + $0x18] sm:$0xff]
    %v1418 = vld [vmem:[#allocation3 + $0x20] sm:$0xff]
    %v1419 = vld [vmem:[#allocation3 + $0x28] sm:$0xff]
    %v1420 = vld [vmem:[#allocation3 + $0x30] sm:$0xff]
    %v1421 = vld [vmem:[#allocation3 + $0x38] sm:$0xff]
    %v1422 = vld [vmem:[#allocation9] sm:$0xff]
    %v1423 = vld [vmem:[#allocation9 + $0x8] sm:$0xff]
    %v1424 = vld [vmem:[#allocation9 + $0x10] sm:$0xff]
    %v1425 = vld [vmem:[#allocation9 + $0x18] sm:$0xff]
    %v1426 = vld [vmem:[#allocation9 + $0x20] sm:$0xff]
    %v1427 = vld [vmem:[#allocation9 + $0x28] sm:$0xff]
    %v1428 = vld [vmem:[#allocation9 + $0x30] sm:$0xff]
    %v1429 = vld [vmem:[#allocation9 + $0x38] sm:$0xff]
    %v1430 = vld [vmem:[#allocation9 + $0x40] sm:$0xff]
    %v1431 = vld [vmem:[#allocation9 + $0x48] sm:$0xff]
    %v1432 = vld [vmem:[#allocation9 + $0x50] sm:$0xff]
    %v1433 = vld [vmem:[#allocation9 + $0x58] sm:$0xff]
    %v1434 = vld [vmem:[#allocation9 + $0x60] sm:$0xff]
    %v1435 = vld [vmem:[#allocation9 + $0x68] sm:$0xff]
    %v1436 = vld [vmem:[#allocation9 + $0x70] sm:$0xff]
    %v1437 = vld [vmem:[#allocation9 + $0x78] sm:$0xff]
    %v1438 = vld [vmem:[%s6] sm:$0x3]
    %v1440 = vlaneseq
    %v1441 = vshrl.u32 %v1440, 7
    %v1442 = vsub.s32 0, %v1441
    %v1443 = vrot.slane %v1438, %v1442
    %v1444 = vlaneseq
    %v1445 = vshrl.u32 %v1444, 7
    %v1446 = vsub.s32 1, %v1445
    %v1447 = vrot.slane %v1438, %v1446
    %vm1450 = vcmask 523264
    %v1452 = vsel %vm1450, %v1414, 0
    %v1455 = vsel %vm1450, %v1415, 0
    %v1458 = vsel %vm1450, %v1416, 0
    %v1461 = vsel %vm1450, %v1417, 0
    %v1464 = vsel %vm1450, %v1418, 0
    %v1467 = vsel %vm1450, %v1419, 0
    %v1470 = vsel %vm1450, %v1420, 0
    %v1473 = vsel %vm1450, %v1421, 0
    %1475 = vmatprep.subr.mxu0 %v1423
    %1476 = vmatpush1.msra.mxu0 %v1422
    %1477 = vmatprep.subr.mxu0 %v1425
    %1478 = vmatpush1.msra.mxu0 %v1424
    %1479 = vmatprep.subr.mxu0 %v1427
    %1480 = vmatpush1.msra.mxu0 %v1426
    %1481 = vmatprep.subr.mxu0 %v1429
    %1482 = vmatpush1.msra.mxu0 %v1428
    %1483 = vmatprep.subr.mxu0 %v1431
    %1484 = vmatpush1.msra.mxu0 %v1430
    %1485 = vmatprep.subr.mxu0 %v1433
    %1486 = vmatpush1.msra.mxu0 %v1432
    %1487 = vmatprep.subr.mxu0 %v1435
    %1488 = vmatpush1.msra.mxu0 %v1434
    %1489 = vmatprep.subr.mxu0 %v1437
    %1490 = vmatpush1.msra.mxu0 %v1436
    %1491 = vmatprep.subr.mxu0 0.0
    %1492 = vmatpush1.msra.mxu0 0.0
    %1493 = vmatprep.subr.mxu0 0.0
    %1494 = vmatpush1.msra.mxu0 0.0
    %1495 = vmatprep.subr.mxu0 0.0
    %1496 = vmatpush1.msra.mxu0 0.0
    %1497 = vmatprep.subr.mxu0 0.0
    %1498 = vmatpush1.msra.mxu0 0.0
    %1499 = vmatprep.subr.mxu0 0.0
    %1500 = vmatpush1.msra.mxu0 0.0
    %1501 = vmatprep.subr.mxu0 0.0
    %1502 = vmatpush1.msra.mxu0 0.0
    %1503 = vmatprep.subr.mxu0 0.0
    %1504 = vmatpush1.msra.mxu0 0.0
    %1505 = vmatprep.subr.mxu0 0.0
    %1506 = vmatpush1.msra.mxu0 0.0
    %1507 = vmatprep.subr.mxu0 0.0
    %1508 = vmatpush1.msra.mxu0 0.0
    %1509 = vmatprep.subr.mxu0 0.0
    %1510 = vmatpush1.msra.mxu0 0.0
    %1511 = vmatprep.subr.mxu0 0.0
    %1512 = vmatpush1.msra.mxu0 0.0
    %1513 = vmatprep.subr.mxu0 0.0
    %1514 = vmatpush1.msra.mxu0 0.0
    %1515 = vmatprep.subr.mxu0 0.0
    %1516 = vmatpush1.msra.mxu0 0.0
    %1517 = vmatprep.subr.mxu0 0.0
    %1518 = vmatpush1.msra.mxu0 0.0
    %1519 = vmatprep.subr.mxu0 0.0
    %1520 = vmatpush1.msra.mxu0 0.0
    %1521 = vmatprep.subr.mxu0 0.0
    %1522 = vmatpush1.msra.mxu0 0.0
    %1523 = vmatprep.subr.mxu0 0.0
    %1524 = vmatpush1.msra.mxu0 0.0
    %1525 = vmatprep.subr.mxu0 0.0
    %1526 = vmatpush1.msra.mxu0 0.0
    %1527 = vmatprep.subr.mxu0 0.0
    %1528 = vmatpush1.msra.mxu0 0.0
    %1529 = vmatprep.subr.mxu0 0.0
    %1530 = vmatpush1.msra.mxu0 0.0
    %1531 = vmatprep.subr.mxu0 0.0
    %1532 = vmatpush1.msra.mxu0 0.0
    %1533 = vmatprep.subr.mxu0 0.0
    %1534 = vmatpush1.msra.mxu0 0.0
    %1535 = vmatprep.subr.mxu0 0.0
    %1536 = vmatpush1.msra.mxu0 0.0
    %1537 = vmatprep.subr.mxu0 0.0
    %1538 = vmatpush1.msra.mxu0 0.0
    %1539 = vmatprep.mubr.f32.mxu0 0.0
    %1540 = vmatmul.mubr.f32.gmra.mrb[0].mxu0 %v1452
    %v1541 = vpop.f32.mrb[0].mxu0
    %v1542 = vadd.f32 %v1443, %v1541
    %v1543 = vpop.f32.mrb[0].mxu0
    %v1544 = vadd.f32 %v1447, %v1543
    %1545 = vmatprep.mubr.f32.mxu0 0.0
    %1546 = vmatmul.mubr.f32.gmra.mrb[0].mxu0 %v1455
    %v1547 = vpop.f32.mrb[0].mxu0
    %v1548 = vadd.f32 %v1443, %v1547
    %v1549 = vpop.f32.mrb[0].mxu0
    %v1550 = vadd.f32 %v1447, %v1549
    %1551 = vmatprep.mubr.f32.mxu0 0.0
    %1552 = vmatmul.mubr.f32.gmra.mrb[0].mxu0 %v1458
    %v1553 = vpop.f32.mrb[0].mxu0
    %v1554 = vadd.f32 %v1443, %v1553
    %v1555 = vpop.f32.mrb[0].mxu0
    %v1556 = vadd.f32 %v1447, %v1555
    %1557 = vmatprep.mubr.f32.mxu0 0.0
    %1558 = vmatmul.mubr.f32.gmra.mrb[0].mxu0 %v1461
    %v1559 = vpop.f32.mrb[0].mxu0
    %v1560 = vadd.f32 %v1443, %v1559
    %v1561 = vpop.f32.mrb[0].mxu0
    %v1562 = vadd.f32 %v1447, %v1561
    %1563 = vmatprep.mubr.f32.mxu0 0.0
    %1564 = vmatmul.mubr.f32.gmra.mrb[0].mxu0 %v1464
    %v1565 = vpop.f32.mrb[0].mxu0
    %v1566 = vadd.f32 %v1443, %v1565
    %v1567 = vpop.f32.mrb[0].mxu0
    %v1568 = vadd.f32 %v1447, %v1567
    %1569 = vmatprep.mubr.f32.mxu0 0.0
    %1570 = vmatmul.mubr.f32.gmra.mrb[0].mxu0 %v1467
    %v1571 = vpop.f32.mrb[0].mxu0
    %v1572 = vadd.f32 %v1443, %v1571
    %v1573 = vpop.f32.mrb[0].mxu0
    %v1574 = vadd.f32 %v1447, %v1573
    %1575 = vmatprep.mubr.f32.mxu0 0.0
    %1576 = vmatmul.mubr.f32.gmra.mrb[0].mxu0 %v1470
    %v1577 = vpop.f32.mrb[0].mxu0
    %v1578 = vadd.f32 %v1443, %v1577
    %v1579 = vpop.f32.mrb[0].mxu0
    %v1580 = vadd.f32 %v1447, %v1579
    %1581 = vmatprep.mubr.f32.mxu0 0.0
    %1582 = vmatmul.mubr.f32.gmra.mrb[0].mxu0 %v1473
    %v1583 = vpop.f32.mrb[0].mxu0
    %v1584 = vadd.f32 %v1443, %v1583
    %v1585 = vpop.f32.mrb[0].mxu0
    %v1586 = vadd.f32 %v1447, %v1585
    %1587 = vdwg.mxu0
    %v1588 = vld [vmem:[#allocation11] sm:$0xff]
    %v1589 = vld [vmem:[#allocation11 + $0x8] sm:$0xff]
    %v1590 = vld [vmem:[#allocation11 + $0x10] sm:$0xff]
    %v1591 = vld [vmem:[#allocation11 + $0x18] sm:$0xff]
    %v1592 = vld [vmem:[#allocation11 + $0x20] sm:$0xff]
    %v1593 = vld [vmem:[#allocation11 + $0x28] sm:$0xff]
    %v1594 = vld [vmem:[#allocation11 + $0x30] sm:$0xff]
    %v1595 = vld [vmem:[#allocation11 + $0x38] sm:$0xff]
    %1596 = vmatprep.subr.mxu0 %v1589
    %1597 = vmatpush1.msra.mxu0 %v1588
    %1598 = vmatprep.subr.mxu0 %v1591
    %1599 = vmatpush1.msra.mxu0 %v1590
    %1600 = vmatprep.subr.mxu0 %v1593
    %1601 = vmatpush1.msra.mxu0 %v1592
    %1602 = vmatprep.subr.mxu0 %v1595
    %1603 = vmatpush1.msra.mxu0 %v1594
    %1604 = vmatprep.subr.mxu0 0.0
    %1605 = vmatpush1.msra.mxu0 0.0
    %1606 = vmatprep.subr.mxu0 0.0
    %1607 = vmatpush1.msra.mxu0 0.0
    %1608 = vmatprep.subr.mxu0 0.0
    %1609 = vmatpush1.msra.mxu0 0.0
    %1610 = vmatprep.subr.mxu0 0.0
    %1611 = vmatpush1.msra.mxu0 0.0
    %1612 = vmatprep.subr.mxu0 0.0
    %1613 = vmatpush1.msra.mxu0 0.0
    %1614 = vmatprep.subr.mxu0 0.0
    %1615 = vmatpush1.msra.mxu0 0.0
    %1616 = vmatprep.subr.mxu0 0.0
    %1617 = vmatpush1.msra.mxu0 0.0
    %1618 = vmatprep.subr.mxu0 0.0
    %1619 = vmatpush1.msra.mxu0 0.0
    %1620 = vmatprep.subr.mxu0 0.0
    %1621 = vmatpush1.msra.mxu0 0.0
    %1622 = vmatprep.subr.mxu0 0.0
    %1623 = vmatpush1.msra.mxu0 0.0
    %1624 = vmatprep.subr.mxu0 0.0
    %1625 = vmatpush1.msra.mxu0 0.0
    %1626 = vmatprep.subr.mxu0 0.0
    %1627 = vmatpush1.msra.mxu0 0.0
    %1628 = vmatprep.subr.mxu0 0.0
    %1629 = vmatpush1.msra.mxu0 0.0
    %1630 = vmatprep.subr.mxu0 0.0
    %1631 = vmatpush1.msra.mxu0 0.0
    %1632 = vmatprep.subr.mxu0 0.0
    %1633 = vmatpush1.msra.mxu0 0.0
    %1634 = vmatprep.subr.mxu0 0.0
    %1635 = vmatpush1.msra.mxu0 0.0
    %1636 = vmatprep.subr.mxu0 0.0
    %1637 = vmatpush1.msra.mxu0 0.0
    %1638 = vmatprep.subr.mxu0 0.0
    %1639 = vmatpush1.msra.mxu0 0.0
    %1640 = vmatprep.subr.mxu0 0.0
    %1641 = vmatpush1.msra.mxu0 0.0
    %1642 = vmatprep.subr.mxu0 0.0
    %1643 = vmatpush1.msra.mxu0 0.0
    %1644 = vmatprep.subr.mxu0 0.0
    %1645 = vmatpush1.msra.mxu0 0.0
    %1646 = vmatprep.subr.mxu0 0.0
    %1647 = vmatpush1.msra.mxu0 0.0
    %1648 = vmatprep.subr.mxu0 0.0
    %1649 = vmatpush1.msra.mxu0 0.0
    %1650 = vmatprep.subr.mxu0 0.0
    %1651 = vmatpush1.msra.mxu0 0.0
    %1652 = vmatprep.subr.mxu0 0.0
    %1653 = vmatpush1.msra.mxu0 0.0
    %1654 = vmatprep.subr.mxu0 0.0
    %1655 = vmatpush1.msra.mxu0 0.0
    %1656 = vmatprep.subr.mxu0 0.0
    %1657 = vmatpush1.msra.mxu0 0.0
    %1658 = vmatprep.subr.mxu0 0.0
    %1659 = vmatpush1.msra.mxu0 0.0
    %1660 = vmatprep.mubr.f32.mxu0 0.0
    %1661 = vmatmul.mubr.f32.gmra.mrb[0].mxu0 %v289
    %v1662 = vpop.f32.mrb[0].mxu0
    %v1663 = vadd.f32 0.0, %v1662
    %v1664 = vpop.f32.mrb[0].mxu0
    %1665 = vmatprep.mubr.f32.mxu0 0.0
    %1666 = vmatmul.mubr.f32.gmra.mrb[0].mxu0 %v289
    %v1667 = vpop.f32.mrb[0].mxu0
    %v1668 = vpop.f32.mrb[0].mxu0
    %v1669 = vadd.f32 0.0, %v1668
    %1670 = vdwg.mxu0
    %v1671 = vadd.f32 %v1542, %v1663
    %v1672 = vadd.f32 %v1586, %v1669
    %v1673 = vxor.u32 %v1671, 2147483648
    %v1674 = vxor.u32 %v1672, 2147483648
    %v1675 = vmul.f32 %v1673, 1.442695
    %v1676 = vpow.pop %v1675
    %v1677 = vmul.f32 %v1674, 1.442695
    %v1678 = vpow.pop %v1677
    %v1679 = vadd.f32 %v1676, 1.0
    %v1680 = vadd.f32 %v1678, 1.0
    %v1681 = vrcp.pop %v1679
    %v1682 = vmul.f32 1.0, %v1681
    %v1683 = vrcp.pop %v1680
    %v1684 = vmul.f32 1.0, %v1683
    %v1685 = vtanh.pop %v1671
    %v1686 = vtanh.pop %v1672
    %v1687 = vmul.f32 %v1682, 0.0
    %v1688 = vmul.f32 %v1684, 0.0
    %1691 = vrot.lane.b32.xlu0 %v1685, 32
    %v1692 = vpop.permute.xlu0 %1691
    %1693 = vrot.lane.b32.xlu0 %v1686, 32
    %v1694 = vpop.permute.xlu0 %1693
    %v1697 = vmul.f32 %v1682, %v1692
    %v1698 = vmul.f32 %v1684, %v1694
    %1701 = vrot.lane.b32.xlu0 %v1697, 32
    %v1702 = vpop.permute.xlu0 %1701
    %1703 = vrot.lane.b32.xlu0 %v1698, 32
    %v1704 = vpop.permute.xlu0 %1703
    %v1707 = vadd.f32 %v1687, %v1702
    %v1708 = vadd.f32 %v1688, %v1704
    %v1709 = vtanh.pop %v1707
    %v1710 = vtanh.pop %v1708
    %1713 = vrot.lane.b32.xlu0 %v1709, 32
    %v1714 = vpop.permute.xlu0 %1713
    %1715 = vrot.lane.b32.xlu0 %v1710, 32
    %v1716 = vpop.permute.xlu0 %1715
    %v1719 = vmul.f32 %v1682, %v1714
    %v1720 = vmul.f32 %v1684, %v1716
    %1722 = vrot.lane.b32.xlu0 %v1719, 64
    %v1723 = vpop.permute.xlu0 %1722
    %1725 = vst.msk [vmem:[#allocation4] sm:$0xff] %vm142, %v1723
    %1727 = vrot.lane.b32.xlu0 %v1720, 32
    %v1728 = vpop.permute.xlu0 %1727
    %vm1730 = vcmask 1048320
    %1731 = vst.msk [vmem:[#allocation4 + $0x18] sm:$0xff] %vm1730, %v1728
    %1732 = vrot.lane.b32.xlu0 %v1720, 64
    %v1733 = vpop.permute.xlu0 %1732
    %v1734 = vsel %vm142, %v1723, 0
    %v1736 = vsel %vm142, %v1733, 0
    %1738 = vmatprep.subr.mxu0 %v1589
    %1739 = vmatpush1.msra.mxu0 %v1588
    %1740 = vmatprep.subr.mxu0 %v1591
    %1741 = vmatpush1.msra.mxu0 %v1590
    %1742 = vmatprep.subr.mxu0 %v1593
    %1743 = vmatpush1.msra.mxu0 %v1592
    %1744 = vmatprep.subr.mxu0 %v1595
    %1745 = vmatpush1.msra.mxu0 %v1594
    %1746 = vmatprep.subr.mxu0 0.0
    %1747 = vmatpush1.msra.mxu0 0.0
    %1748 = vmatprep.subr.mxu0 0.0
    %1749 = vmatpush1.msra.mxu0 0.0
    %1750 = vmatprep.subr.mxu0 0.0
    %1751 = vmatpush1.msra.mxu0 0.0
    %1752 = vmatprep.subr.mxu0 0.0
    %1753 = vmatpush1.msra.mxu0 0.0
    %1754 = vmatprep.subr.mxu0 0.0
    %1755 = vmatpush1.msra.mxu0 0.0
    %1756 = vmatprep.subr.mxu0 0.0
    %1757 = vmatpush1.msra.mxu0 0.0
    %1758 = vmatprep.subr.mxu0 0.0
    %1759 = vmatpush1.msra.mxu0 0.0
    %1760 = vmatprep.subr.mxu0 0.0
    %1761 = vmatpush1.msra.mxu0 0.0
    %1762 = vmatprep.subr.mxu0 0.0
    %1763 = vmatpush1.msra.mxu0 0.0
    %1764 = vmatprep.subr.mxu0 0.0
    %1765 = vmatpush1.msra.mxu0 0.0
    %1766 = vmatprep.subr.mxu0 0.0
    %1767 = vmatpush1.msra.mxu0 0.0
    %1768 = vmatprep.subr.mxu0 0.0
    %1769 = vmatpush1.msra.mxu0 0.0
    %1770 = vmatprep.subr.mxu0 0.0
    %1771 = vmatpush1.msra.mxu0 0.0
    %1772 = vmatprep.subr.mxu0 0.0
    %1773 = vmatpush1.msra.mxu0 0.0
    %1774 = vmatprep.subr.mxu0 0.0
    %1775 = vmatpush1.msra.mxu0 0.0
    %1776 = vmatprep.subr.mxu0 0.0
    %1777 = vmatpush1.msra.mxu0 0.0
    %1778 = vmatprep.subr.mxu0 0.0
    %1779 = vmatpush1.msra.mxu0 0.0
    %1780 = vmatprep.subr.mxu0 0.0
    %1781 = vmatpush1.msra.mxu0 0.0
    %1782 = vmatprep.subr.mxu0 0.0
    %1783 = vmatpush1.msra.mxu0 0.0
    %1784 = vmatprep.subr.mxu0 0.0
    %1785 = vmatpush1.msra.mxu0 0.0
    %1786 = vmatprep.subr.mxu0 0.0
    %1787 = vmatpush1.msra.mxu0 0.0
    %1788 = vmatprep.subr.mxu0 0.0
    %1789 = vmatpush1.msra.mxu0 0.0
    %1790 = vmatprep.subr.mxu0 0.0
    %1791 = vmatpush1.msra.mxu0 0.0
    %1792 = vmatprep.subr.mxu0 0.0
    %1793 = vmatpush1.msra.mxu0 0.0
    %1794 = vmatprep.subr.mxu0 0.0
    %1795 = vmatpush1.msra.mxu0 0.0
    %1796 = vmatprep.subr.mxu0 0.0
    %1797 = vmatpush1.msra.mxu0 0.0
    %1798 = vmatprep.subr.mxu0 0.0
    %1799 = vmatpush1.msra.mxu0 0.0
    %1800 = vmatprep.subr.mxu0 0.0
    %1801 = vmatpush1.msra.mxu0 0.0
    %1802 = vmatprep.mubr.f32.mxu0 0.0
    %1803 = vmatmul.mubr.f32.gmra.mrb[0].mxu0 %v1734
    %v1804 = vpop.f32.mrb[0].mxu0
    %v1805 = vadd.f32 0.0, %v1804
    %v1806 = vpop.f32.mrb[0].mxu0
    %1807 = vmatprep.mubr.f32.mxu0 0.0
    %1808 = vmatmul.mubr.f32.gmra.mrb[0].mxu0 %v1736
    %v1809 = vpop.f32.mrb[0].mxu0
    %v1810 = vpop.f32.mrb[0].mxu0
    %v1811 = vadd.f32 0.0, %v1810
    %1812 = vdwg.mxu0
    %v1813 = vadd.f32 %v1548, %v1805
    %v1814 = vadd.f32 %v1580, %v1811
    %v1815 = vxor.u32 %v1813, 2147483648
    %v1816 = vxor.u32 %v1814, 2147483648
    %v1817 = vmul.f32 %v1815, 1.442695
    %v1818 = vpow.pop %v1817
    %v1819 = vmul.f32 %v1816, 1.442695
    %v1820 = vpow.pop %v1819
    %v1821 = vadd.f32 %v1818, 1.0
    %v1822 = vadd.f32 %v1820, 1.0
    %v1823 = vrcp.pop %v1821
    %v1824 = vmul.f32 1.0, %v1823
    %v1825 = vrcp.pop %v1822
    %v1826 = vmul.f32 1.0, %v1825
    %v1827 = vtanh.pop %v1813
    %v1828 = vtanh.pop %v1814
    %v1829 = vmul.f32 %v1824, %v1707
    %v1830 = vmul.f32 %v1826, %v1708
    %1833 = vrot.lane.b32.xlu0 %v1827, 32
    %v1834 = vpop.permute.xlu0 %1833
    %1835 = vrot.lane.b32.xlu0 %v1828, 32
    %v1836 = vpop.permute.xlu0 %1835
    %v1839 = vmul.f32 %v1824, %v1834
    %v1840 = vmul.f32 %v1826, %v1836
    %1843 = vrot.lane.b32.xlu0 %v1839, 32
    %v1844 = vpop.permute.xlu0 %1843
    %1845 = vrot.lane.b32.xlu0 %v1840, 32
    %v1846 = vpop.permute.xlu0 %1845
    %v1849 = vadd.f32 %v1829, %v1844
    %v1850 = vadd.f32 %v1830, %v1846
    %v1851 = vtanh.pop %v1849
    %v1852 = vtanh.pop %v1850
    %1855 = vrot.lane.b32.xlu0 %v1851, 32
    %v1856 = vpop.permute.xlu0 %1855
    %1857 = vrot.lane.b32.xlu0 %v1852, 32
    %v1858 = vpop.permute.xlu0 %1857
    %v1861 = vmul.f32 %v1824, %v1856
    %v1862 = vmul.f32 %v1826, %v1858
    %vm1863 = vcmask 785920
    %1864 = vst.msk [vmem:[#allocation4] sm:$0xff] %vm1863, %v1861
    %1866 = vrot.lane.b32.xlu0 %v1862, 96
    %v1867 = vpop.permute.xlu0 %1866
    %1869 = vst.msk [vmem:[#allocation4 + $0x18] sm:$0xff] %vm425, %v1867
    %1871 = vrot.lane.b32.xlu0 %v1861, 64
    %v1872 = vpop.permute.xlu0 %1871
    %1873 = vrot.lane.b32.xlu0 %v1862, 64
    %v1874 = vpop.permute.xlu0 %1873
    %v1875 = vsel %vm142, %v1872, 0
    %v1877 = vsel %vm142, %v1874, 0
    %1879 = vmatprep.subr.mxu0 %v1589
    %1880 = vmatpush1.msra.mxu0 %v1588
    %1881 = vmatprep.subr.mxu0 %v1591
    %1882 = vmatpush1.msra.mxu0 %v1590
    %1883 = vmatprep.subr.mxu0 %v1593
    %1884 = vmatpush1.msra.mxu0 %v1592
    %1885 = vmatprep.subr.mxu0 %v1595
    %1886 = vmatpush1.msra.mxu0 %v1594
    %1887 = vmatprep.subr.mxu0 0.0
    %1888 = vmatpush1.msra.mxu0 0.0
    %1889 = vmatprep.subr.mxu0 0.0
    %1890 = vmatpush1.msra.mxu0 0.0
    %1891 = vmatprep.subr.mxu0 0.0
    %1892 = vmatpush1.msra.mxu0 0.0
    %1893 = vmatprep.subr.mxu0 0.0
    %1894 = vmatpush1.msra.mxu0 0.0
    %1895 = vmatprep.subr.mxu0 0.0
    %1896 = vmatpush1.msra.mxu0 0.0
    %1897 = vmatprep.subr.mxu0 0.0
    %1898 = vmatpush1.msra.mxu0 0.0
    %1899 = vmatprep.subr.mxu0 0.0
    %1900 = vmatpush1.msra.mxu0 0.0
    %1901 = vmatprep.subr.mxu0 0.0
    %1902 = vmatpush1.msra.mxu0 0.0
    %1903 = vmatprep.subr.mxu0 0.0
    %1904 = vmatpush1.msra.mxu0 0.0
    %1905 = vmatprep.subr.mxu0 0.0
    %1906 = vmatpush1.msra.mxu0 0.0
    %1907 = vmatprep.subr.mxu0 0.0
    %1908 = vmatpush1.msra.mxu0 0.0
    %1909 = vmatprep.subr.mxu0 0.0
    %1910 = vmatpush1.msra.mxu0 0.0
    %1911 = vmatprep.subr.mxu0 0.0
    %1912 = vmatpush1.msra.mxu0 0.0
    %1913 = vmatprep.subr.mxu0 0.0
    %1914 = vmatpush1.msra.mxu0 0.0
    %1915 = vmatprep.subr.mxu0 0.0
    %1916 = vmatpush1.msra.mxu0 0.0
    %1917 = vmatprep.subr.mxu0 0.0
    %1918 = vmatpush1.msra.mxu0 0.0
    %1919 = vmatprep.subr.mxu0 0.0
    %1920 = vmatpush1.msra.mxu0 0.0
    %1921 = vmatprep.subr.mxu0 0.0
    %1922 = vmatpush1.msra.mxu0 0.0
    %1923 = vmatprep.subr.mxu0 0.0
    %1924 = vmatpush1.msra.mxu0 0.0
    %1925 = vmatprep.subr.mxu0 0.0
    %1926 = vmatpush1.msra.mxu0 0.0
    %1927 = vmatprep.subr.mxu0 0.0
    %1928 = vmatpush1.msra.mxu0 0.0
    %1929 = vmatprep.subr.mxu0 0.0
    %1930 = vmatpush1.msra.mxu0 0.0
    %1931 = vmatprep.subr.mxu0 0.0
    %1932 = vmatpush1.msra.mxu0 0.0
    %1933 = vmatprep.subr.mxu0 0.0
    %1934 = vmatpush1.msra.mxu0 0.0
    %1935 = vmatprep.subr.mxu0 0.0
    %1936 = vmatpush1.msra.mxu0 0.0
    %1937 = vmatprep.subr.mxu0 0.0
    %1938 = vmatpush1.msra.mxu0 0.0
    %1939 = vmatprep.subr.mxu0 0.0
    %1940 = vmatpush1.msra.mxu0 0.0
    %1941 = vmatprep.subr.mxu0 0.0
    %1942 = vmatpush1.msra.mxu0 0.0
    %1943 = vmatprep.mubr.f32.mxu0 0.0
    %1944 = vmatmul.mubr.f32.gmra.mrb[0].mxu0 %v1875
    %v1945 = vpop.f32.mrb[0].mxu0
    %v1946 = vadd.f32 0.0, %v1945
    %v1947 = vpop.f32.mrb[0].mxu0
    %1948 = vmatprep.mubr.f32.mxu0 0.0
    %1949 = vmatmul.mubr.f32.gmra.mrb[0].mxu0 %v1877
    %v1950 = vpop.f32.mrb[0].mxu0
    %v1951 = vpop.f32.mrb[0].mxu0
    %v1952 = vadd.f32 0.0, %v1951
    %1953 = vdwg.mxu0
    %v1954 = vadd.f32 %v1554, %v1946
    %v1955 = vadd.f32 %v1574, %v1952
    %v1956 = vxor.u32 %v1954, 2147483648
    %v1957 = vxor.u32 %v1955, 2147483648
    %v1958 = vmul.f32 %v1956, 1.442695
    %v1959 = vpow.pop %v1958
    %v1960 = vmul.f32 %v1957, 1.442695
    %v1961 = vpow.pop %v1960
    %v1962 = vadd.f32 %v1959, 1.0
    %v1963 = vadd.f32 %v1961, 1.0
    %v1964 = vrcp.pop %v1962
    %v1965 = vmul.f32 1.0, %v1964
    %v1966 = vrcp.pop %v1963
    %v1967 = vmul.f32 1.0, %v1966
    %v1968 = vtanh.pop %v1954
    %v1969 = vtanh.pop %v1955
    %v1970 = vmul.f32 %v1965, %v1849
    %v1971 = vmul.f32 %v1967, %v1850
    %1974 = vrot.lane.b32.xlu0 %v1968, 32
    %v1975 = vpop.permute.xlu0 %1974
    %1976 = vrot.lane.b32.xlu0 %v1969, 32
    %v1977 = vpop.permute.xlu0 %1976
    %v1980 = vmul.f32 %v1965, %v1975
    %v1981 = vmul.f32 %v1967, %v1977
    %1984 = vrot.lane.b32.xlu0 %v1980, 32
    %v1985 = vpop.permute.xlu0 %1984
    %1986 = vrot.lane.b32.xlu0 %v1981, 32
    %v1987 = vpop.permute.xlu0 %1986
    %v1990 = vadd.f32 %v1970, %v1985
    %v1991 = vadd.f32 %v1971, %v1987
    %v1992 = vtanh.pop %v1990
    %v1993 = vtanh.pop %v1991
    %1996 = vrot.lane.b32.xlu0 %v1992, 32
    %v1997 = vpop.permute.xlu0 %1996
    %1998 = vrot.lane.b32.xlu0 %v1993, 32
    %v1999 = vpop.permute.xlu0 %1998
    %v2002 = vmul.f32 %v1965, %v1997
    %v2003 = vmul.f32 %v1967, %v1999
    %2005 = vrot.lane.b32.xlu0 %v2002, 64
    %v2006 = vpop.permute.xlu0 %2005
    %2008 = vst.msk [vmem:[#allocation4 + $0x8] sm:$0xff] %vm142, %v2006
    %2010 = vrot.lane.b32.xlu0 %v2003, 32
    %v2011 = vpop.permute.xlu0 %2010
    %2013 = vst.msk [vmem:[#allocation4 + $0x10] sm:$0xff] %vm1730, %v2011
    %2014 = vrot.lane.b32.xlu0 %v2003, 64
    %v2015 = vpop.permute.xlu0 %2014
    %v2016 = vsel %vm142, %v2006, 0
    %v2018 = vsel %vm142, %v2015, 0
    %2020 = vmatprep.subr.mxu0 %v1589
    %2021 = vmatpush1.msra.mxu0 %v1588
    %2022 = vmatprep.subr.mxu0 %v1591
    %2023 = vmatpush1.msra.mxu0 %v1590
    %2024 = vmatprep.subr.mxu0 %v1593
    %2025 = vmatpush1.msra.mxu0 %v1592
    %2026 = vmatprep.subr.mxu0 %v1595
    %2027 = vmatpush1.msra.mxu0 %v1594
    %2028 = vmatprep.subr.mxu0 0.0
    %2029 = vmatpush1.msra.mxu0 0.0
    %2030 = vmatprep.subr.mxu0 0.0
    %2031 = vmatpush1.msra.mxu0 0.0
    %2032 = vmatprep.subr.mxu0 0.0
    %2033 = vmatpush1.msra.mxu0 0.0
    %2034 = vmatprep.subr.mxu0 0.0
    %2035 = vmatpush1.msra.mxu0 0.0
    %2036 = vmatprep.subr.mxu0 0.0
    %2037 = vmatpush1.msra.mxu0 0.0
    %2038 = vmatprep.subr.mxu0 0.0
    %2039 = vmatpush1.msra.mxu0 0.0
    %2040 = vmatprep.subr.mxu0 0.0
    %2041 = vmatpush1.msra.mxu0 0.0
    %2042 = vmatprep.subr.mxu0 0.0
    %2043 = vmatpush1.msra.mxu0 0.0
    %2044 = vmatprep.subr.mxu0 0.0
    %2045 = vmatpush1.msra.mxu0 0.0
    %2046 = vmatprep.subr.mxu0 0.0
    %2047 = vmatpush1.msra.mxu0 0.0
    %2048 = vmatprep.subr.mxu0 0.0
    %2049 = vmatpush1.msra.mxu0 0.0
    %2050 = vmatprep.subr.mxu0 0.0
    %2051 = vmatpush1.msra.mxu0 0.0
    %2052 = vmatprep.subr.mxu0 0.0
    %2053 = vmatpush1.msra.mxu0 0.0
    %2054 = vmatprep.subr.mxu0 0.0
    %2055 = vmatpush1.msra.mxu0 0.0
    %2056 = vmatprep.subr.mxu0 0.0
    %2057 = vmatpush1.msra.mxu0 0.0
    %2058 = vmatprep.subr.mxu0 0.0
    %2059 = vmatpush1.msra.mxu0 0.0
    %2060 = vmatprep.subr.mxu0 0.0
    %2061 = vmatpush1.msra.mxu0 0.0
    %2062 = vmatprep.subr.mxu0 0.0
    %2063 = vmatpush1.msra.mxu0 0.0
    %2064 = vmatprep.subr.mxu0 0.0
    %2065 = vmatpush1.msra.mxu0 0.0
    %2066 = vmatprep.subr.mxu0 0.0
    %2067 = vmatpush1.msra.mxu0 0.0
    %2068 = vmatprep.subr.mxu0 0.0
    %2069 = vmatpush1.msra.mxu0 0.0
    %2070 = vmatprep.subr.mxu0 0.0
    %2071 = vmatpush1.msra.mxu0 0.0
    %2072 = vmatprep.subr.mxu0 0.0
    %2073 = vmatpush1.msra.mxu0 0.0
    %2074 = vmatprep.subr.mxu0 0.0
    %2075 = vmatpush1.msra.mxu0 0.0
    %2076 = vmatprep.subr.mxu0 0.0
    %2077 = vmatpush1.msra.mxu0 0.0
    %2078 = vmatprep.subr.mxu0 0.0
    %2079 = vmatpush1.msra.mxu0 0.0
    %2080 = vmatprep.subr.mxu0 0.0
    %2081 = vmatpush1.msra.mxu0 0.0
    %2082 = vmatprep.subr.mxu0 0.0
    %2083 = vmatpush1.msra.mxu0 0.0
    %2084 = vmatprep.mubr.f32.mxu0 0.0
    %2085 = vmatmul.mubr.f32.gmra.mrb[0].mxu0 %v2016
    %v2086 = vpop.f32.mrb[0].mxu0
    %v2087 = vadd.f32 0.0, %v2086
    %v2088 = vpop.f32.mrb[0].mxu0
    %2089 = vmatprep.mubr.f32.mxu0 0.0
    %2090 = vmatmul.mubr.f32.gmra.mrb[0].mxu0 %v2018
    %v2091 = vpop.f32.mrb[0].mxu0
    %v2092 = vpop.f32.mrb[0].mxu0
    %v2093 = vadd.f32 0.0, %v2092
    %2094 = vdwg.mxu0
    %v2095 = vadd.f32 %v1560, %v2087
    %v2096 = vadd.f32 %v1568, %v2093
    %v2097 = vxor.u32 %v2095, 2147483648
    %v2098 = vxor.u32 %v2096, 2147483648
    %v2099 = vmul.f32 %v2097, 1.442695
    %v2100 = vpow.pop %v2099
    %v2101 = vmul.f32 %v2098, 1.442695
    %v2102 = vpow.pop %v2101
    %v2103 = vadd.f32 %v2100, 1.0
    %v2104 = vadd.f32 %v2102, 1.0
    %v2105 = vrcp.pop %v2103
    %v2106 = vmul.f32 1.0, %v2105
    %v2107 = vrcp.pop %v2104
    %v2108 = vmul.f32 1.0, %v2107
    %v2109 = vtanh.pop %v2095
    %v2110 = vtanh.pop %v2096
    %v2111 = vmul.f32 %v2106, %v1990
    %v2112 = vmul.f32 %v2108, %v1991
    %2115 = vrot.lane.b32.xlu0 %v2109, 32
    %v2116 = vpop.permute.xlu0 %2115
    %2117 = vrot.lane.b32.xlu0 %v2110, 32
    %v2118 = vpop.permute.xlu0 %2117
    %v2121 = vmul.f32 %v2106, %v2116
    %v2122 = vmul.f32 %v2108, %v2118
    %2125 = vrot.lane.b32.xlu0 %v2121, 32
    %v2126 = vpop.permute.xlu0 %2125
    %2127 = vrot.lane.b32.xlu0 %v2122, 32
    %v2128 = vpop.permute.xlu0 %2127
    %v2131 = vadd.f32 %v2111, %v2126
    %v2132 = vadd.f32 %v2112, %v2128
    %v2133 = vtanh.pop %v2131
    %v2134 = vtanh.pop %v2132
    %2137 = vrot.lane.b32.xlu0 %v2133, 32
    %v2138 = vpop.permute.xlu0 %2137
    %2139 = vrot.lane.b32.xlu0 %v2134, 32
    %v2140 = vpop.permute.xlu0 %2139
    %v2143 = vmul.f32 %v2106, %v2138
    %v2144 = vmul.f32 %v2108, %v2140
    %2145 = vst.msk [vmem:[#allocation4 + $0x8] sm:$0xff] %vm1863, %v2143
    %2147 = vrot.lane.b32.xlu0 %v2144, 96
    %v2148 = vpop.permute.xlu0 %2147
    %2150 = vst.msk [vmem:[#allocation4 + $0x10] sm:$0xff] %vm425, %v2148
    %2152 = vrot.lane.b32.xlu0 %v2143, 64
    %v2153 = vpop.permute.xlu0 %2152
    %2154 = vrot.lane.b32.xlu0 %v2144, 64
    %v2155 = vpop.permute.xlu0 %2154
    %v2156 = vsel %vm142, %v2153, 0
    %v2158 = vsel %vm142, %v2155, 0
    %2160 = vmatprep.subr.mxu0 %v1589
    %2161 = vmatpush1.msra.mxu0 %v1588
    %2162 = vmatprep.subr.mxu0 %v1591
    %2163 = vmatpush1.msra.mxu0 %v1590
    %2164 = vmatprep.subr.mxu0 %v1593
    %2165 = vmatpush1.msra.mxu0 %v1592
    %2166 = vmatprep.subr.mxu0 %v1595
    %2167 = vmatpush1.msra.mxu0 %v1594
    %2168 = vmatprep.subr.mxu0 0.0
    %2169 = vmatpush1.msra.mxu0 0.0
    %2170 = vmatprep.subr.mxu0 0.0
    %2171 = vmatpush1.msra.mxu0 0.0
    %2172 = vmatprep.subr.mxu0 0.0
    %2173 = vmatpush1.msra.mxu0 0.0
    %2174 = vmatprep.subr.mxu0 0.0
    %2175 = vmatpush1.msra.mxu0 0.0
    %2176 = vmatprep.subr.mxu0 0.0
    %2177 = vmatpush1.msra.mxu0 0.0
    %2178 = vmatprep.subr.mxu0 0.0
    %2179 = vmatpush1.msra.mxu0 0.0
    %2180 = vmatprep.subr.mxu0 0.0
    %2181 = vmatpush1.msra.mxu0 0.0
    %2182 = vmatprep.subr.mxu0 0.0
    %2183 = vmatpush1.msra.mxu0 0.0
    %2184 = vmatprep.subr.mxu0 0.0
    %2185 = vmatpush1.msra.mxu0 0.0
    %2186 = vmatprep.subr.mxu0 0.0
    %2187 = vmatpush1.msra.mxu0 0.0
    %2188 = vmatprep.subr.mxu0 0.0
    %2189 = vmatpush1.msra.mxu0 0.0
    %2190 = vmatprep.subr.mxu0 0.0
    %2191 = vmatpush1.msra.mxu0 0.0
    %2192 = vmatprep.subr.mxu0 0.0
    %2193 = vmatpush1.msra.mxu0 0.0
    %2194 = vmatprep.subr.mxu0 0.0
    %2195 = vmatpush1.msra.mxu0 0.0
    %2196 = vmatprep.subr.mxu0 0.0
    %2197 = vmatpush1.msra.mxu0 0.0
    %2198 = vmatprep.subr.mxu0 0.0
    %2199 = vmatpush1.msra.mxu0 0.0
    %2200 = vmatprep.subr.mxu0 0.0
    %2201 = vmatpush1.msra.mxu0 0.0
    %2202 = vmatprep.subr.mxu0 0.0
    %2203 = vmatpush1.msra.mxu0 0.0
    %2204 = vmatprep.subr.mxu0 0.0
    %2205 = vmatpush1.msra.mxu0 0.0
    %2206 = vmatprep.subr.mxu0 0.0
    %2207 = vmatpush1.msra.mxu0 0.0
    %2208 = vmatprep.subr.mxu0 0.0
    %2209 = vmatpush1.msra.mxu0 0.0
    %2210 = vmatprep.subr.mxu0 0.0
    %2211 = vmatpush1.msra.mxu0 0.0
    %2212 = vmatprep.subr.mxu0 0.0
    %2213 = vmatpush1.msra.mxu0 0.0
    %2214 = vmatprep.subr.mxu0 0.0
    %2215 = vmatpush1.msra.mxu0 0.0
    %2216 = vmatprep.subr.mxu0 0.0
    %2217 = vmatpush1.msra.mxu0 0.0
    %2218 = vmatprep.subr.mxu0 0.0
    %2219 = vmatpush1.msra.mxu0 0.0
    %2220 = vmatprep.subr.mxu0 0.0
    %2221 = vmatpush1.msra.mxu0 0.0
    %2222 = vmatprep.subr.mxu0 0.0
    %2223 = vmatpush1.msra.mxu0 0.0
    %2224 = vmatprep.mubr.f32.mxu0 0.0
    %2225 = vmatmul.mubr.f32.gmra.mrb[0].mxu0 %v2156
    %v2226 = vpop.f32.mrb[0].mxu0
    %v2227 = vadd.f32 0.0, %v2226
    %v2228 = vpop.f32.mrb[0].mxu0
    %2229 = vmatprep.mubr.f32.mxu0 0.0
    %2230 = vmatmul.mubr.f32.gmra.mrb[0].mxu0 %v2158
    %v2231 = vpop.f32.mrb[0].mxu0
    %v2232 = vpop.f32.mrb[0].mxu0
    %v2233 = vadd.f32 0.0, %v2232
    %2234 = vdwg.mxu0
    %v2235 = vadd.f32 %v1566, %v2227
    %v2236 = vadd.f32 %v1562, %v2233
    %v2237 = vxor.u32 %v2235, 2147483648
    %v2238 = vxor.u32 %v2236, 2147483648
    %v2239 = vmul.f32 %v2237, 1.442695
    %v2240 = vpow.pop %v2239
    %v2241 = vmul.f32 %v2238, 1.442695
    %v2242 = vpow.pop %v2241
    %v2243 = vadd.f32 %v2240, 1.0
    %v2244 = vadd.f32 %v2242, 1.0
    %v2245 = vrcp.pop %v2243
    %v2246 = vmul.f32 1.0, %v2245
    %v2247 = vrcp.pop %v2244
    %v2248 = vmul.f32 1.0, %v2247
    %v2249 = vtanh.pop %v2235
    %v2250 = vtanh.pop %v2236
    %v2251 = vmul.f32 %v2246, %v2131
    %v2252 = vmul.f32 %v2248, %v2132
    %2255 = vrot.lane.b32.xlu0 %v2249, 32
    %v2256 = vpop.permute.xlu0 %2255
    %2257 = vrot.lane.b32.xlu0 %v2250, 32
    %v2258 = vpop.permute.xlu0 %2257
    %v2261 = vmul.f32 %v2246, %v2256
    %v2262 = vmul.f32 %v2248, %v2258
    %2265 = vrot.lane.b32.xlu0 %v2261, 32
    %v2266 = vpop.permute.xlu0 %2265
    %2267 = vrot.lane.b32.xlu0 %v2262, 32
    %v2268 = vpop.permute.xlu0 %2267
    %v2271 = vadd.f32 %v2251, %v2266
    %v2272 = vadd.f32 %v2252, %v2268
    %v2273 = vtanh.pop %v2271
    %v2274 = vtanh.pop %v2272
    %2277 = vrot.lane.b32.xlu0 %v2273, 32
    %v2278 = vpop.permute.xlu0 %2277
    %2279 = vrot.lane.b32.xlu0 %v2274, 32
    %v2280 = vpop.permute.xlu0 %2279
    %v2283 = vmul.f32 %v2246, %v2278
    %v2284 = vmul.f32 %v2248, %v2280
    %2286 = vrot.lane.b32.xlu0 %v2283, 64
    %v2287 = vpop.permute.xlu0 %2286
    %2289 = vst.msk [vmem:[#allocation4 + $0x10] sm:$0xff] %vm142, %v2287
    %2291 = vrot.lane.b32.xlu0 %v2284, 32
    %v2292 = vpop.permute.xlu0 %2291
    %2294 = vst.msk [vmem:[#allocation4 + $0x8] sm:$0xff] %vm1730, %v2292
    %2295 = vrot.lane.b32.xlu0 %v2284, 64
    %v2296 = vpop.permute.xlu0 %2295
    %v2297 = vsel %vm142, %v2287, 0
    %v2299 = vsel %vm142, %v2296, 0
    %2301 = vmatprep.subr.mxu0 %v1589
    %2302 = vmatpush1.msra.mxu0 %v1588
    %2303 = vmatprep.subr.mxu0 %v1591
    %2304 = vmatpush1.msra.mxu0 %v1590
    %2305 = vmatprep.subr.mxu0 %v1593
    %2306 = vmatpush1.msra.mxu0 %v1592
    %2307 = vmatprep.subr.mxu0 %v1595
    %2308 = vmatpush1.msra.mxu0 %v1594
    %2309 = vmatprep.subr.mxu0 0.0
    %2310 = vmatpush1.msra.mxu0 0.0
    %2311 = vmatprep.subr.mxu0 0.0
    %2312 = vmatpush1.msra.mxu0 0.0
    %2313 = vmatprep.subr.mxu0 0.0
    %2314 = vmatpush1.msra.mxu0 0.0
    %2315 = vmatprep.subr.mxu0 0.0
    %2316 = vmatpush1.msra.mxu0 0.0
    %2317 = vmatprep.subr.mxu0 0.0
    %2318 = vmatpush1.msra.mxu0 0.0
    %2319 = vmatprep.subr.mxu0 0.0
    %2320 = vmatpush1.msra.mxu0 0.0
    %2321 = vmatprep.subr.mxu0 0.0
    %2322 = vmatpush1.msra.mxu0 0.0
    %2323 = vmatprep.subr.mxu0 0.0
    %2324 = vmatpush1.msra.mxu0 0.0
    %2325 = vmatprep.subr.mxu0 0.0
    %2326 = vmatpush1.msra.mxu0 0.0
    %2327 = vmatprep.subr.mxu0 0.0
    %2328 = vmatpush1.msra.mxu0 0.0
    %2329 = vmatprep.subr.mxu0 0.0
    %2330 = vmatpush1.msra.mxu0 0.0
    %2331 = vmatprep.subr.mxu0 0.0
    %2332 = vmatpush1.msra.mxu0 0.0
    %2333 = vmatprep.subr.mxu0 0.0
    %2334 = vmatpush1.msra.mxu0 0.0
    %2335 = vmatprep.subr.mxu0 0.0
    %2336 = vmatpush1.msra.mxu0 0.0
    %2337 = vmatprep.subr.mxu0 0.0
    %2338 = vmatpush1.msra.mxu0 0.0
    %2339 = vmatprep.subr.mxu0 0.0
    %2340 = vmatpush1.msra.mxu0 0.0
    %2341 = vmatprep.subr.mxu0 0.0
    %2342 = vmatpush1.msra.mxu0 0.0
    %2343 = vmatprep.subr.mxu0 0.0
    %2344 = vmatpush1.msra.mxu0 0.0
    %2345 = vmatprep.subr.mxu0 0.0
    %2346 = vmatpush1.msra.mxu0 0.0
    %2347 = vmatprep.subr.mxu0 0.0
    %2348 = vmatpush1.msra.mxu0 0.0
    %2349 = vmatprep.subr.mxu0 0.0
    %2350 = vmatpush1.msra.mxu0 0.0
    %2351 = vmatprep.subr.mxu0 0.0
    %2352 = vmatpush1.msra.mxu0 0.0
    %2353 = vmatprep.subr.mxu0 0.0
    %2354 = vmatpush1.msra.mxu0 0.0
    %2355 = vmatprep.subr.mxu0 0.0
    %2356 = vmatpush1.msra.mxu0 0.0
    %2357 = vmatprep.subr.mxu0 0.0
    %2358 = vmatpush1.msra.mxu0 0.0
    %2359 = vmatprep.subr.mxu0 0.0
    %2360 = vmatpush1.msra.mxu0 0.0
    %2361 = vmatprep.subr.mxu0 0.0
    %2362 = vmatpush1.msra.mxu0 0.0
    %2363 = vmatprep.subr.mxu0 0.0
    %2364 = vmatpush1.msra.mxu0 0.0
    %2365 = vmatprep.mubr.f32.mxu0 0.0
    %2366 = vmatmul.mubr.f32.gmra.mrb[0].mxu0 %v2297
    %v2367 = vpop.f32.mrb[0].mxu0
    %v2368 = vadd.f32 0.0, %v2367
    %v2369 = vpop.f32.mrb[0].mxu0
    %2370 = vmatprep.mubr.f32.mxu0 0.0
    %2371 = vmatmul.mubr.f32.gmra.mrb[0].mxu0 %v2299
    %v2372 = vpop.f32.mrb[0].mxu0
    %v2373 = vpop.f32.mrb[0].mxu0
    %v2374 = vadd.f32 0.0, %v2373
    %2375 = vdwg.mxu0
    %v2376 = vadd.f32 %v1572, %v2368
    %v2377 = vadd.f32 %v1556, %v2374
    %v2378 = vxor.u32 %v2376, 2147483648
    %v2379 = vxor.u32 %v2377, 2147483648
    %v2380 = vmul.f32 %v2378, 1.442695
    %v2381 = vpow.pop %v2380
    %v2382 = vmul.f32 %v2379, 1.442695
    %v2383 = vpow.pop %v2382
    %v2384 = vadd.f32 %v2381, 1.0
    %v2385 = vadd.f32 %v2383, 1.0
    %v2386 = vrcp.pop %v2384
    %v2387 = vmul.f32 1.0, %v2386
    %v2388 = vrcp.pop %v2385
    %v2389 = vmul.f32 1.0, %v2388
    %v2390 = vtanh.pop %v2376
    %v2391 = vtanh.pop %v2377
    %v2392 = vmul.f32 %v2387, %v2271
    %v2393 = vmul.f32 %v2389, %v2272
    %2396 = vrot.lane.b32.xlu0 %v2390, 32
    %v2397 = vpop.permute.xlu0 %2396
    %2398 = vrot.lane.b32.xlu0 %v2391, 32
    %v2399 = vpop.permute.xlu0 %2398
    %v2402 = vmul.f32 %v2387, %v2397
    %v2403 = vmul.f32 %v2389, %v2399
    %2406 = vrot.lane.b32.xlu0 %v2402, 32
    %v2407 = vpop.permute.xlu0 %2406
    %2408 = vrot.lane.b32.xlu0 %v2403, 32
    %v2409 = vpop.permute.xlu0 %2408
    %v2412 = vadd.f32 %v2392, %v2407
    %v2413 = vadd.f32 %v2393, %v2409
    %v2414 = vtanh.pop %v2412
    %v2415 = vtanh.pop %v2413
    %2418 = vrot.lane.b32.xlu0 %v2414, 32
    %v2419 = vpop.permute.xlu0 %2418
    %2420 = vrot.lane.b32.xlu0 %v2415, 32
    %v2421 = vpop.permute.xlu0 %2420
    %v2424 = vmul.f32 %v2387, %v2419
    %v2425 = vmul.f32 %v2389, %v2421
    %2426 = vst.msk [vmem:[#allocation4 + $0x10] sm:$0xff] %vm1863, %v2424
    %2428 = vrot.lane.b32.xlu0 %v2425, 96
    %v2429 = vpop.permute.xlu0 %2428
    %2431 = vst.msk [vmem:[#allocation4 + $0x8] sm:$0xff] %vm425, %v2429
    %2433 = vrot.lane.b32.xlu0 %v2424, 64
    %v2434 = vpop.permute.xlu0 %2433
    %2435 = vrot.lane.b32.xlu0 %v2425, 64
    %v2436 = vpop.permute.xlu0 %2435
    %v2437 = vsel %vm142, %v2434, 0
    %v2439 = vsel %vm142, %v2436, 0
    %2441 = vmatprep.subr.mxu0 %v1589
    %2442 = vmatpush1.msra.mxu0 %v1588
    %2443 = vmatprep.subr.mxu0 %v1591
    %2444 = vmatpush1.msra.mxu0 %v1590
    %2445 = vmatprep.subr.mxu0 %v1593
    %2446 = vmatpush1.msra.mxu0 %v1592
    %2447 = vmatprep.subr.mxu0 %v1595
    %2448 = vmatpush1.msra.mxu0 %v1594
    %2449 = vmatprep.subr.mxu0 0.0
    %2450 = vmatpush1.msra.mxu0 0.0
    %2451 = vmatprep.subr.mxu0 0.0
    %2452 = vmatpush1.msra.mxu0 0.0
    %2453 = vmatprep.subr.mxu0 0.0
    %2454 = vmatpush1.msra.mxu0 0.0
    %2455 = vmatprep.subr.mxu0 0.0
    %2456 = vmatpush1.msra.mxu0 0.0
    %2457 = vmatprep.subr.mxu0 0.0
    %2458 = vmatpush1.msra.mxu0 0.0
    %2459 = vmatprep.subr.mxu0 0.0
    %2460 = vmatpush1.msra.mxu0 0.0
    %2461 = vmatprep.subr.mxu0 0.0
    %2462 = vmatpush1.msra.mxu0 0.0
    %2463 = vmatprep.subr.mxu0 0.0
    %2464 = vmatpush1.msra.mxu0 0.0
    %2465 = vmatprep.subr.mxu0 0.0
    %2466 = vmatpush1.msra.mxu0 0.0
    %2467 = vmatprep.subr.mxu0 0.0
    %2468 = vmatpush1.msra.mxu0 0.0
    %2469 = vmatprep.subr.mxu0 0.0
    %2470 = vmatpush1.msra.mxu0 0.0
    %2471 = vmatprep.subr.mxu0 0.0
    %2472 = vmatpush1.msra.mxu0 0.0
    %2473 = vmatprep.subr.mxu0 0.0
    %2474 = vmatpush1.msra.mxu0 0.0
    %2475 = vmatprep.subr.mxu0 0.0
    %2476 = vmatpush1.msra.mxu0 0.0
    %2477 = vmatprep.subr.mxu0 0.0
    %2478 = vmatpush1.msra.mxu0 0.0
    %2479 = vmatprep.subr.mxu0 0.0
    %2480 = vmatpush1.msra.mxu0 0.0
    %2481 = vmatprep.subr.mxu0 0.0
    %2482 = vmatpush1.msra.mxu0 0.0
    %2483 = vmatprep.subr.mxu0 0.0
    %2484 = vmatpush1.msra.mxu0 0.0
    %2485 = vmatprep.subr.mxu0 0.0
    %2486 = vmatpush1.msra.mxu0 0.0
    %2487 = vmatprep.subr.mxu0 0.0
    %2488 = vmatpush1.msra.mxu0 0.0
    %2489 = vmatprep.subr.mxu0 0.0
    %2490 = vmatpush1.msra.mxu0 0.0
    %2491 = vmatprep.subr.mxu0 0.0
    %2492 = vmatpush1.msra.mxu0 0.0
    %2493 = vmatprep.subr.mxu0 0.0
    %2494 = vmatpush1.msra.mxu0 0.0
    %2495 = vmatprep.subr.mxu0 0.0
    %2496 = vmatpush1.msra.mxu0 0.0
    %2497 = vmatprep.subr.mxu0 0.0
    %2498 = vmatpush1.msra.mxu0 0.0
    %2499 = vmatprep.subr.mxu0 0.0
    %2500 = vmatpush1.msra.mxu0 0.0
    %2501 = vmatprep.subr.mxu0 0.0
    %2502 = vmatpush1.msra.mxu0 0.0
    %2503 = vmatprep.subr.mxu0 0.0
    %2504 = vmatpush1.msra.mxu0 0.0
    %2505 = vmatprep.mubr.f32.mxu0 0.0
    %2506 = vmatmul.mubr.f32.gmra.mrb[0].mxu0 %v2437
    %v2507 = vpop.f32.mrb[0].mxu0
    %v2508 = vadd.f32 0.0, %v2507
    %v2509 = vpop.f32.mrb[0].mxu0
    %2510 = vmatprep.mubr.f32.mxu0 0.0
    %2511 = vmatmul.mubr.f32.gmra.mrb[0].mxu0 %v2439
    %v2512 = vpop.f32.mrb[0].mxu0
    %v2513 = vpop.f32.mrb[0].mxu0
    %v2514 = vadd.f32 0.0, %v2513
    %2515 = vdwg.mxu0
    %v2516 = vadd.f32 %v1578, %v2508
    %v2517 = vadd.f32 %v1550, %v2514
    %v2518 = vxor.u32 %v2516, 2147483648
    %v2519 = vxor.u32 %v2517, 2147483648
    %v2520 = vmul.f32 %v2518, 1.442695
    %v2521 = vpow.pop %v2520
    %v2522 = vmul.f32 %v2519, 1.442695
    %v2523 = vpow.pop %v2522
    %v2524 = vadd.f32 %v2521, 1.0
    %v2525 = vadd.f32 %v2523, 1.0
    %v2526 = vrcp.pop %v2524
    %v2527 = vmul.f32 1.0, %v2526
    %v2528 = vrcp.pop %v2525
    %v2529 = vmul.f32 1.0, %v2528
    %v2530 = vtanh.pop %v2516
    %v2531 = vtanh.pop %v2517
    %v2532 = vmul.f32 %v2527, %v2412
    %v2533 = vmul.f32 %v2529, %v2413
    %2536 = vrot.lane.b32.xlu0 %v2530, 32
    %v2537 = vpop.permute.xlu0 %2536
    %2538 = vrot.lane.b32.xlu0 %v2531, 32
    %v2539 = vpop.permute.xlu0 %2538
    %v2542 = vmul.f32 %v2527, %v2537
    %v2543 = vmul.f32 %v2529, %v2539
    %2546 = vrot.lane.b32.xlu0 %v2542, 32
    %v2547 = vpop.permute.xlu0 %2546
    %2548 = vrot.lane.b32.xlu0 %v2543, 32
    %v2549 = vpop.permute.xlu0 %2548
    %v2552 = vadd.f32 %v2532, %v2547
    %v2553 = vadd.f32 %v2533, %v2549
    %v2554 = vtanh.pop %v2552
    %v2555 = vtanh.pop %v2553
    %2558 = vrot.lane.b32.xlu0 %v2554, 32
    %v2559 = vpop.permute.xlu0 %2558
    %2560 = vrot.lane.b32.xlu0 %v2555, 32
    %v2561 = vpop.permute.xlu0 %2560
    %v2564 = vmul.f32 %v2527, %v2559
    %v2565 = vmul.f32 %v2529, %v2561
    %2567 = vrot.lane.b32.xlu0 %v2564, 64
    %v2568 = vpop.permute.xlu0 %2567
    %2570 = vst.msk [vmem:[#allocation4 + $0x18] sm:$0xff] %vm142, %v2568
    %2572 = vrot.lane.b32.xlu0 %v2565, 32
    %v2573 = vpop.permute.xlu0 %2572
    %2575 = vst.msk [vmem:[#allocation4] sm:$0xff] %vm1730, %v2573
    %2576 = vrot.lane.b32.xlu0 %v2565, 64
    %v2577 = vpop.permute.xlu0 %2576
    %v2578 = vsel %vm142, %v2568, 0
    %v2580 = vsel %vm142, %v2577, 0
    %2582 = vmatprep.subr.mxu0 %v1589
    %2583 = vmatpush1.msra.mxu0 %v1588
    %2584 = vmatprep.subr.mxu0 %v1591
    %2585 = vmatpush1.msra.mxu0 %v1590
    %2586 = vmatprep.subr.mxu0 %v1593
    %2587 = vmatpush1.msra.mxu0 %v1592
    %2588 = vmatprep.subr.mxu0 %v1595
    %2589 = vmatpush1.msra.mxu0 %v1594
    %2590 = vmatprep.subr.mxu0 0.0
    %2591 = vmatpush1.msra.mxu0 0.0
    %2592 = vmatprep.subr.mxu0 0.0
    %2593 = vmatpush1.msra.mxu0 0.0
    %2594 = vmatprep.subr.mxu0 0.0
    %2595 = vmatpush1.msra.mxu0 0.0
    %2596 = vmatprep.subr.mxu0 0.0
    %2597 = vmatpush1.msra.mxu0 0.0
    %2598 = vmatprep.subr.mxu0 0.0
    %2599 = vmatpush1.msra.mxu0 0.0
    %2600 = vmatprep.subr.mxu0 0.0
    %2601 = vmatpush1.msra.mxu0 0.0
    %2602 = vmatprep.subr.mxu0 0.0
    %2603 = vmatpush1.msra.mxu0 0.0
    %2604 = vmatprep.subr.mxu0 0.0
    %2605 = vmatpush1.msra.mxu0 0.0
    %2606 = vmatprep.subr.mxu0 0.0
    %2607 = vmatpush1.msra.mxu0 0.0
    %2608 = vmatprep.subr.mxu0 0.0
    %2609 = vmatpush1.msra.mxu0 0.0
    %2610 = vmatprep.subr.mxu0 0.0
    %2611 = vmatpush1.msra.mxu0 0.0
    %2612 = vmatprep.subr.mxu0 0.0
    %2613 = vmatpush1.msra.mxu0 0.0
    %2614 = vmatprep.subr.mxu0 0.0
    %2615 = vmatpush1.msra.mxu0 0.0
    %2616 = vmatprep.subr.mxu0 0.0
    %2617 = vmatpush1.msra.mxu0 0.0
    %2618 = vmatprep.subr.mxu0 0.0
    %2619 = vmatpush1.msra.mxu0 0.0
    %2620 = vmatprep.subr.mxu0 0.0
    %2621 = vmatpush1.msra.mxu0 0.0
    %2622 = vmatprep.subr.mxu0 0.0
    %2623 = vmatpush1.msra.mxu0 0.0
    %2624 = vmatprep.subr.mxu0 0.0
    %2625 = vmatpush1.msra.mxu0 0.0
    %2626 = vmatprep.subr.mxu0 0.0
    %2627 = vmatpush1.msra.mxu0 0.0
    %2628 = vmatprep.subr.mxu0 0.0
    %2629 = vmatpush1.msra.mxu0 0.0
    %2630 = vmatprep.subr.mxu0 0.0
    %2631 = vmatpush1.msra.mxu0 0.0
    %2632 = vmatprep.subr.mxu0 0.0
    %2633 = vmatpush1.msra.mxu0 0.0
    %2634 = vmatprep.subr.mxu0 0.0
    %2635 = vmatpush1.msra.mxu0 0.0
    %2636 = vmatprep.subr.mxu0 0.0
    %2637 = vmatpush1.msra.mxu0 0.0
    %2638 = vmatprep.subr.mxu0 0.0
    %2639 = vmatpush1.msra.mxu0 0.0
    %2640 = vmatprep.subr.mxu0 0.0
    %2641 = vmatpush1.msra.mxu0 0.0
    %2642 = vmatprep.subr.mxu0 0.0
    %2643 = vmatpush1.msra.mxu0 0.0
    %2644 = vmatprep.subr.mxu0 0.0
    %2645 = vmatpush1.msra.mxu0 0.0
    %2646 = vmatprep.mubr.f32.mxu0 0.0
    %2647 = vmatmul.mubr.f32.gmra.mrb[0].mxu0 %v2578
    %v2648 = vpop.f32.mrb[0].mxu0
    %v2649 = vadd.f32 0.0, %v2648
    %v2650 = vpop.f32.mrb[0].mxu0
    %2651 = vmatprep.mubr.f32.mxu0 0.0
    %2652 = vmatmul.mubr.f32.gmra.mrb[0].mxu0 %v2580
    %v2653 = vpop.f32.mrb[0].mxu0
    %v2654 = vpop.f32.mrb[0].mxu0
    %v2655 = vadd.f32 0.0, %v2654
    %2656 = vdwg.mxu0
    %v2657 = vadd.f32 %v1584, %v2649
    %v2658 = vadd.f32 %v1544, %v2655
    %v2659 = vxor.u32 %v2657, 2147483648
    %v2660 = vxor.u32 %v2658, 2147483648
    %v2661 = vmul.f32 %v2659, 1.442695
    %v2662 = vpow.pop %v2661
    %v2663 = vmul.f32 %v2660, 1.442695
    %v2664 = vpow.pop %v2663
    %v2665 = vadd.f32 %v2662, 1.0
    %v2666 = vadd.f32 %v2664, 1.0
    %v2667 = vrcp.pop %v2665
    %v2668 = vmul.f32 1.0, %v2667
    %v2669 = vrcp.pop %v2666
    %v2670 = vmul.f32 1.0, %v2669
    %v2671 = vtanh.pop %v2657
    %v2672 = vtanh.pop %v2658
    %v2673 = vmul.f32 %v2668, %v2552
    %v2674 = vmul.f32 %v2670, %v2553
    %2677 = vrot.lane.b32.xlu0 %v2671, 32
    %v2678 = vpop.permute.xlu0 %2677
    %2679 = vrot.lane.b32.xlu0 %v2672, 32
    %v2680 = vpop.permute.xlu0 %2679
    %v2683 = vmul.f32 %v2668, %v2678
    %v2684 = vmul.f32 %v2670, %v2680
    %2687 = vrot.lane.b32.xlu0 %v2683, 32
    %v2688 = vpop.permute.xlu0 %2687
    %2689 = vrot.lane.b32.xlu0 %v2684, 32
    %v2690 = vpop.permute.xlu0 %2689
    %v2693 = vadd.f32 %v2673, %v2688
    %v2694 = vadd.f32 %v2674, %v2690
    %v2695 = vtanh.pop %v2693
    %v2696 = vtanh.pop %v2694
    %2699 = vrot.lane.b32.xlu0 %v2695, 32
    %v2700 = vpop.permute.xlu0 %2699
    %2701 = vrot.lane.b32.xlu0 %v2696, 32
    %v2702 = vpop.permute.xlu0 %2701
    %v2705 = vmul.f32 %v2668, %v2700
    %v2706 = vmul.f32 %v2670, %v2702
    %2707 = vst.msk [vmem:[#allocation4 + $0x18] sm:$0xff] %vm1863, %v2705
    %2709 = vrot.lane.b32.xlu0 %v2706, 96
    %v2710 = vpop.permute.xlu0 %2709
    %2712 = vst.msk [vmem:[#allocation4] sm:$0xff] %vm425, %v2710
    %s2713 = smul.u32 4, 64
    %s2714 = smul.u32 %s2713, 4
    %s2715 = sshll.u32 %s2714, 4
    %2716 = dma.done [#allocation5], %s2715
    %v2717 = vld [vmem:[#allocation4] sm:$0xff]
    %v2718 = vld [vmem:[#allocation4 + $0x8] sm:$0xff]
    %v2719 = vld [vmem:[#allocation4 + $0x10] sm:$0xff]
    %v2720 = vld [vmem:[#allocation4 + $0x18] sm:$0xff]
    %v2721 = vpack.c.bf16 %v2717, %v2717
    %v2722 = vpack.c.bf16 %v2718, %v2718
    %v2723 = vpack.c.bf16 %v2719, %v2719
    %v2724 = vpack.c.bf16 %v2720, %v2720
    %v2725 = vld [vmem:[#allocation2] sm:$0xff]
    %v2726 = vld [vmem:[#allocation2 + $0x8] sm:$0xff]
    %v2727 = vld [vmem:[#allocation2 + $0x10] sm:$0xff]
    %v2728 = vld [vmem:[#allocation2 + $0x18] sm:$0xff]
    %v2729 = vld [vmem:[#allocation2 + $0x20] sm:$0xff]
    %v2730 = vld [vmem:[#allocation2 + $0x28] sm:$0xff]
    %v2731 = vld [vmem:[#allocation2 + $0x30] sm:$0xff]
    %v2732 = vld [vmem:[#allocation2 + $0x38] sm:$0xff]
    %v2733 = vld [vmem:[#allocation2 + $0x40] sm:$0xff]
    %v2734 = vld [vmem:[#allocation2 + $0x48] sm:$0xff]
    %v2735 = vld [vmem:[#allocation2 + $0x50] sm:$0xff]
    %v2736 = vld [vmem:[#allocation2 + $0x58] sm:$0xff]
    %v2737 = vld [vmem:[#allocation2 + $0x60] sm:$0xff]
    %v2738 = vld [vmem:[#allocation2 + $0x68] sm:$0xff]
    %v2739 = vld [vmem:[#allocation2 + $0x70] sm:$0xff]
    %v2740 = vld [vmem:[#allocation2 + $0x78] sm:$0xff]
    %v2741 = vld [vmem:[#allocation2 + $0x80] sm:$0xff]
    %v2742 = vld [vmem:[#allocation2 + $0x88] sm:$0xff]
    %v2743 = vld [vmem:[#allocation2 + $0x90] sm:$0xff]
    %v2744 = vld [vmem:[#allocation2 + $0x98] sm:$0xff]
    %v2745 = vld [vmem:[#allocation2 + $0xa0] sm:$0xff]
    %v2746 = vld [vmem:[#allocation2 + $0xa8] sm:$0xff]
    %v2747 = vld [vmem:[#allocation2 + $0xb0] sm:$0xff]
    %v2748 = vld [vmem:[#allocation2 + $0xb8] sm:$0xff]
    %v2749 = vld [vmem:[#allocation2 + $0xc0] sm:$0xff]
    %v2750 = vld [vmem:[#allocation2 + $0xc8] sm:$0xff]
    %v2751 = vld [vmem:[#allocation2 + $0xd0] sm:$0xff]
    %v2752 = vld [vmem:[#allocation2 + $0xd8] sm:$0xff]
    %v2753 = vld [vmem:[#allocation2 + $0xe0] sm:$0xff]
    %v2754 = vld [vmem:[#allocation2 + $0xe8] sm:$0xff]
    %v2755 = vld [vmem:[#allocation2 + $0xf0] sm:$0xff]
    %v2756 = vld [vmem:[#allocation2 + $0xf8] sm:$0xff]
    %v2757 = vld [vmem:[#allocation2 + $0x100] sm:$0xff]
    %v2758 = vld [vmem:[#allocation2 + $0x108] sm:$0xff]
    %v2759 = vld [vmem:[#allocation2 + $0x110] sm:$0xff]
    %v2760 = vld [vmem:[#allocation2 + $0x118] sm:$0xff]
    %v2761 = vld [vmem:[#allocation2 + $0x120] sm:$0xff]
    %v2762 = vld [vmem:[#allocation2 + $0x128] sm:$0xff]
    %v2763 = vld [vmem:[#allocation2 + $0x130] sm:$0xff]
    %v2764 = vld [vmem:[#allocation2 + $0x138] sm:$0xff]
    %v2765 = vld [vmem:[#allocation2 + $0x140] sm:$0xff]
    %v2766 = vld [vmem:[#allocation2 + $0x148] sm:$0xff]
    %v2767 = vld [vmem:[#allocation2 + $0x150] sm:$0xff]
    %v2768 = vld [vmem:[#allocation2 + $0x158] sm:$0xff]
    %v2769 = vld [vmem:[#allocation2 + $0x160] sm:$0xff]
    %v2770 = vld [vmem:[#allocation2 + $0x168] sm:$0xff]
    %v2771 = vld [vmem:[#allocation2 + $0x170] sm:$0xff]
    %v2772 = vld [vmem:[#allocation2 + $0x178] sm:$0xff]
    %v2773 = vld [vmem:[#allocation2 + $0x180] sm:$0xff]
    %v2774 = vld [vmem:[#allocation2 + $0x188] sm:$0xff]
    %v2775 = vld [vmem:[#allocation2 + $0x190] sm:$0xff]
    %v2776 = vld [vmem:[#allocation2 + $0x198] sm:$0xff]
    %v2777 = vld [vmem:[#allocation2 + $0x1a0] sm:$0xff]
    %v2778 = vld [vmem:[#allocation2 + $0x1a8] sm:$0xff]
    %v2779 = vld [vmem:[#allocation2 + $0x1b0] sm:$0xff]
    %v2780 = vld [vmem:[#allocation2 + $0x1b8] sm:$0xff]
    %v2781 = vld [vmem:[#allocation2 + $0x1c0] sm:$0xff]
    %v2782 = vld [vmem:[#allocation2 + $0x1c8] sm:$0xff]
    %v2783 = vld [vmem:[#allocation2 + $0x1d0] sm:$0xff]
    %v2784 = vld [vmem:[#allocation2 + $0x1d8] sm:$0xff]
    %v2785 = vld [vmem:[#allocation2 + $0x1e0] sm:$0xff]
    %v2786 = vld [vmem:[#allocation2 + $0x1e8] sm:$0xff]
    %v2787 = vld [vmem:[#allocation2 + $0x1f0] sm:$0xff]
    %v2788 = vld [vmem:[#allocation2 + $0x1f8] sm:$0xff]
    %v2789 = vld [vmem:[#allocation2 + $0x200] sm:$0xff]
    %v2790 = vld [vmem:[#allocation2 + $0x208] sm:$0xff]
    %v2791 = vld [vmem:[#allocation2 + $0x210] sm:$0xff]
    %v2792 = vld [vmem:[#allocation2 + $0x218] sm:$0xff]
    %v2793 = vld [vmem:[#allocation2 + $0x220] sm:$0xff]
    %v2794 = vld [vmem:[#allocation2 + $0x228] sm:$0xff]
    %v2795 = vld [vmem:[#allocation2 + $0x230] sm:$0xff]
    %v2796 = vld [vmem:[#allocation2 + $0x238] sm:$0xff]
    %v2797 = vld [vmem:[#allocation2 + $0x240] sm:$0xff]
    %v2798 = vld [vmem:[#allocation2 + $0x248] sm:$0xff]
    %v2799 = vld [vmem:[#allocation2 + $0x250] sm:$0xff]
    %v2800 = vld [vmem:[#allocation2 + $0x258] sm:$0xff]
    %v2801 = vld [vmem:[#allocation2 + $0x260] sm:$0xff]
    %v2802 = vld [vmem:[#allocation2 + $0x268] sm:$0xff]
    %v2803 = vld [vmem:[#allocation2 + $0x270] sm:$0xff]
    %v2804 = vld [vmem:[#allocation2 + $0x278] sm:$0xff]
    %v2805 = vld [vmem:[#allocation2 + $0x280] sm:$0xff]
    %v2806 = vld [vmem:[#allocation2 + $0x288] sm:$0xff]
    %v2807 = vld [vmem:[#allocation2 + $0x290] sm:$0xff]
    %v2808 = vld [vmem:[#allocation2 + $0x298] sm:$0xff]
    %v2809 = vld [vmem:[#allocation2 + $0x2a0] sm:$0xff]
    %v2810 = vld [vmem:[#allocation2 + $0x2a8] sm:$0xff]
    %v2811 = vld [vmem:[#allocation2 + $0x2b0] sm:$0xff]
    %v2812 = vld [vmem:[#allocation2 + $0x2b8] sm:$0xff]
    %v2813 = vld [vmem:[#allocation2 + $0x2c0] sm:$0xff]
    %v2814 = vld [vmem:[#allocation2 + $0x2c8] sm:$0xff]
    %v2815 = vld [vmem:[#allocation2 + $0x2d0] sm:$0xff]
    %v2816 = vld [vmem:[#allocation2 + $0x2d8] sm:$0xff]
    %v2817 = vld [vmem:[#allocation2 + $0x2e0] sm:$0xff]
    %v2818 = vld [vmem:[#allocation2 + $0x2e8] sm:$0xff]
    %v2819 = vld [vmem:[#allocation2 + $0x2f0] sm:$0xff]
    %v2820 = vld [vmem:[#allocation2 + $0x2f8] sm:$0xff]
    %v2821 = vld [vmem:[#allocation2 + $0x300] sm:$0xff]
    %v2822 = vld [vmem:[#allocation2 + $0x308] sm:$0xff]
    %v2823 = vld [vmem:[#allocation2 + $0x310] sm:$0xff]
    %v2824 = vld [vmem:[#allocation2 + $0x318] sm:$0xff]
    %v2825 = vld [vmem:[#allocation2 + $0x320] sm:$0xff]
    %v2826 = vld [vmem:[#allocation2 + $0x328] sm:$0xff]
    %v2827 = vld [vmem:[#allocation2 + $0x330] sm:$0xff]
    %v2828 = vld [vmem:[#allocation2 + $0x338] sm:$0xff]
    %v2829 = vld [vmem:[#allocation2 + $0x340] sm:$0xff]
    %v2830 = vld [vmem:[#allocation2 + $0x348] sm:$0xff]
    %v2831 = vld [vmem:[#allocation2 + $0x350] sm:$0xff]
    %v2832 = vld [vmem:[#allocation2 + $0x358] sm:$0xff]
    %v2833 = vld [vmem:[#allocation2 + $0x360] sm:$0xff]
    %v2834 = vld [vmem:[#allocation2 + $0x368] sm:$0xff]
    %v2835 = vld [vmem:[#allocation2 + $0x370] sm:$0xff]
    %v2836 = vld [vmem:[#allocation2 + $0x378] sm:$0xff]
    %v2837 = vld [vmem:[#allocation2 + $0x380] sm:$0xff]
    %v2838 = vld [vmem:[#allocation2 + $0x388] sm:$0xff]
    %v2839 = vld [vmem:[#allocation2 + $0x390] sm:$0xff]
    %v2840 = vld [vmem:[#allocation2 + $0x398] sm:$0xff]
    %v2841 = vld [vmem:[#allocation2 + $0x3a0] sm:$0xff]
    %v2842 = vld [vmem:[#allocation2 + $0x3a8] sm:$0xff]
    %v2843 = vld [vmem:[#allocation2 + $0x3b0] sm:$0xff]
    %v2844 = vld [vmem:[#allocation2 + $0x3b8] sm:$0xff]
    %v2845 = vld [vmem:[#allocation2 + $0x3c0] sm:$0xff]
    %v2846 = vld [vmem:[#allocation2 + $0x3c8] sm:$0xff]
    %v2847 = vld [vmem:[#allocation2 + $0x3d0] sm:$0xff]
    %v2848 = vld [vmem:[#allocation2 + $0x3d8] sm:$0xff]
    %v2849 = vld [vmem:[#allocation2 + $0x3e0] sm:$0xff]
    %v2850 = vld [vmem:[#allocation2 + $0x3e8] sm:$0xff]
    %v2851 = vld [vmem:[#allocation2 + $0x3f0] sm:$0xff]
    %v2852 = vld [vmem:[#allocation2 + $0x3f8] sm:$0xff]
    %v2853 = vld [vmem:[%s8] sm:$0xf]
    %v2855 = vlaneseq
    %v2856 = vshrl.u32 %v2855, 7
    %v2857 = vsub.s32 0, %v2856
    %v2858 = vrot.slane %v2853, %v2857
    %v2859 = vlaneseq
    %v2860 = vshrl.u32 %v2859, 7
    %v2861 = vsub.s32 1, %v2860
    %v2862 = vrot.slane %v2853, %v2861
    %v2863 = vlaneseq
    %v2864 = vshrl.u32 %v2863, 7
    %v2865 = vsub.s32 2, %v2864
    %v2866 = vrot.slane %v2853, %v2865
    %v2867 = vlaneseq
    %v2868 = vshrl.u32 %v2867, 7
    %v2869 = vsub.s32 3, %v2868
    %v2870 = vrot.slane %v2853, %v2869
    %2875 = vmatprep.subr.bf16.mxu0 %v2726
    %2876 = vmatpush1.bf16.msra.mxu0 %v2725
    %2877 = vmatprep.subr.bf16.mxu0 %v2730
    %2878 = vmatpush1.bf16.msra.mxu0 %v2729
    %2879 = vmatprep.subr.bf16.mxu0 %v2734
    %2880 = vmatpush1.bf16.msra.mxu0 %v2733
    %2881 = vmatprep.subr.bf16.mxu0 %v2738
    %2882 = vmatpush1.bf16.msra.mxu0 %v2737
    %2883 = vmatprep.subr.bf16.mxu0 %v2742
    %2884 = vmatpush1.bf16.msra.mxu0 %v2741
    %2885 = vmatprep.subr.bf16.mxu0 %v2746
    %2886 = vmatpush1.bf16.msra.mxu0 %v2745
    %2887 = vmatprep.subr.bf16.mxu0 %v2750
    %2888 = vmatpush1.bf16.msra.mxu0 %v2749
    %2889 = vmatprep.subr.bf16.mxu0 %v2754
    %2890 = vmatpush1.bf16.msra.mxu0 %v2753
    %2891 = vmatprep.subr.bf16.mxu0 %v2758
    %2892 = vmatpush1.bf16.msra.mxu0 %v2757
    %2893 = vmatprep.subr.bf16.mxu0 %v2762
    %2894 = vmatpush1.bf16.msra.mxu0 %v2761
    %2895 = vmatprep.subr.bf16.mxu0 %v2766
    %2896 = vmatpush1.bf16.msra.mxu0 %v2765
    %2897 = vmatprep.subr.bf16.mxu0 %v2770
    %2898 = vmatpush1.bf16.msra.mxu0 %v2769
    %2899 = vmatprep.subr.bf16.mxu0 %v2774
    %2900 = vmatpush1.bf16.msra.mxu0 %v2773
    %2901 = vmatprep.subr.bf16.mxu0 %v2778
    %2902 = vmatpush1.bf16.msra.mxu0 %v2777
    %2903 = vmatprep.subr.bf16.mxu0 %v2782
    %2904 = vmatpush1.bf16.msra.mxu0 %v2781
    %2905 = vmatprep.subr.bf16.mxu0 %v2786
    %2906 = vmatpush1.bf16.msra.mxu0 %v2785
    %2907 = vmatprep.mubr.bf16.mxu0 %v2722
    %2908 = vmatmul.mubr.bf16.gmra.mrb[0].mxu0 %v2721
    %v2909 = vpop.f32.mrb[0].mxu0
    %v2910 = vadd.f32 %v2858, %v2909
    %v2911 = vpop.f32.mrb[0].mxu0
    %v2912 = vadd.f32 %v2862, %v2911
    %v2913 = vpop.f32.mrb[0].mxu0
    %v2914 = vpop.f32.mrb[0].mxu0
    %2915 = vdwg.mxu0
    %2916 = vmatprep.subr.bf16.mxu0 %v2790
    %2917 = vmatpush1.bf16.msra.mxu0 %v2789
    %2918 = vmatprep.subr.bf16.mxu0 %v2794
    %2919 = vmatpush1.bf16.msra.mxu0 %v2793
    %2920 = vmatprep.subr.bf16.mxu0 %v2798
    %2921 = vmatpush1.bf16.msra.mxu0 %v2797
    %2922 = vmatprep.subr.bf16.mxu0 %v2802
    %2923 = vmatpush1.bf16.msra.mxu0 %v2801
    %2924 = vmatprep.subr.bf16.mxu0 %v2806
    %2925 = vmatpush1.bf16.msra.mxu0 %v2805
    %2926 = vmatprep.subr.bf16.mxu0 %v2810
    %2927 = vmatpush1.bf16.msra.mxu0 %v2809
    %2928 = vmatprep.subr.bf16.mxu0 %v2814
    %2929 = vmatpush1.bf16.msra.mxu0 %v2813
    %2930 = vmatprep.subr.bf16.mxu0 %v2818
    %2931 = vmatpush1.bf16.msra.mxu0 %v2817
    %2932 = vmatprep.subr.bf16.mxu0 %v2822
    %2933 = vmatpush1.bf16.msra.mxu0 %v2821
    %2934 = vmatprep.subr.bf16.mxu0 %v2826
    %2935 = vmatpush1.bf16.msra.mxu0 %v2825
    %2936 = vmatprep.subr.bf16.mxu0 %v2830
    %2937 = vmatpush1.bf16.msra.mxu0 %v2829
    %2938 = vmatprep.subr.bf16.mxu0 %v2834
    %2939 = vmatpush1.bf16.msra.mxu0 %v2833
    %2940 = vmatprep.subr.bf16.mxu0 %v2838
    %2941 = vmatpush1.bf16.msra.mxu0 %v2837
    %2942 = vmatprep.subr.bf16.mxu0 %v2842
    %2943 = vmatpush1.bf16.msra.mxu0 %v2841
    %2944 = vmatprep.subr.bf16.mxu0 %v2846
    %2945 = vmatpush1.bf16.msra.mxu0 %v2845
    %2946 = vmatprep.subr.bf16.mxu0 %v2850
    %2947 = vmatpush1.bf16.msra.mxu0 %v2849
    %2948 = vmatprep.mubr.bf16.mxu0 %v2724
    %2949 = vmatmul.mubr.bf16.gmra.mrb[0].mxu0 %v2723
    %v2950 = vpop.f32.mrb[0].mxu0
    %v2951 = vadd.f32 %v2910, %v2950
    %v2952 = vpop.f32.mrb[0].mxu0
    %v2953 = vadd.f32 %v2912, %v2952
    %v2954 = vpop.f32.mrb[0].mxu0
    %v2955 = vpop.f32.mrb[0].mxu0
    %2956 = vdwg.mxu0
    %2957 = vmatprep.subr.bf16.mxu0 %v2728
    %2958 = vmatpush1.bf16.msra.mxu0 %v2727
    %2959 = vmatprep.subr.bf16.mxu0 %v2732
    %2960 = vmatpush1.bf16.msra.mxu0 %v2731
    %2961 = vmatprep.subr.bf16.mxu0 %v2736
    %2962 = vmatpush1.bf16.msra.mxu0 %v2735
    %2963 = vmatprep.subr.bf16.mxu0 %v2740
    %2964 = vmatpush1.bf16.msra.mxu0 %v2739
    %2965 = vmatprep.subr.bf16.mxu0 %v2744
    %2966 = vmatpush1.bf16.msra.mxu0 %v2743
    %2967 = vmatprep.subr.bf16.mxu0 %v2748
    %2968 = vmatpush1.bf16.msra.mxu0 %v2747
    %2969 = vmatprep.subr.bf16.mxu0 %v2752
    %2970 = vmatpush1.bf16.msra.mxu0 %v2751
    %2971 = vmatprep.subr.bf16.mxu0 %v2756
    %2972 = vmatpush1.bf16.msra.mxu0 %v2755
    %2973 = vmatprep.subr.bf16.mxu0 %v2760
    %2974 = vmatpush1.bf16.msra.mxu0 %v2759
    %2975 = vmatprep.subr.bf16.mxu0 %v2764
    %2976 = vmatpush1.bf16.msra.mxu0 %v2763
    %2977 = vmatprep.subr.bf16.mxu0 %v2768
    %2978 = vmatpush1.bf16.msra.mxu0 %v2767
    %2979 = vmatprep.subr.bf16.mxu0 %v2772
    %2980 = vmatpush1.bf16.msra.mxu0 %v2771
    %2981 = vmatprep.subr.bf16.mxu0 %v2776
    %2982 = vmatpush1.bf16.msra.mxu0 %v2775
    %2983 = vmatprep.subr.bf16.mxu0 %v2780
    %2984 = vmatpush1.bf16.msra.mxu0 %v2779
    %2985 = vmatprep.subr.bf16.mxu0 %v2784
    %2986 = vmatpush1.bf16.msra.mxu0 %v2783
    %2987 = vmatprep.subr.bf16.mxu0 %v2788
    %2988 = vmatpush1.bf16.msra.mxu0 %v2787
    %2989 = vmatprep.mubr.bf16.mxu0 %v2722
    %2990 = vmatmul.mubr.bf16.gmra.mrb[0].mxu0 %v2721
    %v2991 = vpop.f32.mrb[0].mxu0
    %v2992 = vadd.f32 %v2866, %v2991
    %v2993 = vpop.f32.mrb[0].mxu0
    %v2994 = vadd.f32 %v2870, %v2993
    %v2995 = vpop.f32.mrb[0].mxu0
    %v2996 = vpop.f32.mrb[0].mxu0
    %2997 = vdwg.mxu0
    %2998 = vmatprep.subr.bf16.mxu0 %v2792
    %2999 = vmatpush1.bf16.msra.mxu0 %v2791
    %3000 = vmatprep.subr.bf16.mxu0 %v2796
    %3001 = vmatpush1.bf16.msra.mxu0 %v2795
    %3002 = vmatprep.subr.bf16.mxu0 %v2800
    %3003 = vmatpush1.bf16.msra.mxu0 %v2799
    %3004 = vmatprep.subr.bf16.mxu0 %v2804
    %3005 = vmatpush1.bf16.msra.mxu0 %v2803
    %3006 = vmatprep.subr.bf16.mxu0 %v2808
    %3007 = vmatpush1.bf16.msra.mxu0 %v2807
    %3008 = vmatprep.subr.bf16.mxu0 %v2812
    %3009 = vmatpush1.bf16.msra.mxu0 %v2811
    %3010 = vmatprep.subr.bf16.mxu0 %v2816
    %3011 = vmatpush1.bf16.msra.mxu0 %v2815
    %3012 = vmatprep.subr.bf16.mxu0 %v2820
    %3013 = vmatpush1.bf16.msra.mxu0 %v2819
    %3014 = vmatprep.subr.bf16.mxu0 %v2824
    %3015 = vmatpush1.bf16.msra.mxu0 %v2823
    %3016 = vmatprep.subr.bf16.mxu0 %v2828
    %3017 = vmatpush1.bf16.msra.mxu0 %v2827
    %3018 = vmatprep.subr.bf16.mxu0 %v2832
    %3019 = vmatpush1.bf16.msra.mxu0 %v2831
    %3020 = vmatprep.subr.bf16.mxu0 %v2836
    %3021 = vmatpush1.bf16.msra.mxu0 %v2835
    %3022 = vmatprep.subr.bf16.mxu0 %v2840
    %3023 = vmatpush1.bf16.msra.mxu0 %v2839
    %3024 = vmatprep.subr.bf16.mxu0 %v2844
    %3025 = vmatpush1.bf16.msra.mxu0 %v2843
    %3026 = vmatprep.subr.bf16.mxu0 %v2848
    %3027 = vmatpush1.bf16.msra.mxu0 %v2847
    %3028 = vmatprep.subr.bf16.mxu0 %v2852
    %3029 = vmatpush1.bf16.msra.mxu0 %v2851
    %3030 = vmatprep.mubr.bf16.mxu0 %v2724
    %3031 = vmatmul.mubr.bf16.gmra.mrb[0].mxu0 %v2723
    %v3032 = vpop.f32.mrb[0].mxu0
    %v3033 = vadd.f32 %v2992, %v3032
    %v3034 = vpop.f32.mrb[0].mxu0
    %v3035 = vadd.f32 %v2994, %v3034
    %v3036 = vpop.f32.mrb[0].mxu0
    %v3037 = vpop.f32.mrb[0].mxu0
    %3038 = vdwg.mxu0
    %v3039 = vmax.f32 %v2951, 0.0
    %v3040 = vmax.f32 %v2953, 0.0
    %v3041 = vmax.f32 %v3033, 0.0
    %v3042 = vmax.f32 %v3035, 0.0
    %v3043 = vld [vmem:[%s9] sm:$0xf]
    %v3045 = vlaneseq
    %v3046 = vshrl.u32 %v3045, 7
    %v3047 = vsub.s32 0, %v3046
    %v3048 = vrot.slane %v3043, %v3047
    %v3049 = vlaneseq
    %v3050 = vshrl.u32 %v3049, 7
    %v3051 = vsub.s32 1, %v3050
    %v3052 = vrot.slane %v3043, %v3051
    %v3053 = vlaneseq
    %v3054 = vshrl.u32 %v3053, 7
    %v3055 = vsub.s32 2, %v3054
    %v3056 = vrot.slane %v3043, %v3055
    %v3057 = vlaneseq
    %v3058 = vshrl.u32 %v3057, 7
    %v3059 = vsub.s32 3, %v3058
    %v3060 = vrot.slane %v3043, %v3059
    %v3065 = vmul.f32 %v3039, %v3048
    %v3066 = vmul.f32 %v3040, %v3052
    %v3067 = vmul.f32 %v3041, %v3056
    %v3068 = vmul.f32 %v3042, %v3060
    %v3069 = vadd.f32 %v3065, %v3066
    %v3070 = vadd.f32 %v3069, %v3067
    %v3071 = vadd.f32 %v3070, %v3068
    %3072 = vadd.xlane.f32.xlu0 %v3071
    %v3073 = vpop.xlane.xlu0 %3072
    %v3074 = vld [vmem:[#allocation6] sm:$0x1]
    %v3076 = vlaneseq
    %v3077 = vshrl.u32 %v3076, 7
    %v3078 = vsub.s32 0, %v3077
    %v3079 = vrot.slane %v3074, %v3078
    %v3081 = vadd.f32 %v3073, %v3079
    %vm3082 = vcmask 7168
    %3083 = vst.msk [vmem:[%s11] sm:$0xff] %vm3082, %v3081
    // Predicated region
    $region54: #{tpu_custom_call.1} parent=1 // pred_check
      _
    $region55: #{tpu_custom_call.1} parent=1 // pred_check_branch
      %3085 = sbr.rel (0) target = $region57
    $region56: #{tpu_custom_call.1} parent=1 // pred_region
      _
    $region57: #{tpu_custom_call.1} parent=1 // pred_fallthru
      _
    // Predicated region
    $region58: #{tpu_custom_call.1} parent=1 // pred_check
      _
    $region59: #{tpu_custom_call.1} parent=1 // pred_check_branch
      %3087 = sbr.rel (0) target = $region61
    $region60: #{tpu_custom_call.1} parent=1 // pred_region
      _
    $region61: #{tpu_custom_call.1} parent=1 // pred_fallthru
      _
    %3088 = vsyncpa [#allocation8], 1
    %3089 = vsyncpa [#allocation10], 1
  %3090 = vsyncmov [#allocation5]
  %s3091 = vpop.sfrf %3090
  %p3092 = scmp.eq.s32.totalorder %s3091, 0
  %p3093 = pneg %p3092
  %3095 = shalt.err (%p3093)

</llo_original>
